<compile_context>
chip_gen: v5e
topology: v5e:2x2
jax: 0.10.0
libtpu: 0.0.40
codegen_flags: <defaults>
</compile_context>

<pallas_src>
import jax
import jax.numpy as jnp
from jax.experimental import pallas as pl
from jax.experimental.pallas import tpu as pltpu


def _round_up(x, m):
    return (x + m - 1) // m * m


def _dims(L):
    L1 = L - 2                         # conv1 (k=3, valid)
    L2 = L1 // 2                       # maxpool1 (k=2, s=2, floor)
    L3 = L2 - 1                        # conv2 (k=2, valid); pool2 (k=1) is identity
    Lpad = _round_up((L + 1) // 2, 128)  # lane-padded spatial width (>= L2 + 1 >= L3)
    return L1, L2, L3, Lpad


# --------------------- feature kernel: conv1 -> relu -> pool(2) -> conv2 -> relu ----------
def _feature_kernel(xe_ref, xo_ref, w1_ref, b1_ref, w2_ref, b2_ref, o_ref):
    # conv1 for both pooling parities: ONE wide matmul each, K = 3*Cin (taps stacked in the
    # wrapper), N = nb*Lpad lanes (batch folded into lanes).
    even = jnp.dot(w1_ref[...], xe_ref[...], preferred_element_type=jnp.float32)  # (32, N)
    odd = jnp.dot(w1_ref[...], xo_ref[...], preferred_element_type=jnp.float32)   # (32, N)

    # relu(max(a,b) + bias) == maxpool(relu(conv1 + bias)): bias is per-channel, relu monotone.
    p1 = jnp.maximum(jnp.maximum(even, odd) + b1_ref[...], 0.0)                   # (32, N)

    # conv2 (k=2) needs p1 at lane p and p+1.  jnp.roll keeps exact jnp semantics (lowered as
    # lane-concat of slices, same cost class as pltpu.roll); the wrapped lane only feeds padded
    # feature positions whose fc1 weight rows are zero, so it never affects the real output.
    p1s = jnp.roll(p1, shift=-1, axis=1)
    h2 = (jnp.dot(w2_ref[0], p1, preferred_element_type=jnp.float32)
          + jnp.dot(w2_ref[1], p1s, preferred_element_type=jnp.float32)
          + b2_ref[...])                                                          # (64, N)

    # bf16 feature store (dense: N is a multiple of 128), halves the intermediate HBM traffic.
    o_ref[...] = jnp.maximum(h2, 0.0).astype(o_ref.dtype)


def conv_features(x_even, x_odd, w1cat, b1, w2, b2, *, nb, Lpad):
    C3, Np = x_even.shape                # (3*Cin, Bp*Lpad)
    Bp = Np // Lpad
    N = nb * Lpad
    return pl.pallas_call(
        _feature_kernel,
        out_shape=jax.ShapeDtypeStruct((64, Np), jnp.bfloat16),
        grid=(Bp // nb,),
        in_specs=[
            pl.BlockSpec((C3, N), lambda i: (0, i)),
            pl.BlockSpec((C3, N), lambda i: (0, i)),
            pl.BlockSpec((32, C3), lambda i: (0, 0)),
            pl.BlockSpec((32, 1), lambda i: (0, 0)),
            pl.BlockSpec((2, 64, 32), lambda i: (0, 0, 0)),
            pl.BlockSpec((64, 1), lambda i: (0, 0)),
        ],
        out_specs=pl.BlockSpec((64, N), lambda i: (0, i)),
        compiler_params=pltpu.CompilerParams(
            dimension_semantics=("parallel",),
            vmem_limit_bytes=48 * 1024 * 1024),
    )(x_even, x_odd, w1cat, b1, w2, b2)


# --------------------- MLP head: fc1 (channel-group-tiled K) -> relu -> fc2 -> sigmoid ----
def _head_kernel(f_ref, w1_ref, b1_ref, w2_ref, b2_ref, o_ref, acc_ref):
    k = pl.program_id(1)

    @pl.when(k == 0)
    def _():
        acc_ref[...] = jnp.zeros_like(acc_ref)

    # cg unrolled bf16 MXU dots of (tm, Lpad) @ (Lpad, 256) per K step; f32 accumulation.
    acc = acc_ref[...]
    for g in range(f_ref.shape[0]):
        acc = acc + jnp.dot(f_ref[g], w1_ref[g], preferred_element_type=jnp.float32)
    acc_ref[...] = acc

    @pl.when(k == pl.num_programs(1) - 1)
    def _():
        h = jnp.maximum(acc_ref[...] + b1_ref[...], 0.0)
        y = jnp.dot(h, w2_ref[...], preferred_element_type=jnp.float32) + b2_ref[...]
        o_ref[...] = jax.nn.sigmoid(y)


def mlp_head(f, w1, b1, w2t, b2, *, tm, cg):
    # f: (64, Bp, Lpad) bf16 features; w1: (64, Lpad, 256) bf16 fc1 weight (channel-major).
    _, Bp, Lpad = f.shape
    H = w1.shape[-1]
    O = w2t.shape[-1]
    return pl.pallas_call(
        _head_kernel,
        out_shape=jax.ShapeDtypeStruct((Bp, O), jnp.float32),
        grid=(Bp // tm, 64 // cg),
        in_specs=[
            pl.BlockSpec((cg, tm, Lpad), lambda m, k: (k, m, 0)),
            pl.BlockSpec((cg, Lpad, H), lambda m, k: (k, 0, 0)),
            pl.BlockSpec((1, H), lambda m, k: (0, 0)),
            pl.BlockSpec((H, O), lambda m, k: (0, 0)),
            pl.BlockSpec((1, O), lambda m, k: (0, 0)),
        ],
        out_specs=pl.BlockSpec((tm, O), lambda m, k: (m, 0)),
        scratch_shapes=[pltpu.VMEM((tm, H), jnp.float32)],
        compiler_params=pltpu.CompilerParams(
            dimension_semantics=("parallel", "arbitrary"),
            vmem_limit_bytes=48 * 1024 * 1024),
    )(f, w1, b1, w2t, b2)


# --------------------- full forward (layout plumbing in plain JAX) ------------------------
@jax.jit
def biege_forward(x, params):
    B, L, Cin = x.shape
    _, _, _, Lpad = _dims(L)

    nb = 16                                   # batch rows per feature-kernel grid step
    Bp = _round_up(B, nb)
    if Bp > 64:
        # keep the head M tile large: fc1 weight (~20 MiB bf16 at L3=600) is re-streamed
        # once per M tile, which dominates padded-row feature cost for big batches.
        Bp = _round_up(Bp, 128)
    tm = 16
    for t in (256, 128, 64, 32, 16):          # largest head M tile dividing Bp
        if Bp % t == 0:
            tm = t
            break
    cg = 8                                    # conv channels folded per head K step

    # torch's x.permute(0, 2, 1) -> (B, Cin, L); fold batch into the lane axis.
    x_cbl = jnp.transpose(x, (2, 0, 1))       # (Cin, B, L)
    if Bp > B:
        x_cbl = jnp.pad(x_cbl, ((0, 0), (0, Bp - B), (0, 0)))

    def strided(s):                           # x[:, :, s::2], zero-padded to Lpad lanes
        v = x_cbl[:, :, s::2]
        v = jnp.pad(v, ((0, 0), (0, 0), (0, Lpad - v.shape[2])))
        return v.reshape(Cin, Bp * Lpad)

    xe, xo, xe_s, xo_s = strided(0), strided(1), strided(2), strided(3)
    # im2col along the (small) channel axis only -> K = 3*Cin per pooling parity:
    #   even output 2j uses x[2j], x[2j+1], x[2j+2];  odd output 2j+1 uses x[2j+1..2j+3].
    x_even = jnp.concatenate([xe, xo, xe_s], axis=0)     # (3*Cin, Bp*Lpad)
    x_odd = jnp.concatenate([xo, xe_s, xo_s], axis=0)    # (3*Cin, Bp*Lpad)

    feat = conv_features(x_even, x_odd, params["w1cat"], params["b1"],
                         params["w2"], params["b2"], nb=nb, Lpad=Lpad)
    feat = feat.reshape(64, Bp, Lpad)         # free row-major reshape in HBM (no transpose)
    out = mlp_head(feat, params["fc1_w"], params["fc1_b"],
                   params["fc2_wT"], params["fc2_b"], tm=tm, cg=cg)
    return out[:B]


# --------------------- deterministic parameter init ---------------------------------------
def init_params(key, input_dim, output_dim, L):
    _, _, L3, Lpad = _dims(L)
    ks = jax.random.split(key, 8)

    def u(k, shape, fan_in):
        bound = 1.0 / (fan_in ** 0.5)
        return jax.random.uniform(k, shape, jnp.float32, -bound, bound)

    w1 = u(ks[0], (32, input_dim, 3), input_dim * 3)   # Conv1d(input_dim, 32, k=3)
    b1 = u(ks[1], (32,), input_dim * 3)
    w2 = u(ks[2], (64, 32, 2), 32 * 2)                 # Conv1d(32, 64, k=2)
    b2 = u(ks[3], (64,), 32 * 2)

    # TODO(synk): PyTorch hard-codes fc1 = Linear(64*600, 256) (forces L3 == 600); here fc1's
    # input size is derived from the actual sequence length so small shapes run.
    F0 = 64 * L3
    fc1_w = u(ks[4], (256, F0), F0)
    fc1_b = u(ks[5], (256,), F0)
    fc2_w = u(ks[6], (output_dim, 256), 256)
    fc2_b = u(ks[7], (output_dim,), 256)

    # conv1 taps stacked along K, matching rows [x(2j), x(2j+1), x(2j+2)] of the im2col input.
    w1cat = jnp.concatenate([w1[:, :, 0], w1[:, :, 1], w1[:, :, 2]], axis=1)  # (32, 3*Cin)
    w2taps = jnp.transpose(w2, (2, 0, 1))                                     # (2, 64, 32)

    # fc1 weight re-laid out as (64, Lpad, 256): torch row index o*L3 + t -> [o, t, :]; padded
    # t >= L3 rows are zero, so finite garbage at padded feature positions contributes nothing.
    w = fc1_w.reshape(256, 64, L3)
    w = jnp.pad(w, ((0, 0), (0, 0), (0, Lpad - L3)))
    fc1_w_tpu = jnp.transpose(w, (1, 2, 0)).astype(jnp.bfloat16)              # (64, Lpad, 256)

    return dict(
        w1cat=w1cat,                          # (32, 3*Cin) f32
        b1=b1.reshape(32, 1),
        w2=w2taps,                            # (2, 64, 32) f32
        b2=b2.reshape(64, 1),
        fc1_w=fc1_w_tpu,                      # (64, Lpad, 256) bf16
        fc1_b=fc1_b.reshape(1, 256),
        fc2_wT=fc2_w.T,                       # (256, output_dim) f32
        fc2_b=fc2_b.reshape(1, output_dim),
    )


if __name__ == "__main__":
    B, L, input_dim, output_dim = 2, 18, 4, 3

    key = jax.random.PRNGKey(0)
    kx, kp = jax.random.split(key)
    x = jax.random.normal(kx, (B, L, input_dim), dtype=jnp.float32)
    params = init_params(kp, input_dim, output_dim, L)

    out = biege_forward(x, params)
    jax.block_until_ready(out)
    assert out.shape == (B, output_dim)
    print("KERNEL_OK")
</pallas_src>

<mosaic_0001>
module attributes {stable_mosaic.version = 11 : i64} {
  func.func @_feature_kernel(%arg0: i32, %arg1: memref<12x2048xf32, #tpu.memory_space<vmem>>, %arg2: memref<12x2048xf32, #tpu.memory_space<vmem>>, %arg3: memref<32x12xf32, #tpu.memory_space<vmem>>, %arg4: memref<32x1xf32, #tpu.memory_space<vmem>>, %arg5: memref<2x64x32xf32, #tpu.memory_space<vmem>>, %arg6: memref<64x1xf32, #tpu.memory_space<vmem>>, %arg7: memref<64x2048xbf16, #tpu.memory_space<vmem>>) attributes {dimension_semantics = [#tpu.dimension_semantics<parallel>], iteration_bounds = array<i64: 1>, scalar_prefetch = 0 : i64, scratch_operands = 0 : i64, tpu.core_type = #tpu.core_type<tc>, window_params = [{transform_indices = @transform_0, window_bounds = array<i64: 12, 2048>}, {transform_indices = @transform_1, window_bounds = array<i64: 12, 2048>}, {pipeline_mode = #tpu.pipeline_mode<synchronous>, transform_indices = @transform_2, window_bounds = array<i64: 32, 12>}, {pipeline_mode = #tpu.pipeline_mode<synchronous>, transform_indices = @transform_3, window_bounds = array<i64: 32, 1>}, {pipeline_mode = #tpu.pipeline_mode<synchronous>, transform_indices = @transform_4, window_bounds = array<i64: 2, 64, 32>}, {pipeline_mode = #tpu.pipeline_mode<synchronous>, transform_indices = @transform_5, window_bounds = array<i64: 64, 1>}, {transform_indices = @transform_6, window_bounds = array<i64: 64, 2048>}]} {
    %c0 = arith.constant 0 : index
    %c0_0 = arith.constant 0 : index
    %0 = vector.load %arg3[%c0, %c0_0] : memref<32x12xf32, #tpu.memory_space<vmem>>, vector<32x12xf32>
    %c0_1 = arith.constant 0 : index
    %c0_2 = arith.constant 0 : index
    %1 = vector.load %arg1[%c0_1, %c0_2] : memref<12x2048xf32, #tpu.memory_space<vmem>>, vector<12x2048xf32>
    %cst = arith.constant dense<0.000000e+00> : vector<32x2048xf32>
    %2 = tpu.matmul %0, %1, %cst {dimension_numbers = #tpu.dot_dimension_numbers<[1], [0], [0], [1], [0, 0, 1, 1], [], []>} : vector<32x12xf32>, vector<12x2048xf32>, vector<32x2048xf32> -> vector<32x2048xf32>
    %c0_3 = arith.constant 0 : index
    %c0_4 = arith.constant 0 : index
    %3 = vector.load %arg3[%c0_3, %c0_4] : memref<32x12xf32, #tpu.memory_space<vmem>>, vector<32x12xf32>
    %c0_5 = arith.constant 0 : index
    %c0_6 = arith.constant 0 : index
    %4 = vector.load %arg2[%c0_5, %c0_6] : memref<12x2048xf32, #tpu.memory_space<vmem>>, vector<12x2048xf32>
    %cst_7 = arith.constant dense<0.000000e+00> : vector<32x2048xf32>
    %5 = tpu.matmul %3, %4, %cst_7 {dimension_numbers = #tpu.dot_dimension_numbers<[1], [0], [0], [1], [0, 0, 1, 1], [], []>} : vector<32x12xf32>, vector<12x2048xf32>, vector<32x2048xf32> -> vector<32x2048xf32>
    %6 = arith.maximumf %2, %5 : vector<32x2048xf32>
    %c0_8 = arith.constant 0 : index
    %c0_9 = arith.constant 0 : index
    %7 = vector.load %arg4[%c0_8, %c0_9] : memref<32x1xf32, #tpu.memory_space<vmem>>, vector<32x1xf32>
    %8 = vector.broadcast %7 : vector<32x1xf32> to vector<32x2048xf32>
    %9 = arith.addf %6, %8 : vector<32x2048xf32>
    %cst_10 = arith.constant 0.000000e+00 : f32
    %10 = vector.broadcast %cst_10 : f32 to vector<32x2048xf32>
    %11 = arith.maximumf %9, %10 : vector<32x2048xf32>
    %12 = vector.extract_strided_slice %11 {offsets = [0, 1], sizes = [32, 2047], strides = [1, 1]} : vector<32x2048xf32> to vector<32x2047xf32>
    %13 = vector.extract_strided_slice %11 {offsets = [0, 0], sizes = [32, 1], strides = [1, 1]} : vector<32x2048xf32> to vector<32x1xf32>
    %14 = tpu.concatenate %12, %13 in 1 : vector<32x2047xf32>, vector<32x1xf32> -> vector<32x2048xf32>
    %c0_11 = arith.constant 0 : index
    %c0_12 = arith.constant 0 : index
    %c0_13 = arith.constant 0 : index
    %15 = vector.load %arg5[%c0_11, %c0_12, %c0_13] : memref<2x64x32xf32, #tpu.memory_space<vmem>>, vector<1x64x32xf32>
    %16 = vector.shape_cast %15 : vector<1x64x32xf32> to vector<64x32xf32>
    %cst_14 = arith.constant dense<0.000000e+00> : vector<64x2048xf32>
    %17 = tpu.matmul %16, %11, %cst_14 {dimension_numbers = #tpu.dot_dimension_numbers<[1], [0], [0], [1], [0, 0, 1, 1], [], []>} : vector<64x32xf32>, vector<32x2048xf32>, vector<64x2048xf32> -> vector<64x2048xf32>
    %c1 = arith.constant 1 : index
    %c0_15 = arith.constant 0 : index
    %c0_16 = arith.constant 0 : index
    %18 = vector.load %arg5[%c1, %c0_15, %c0_16] : memref<2x64x32xf32, #tpu.memory_space<vmem>>, vector<1x64x32xf32>
    %19 = vector.shape_cast %18 : vector<1x64x32xf32> to vector<64x32xf32>
    %cst_17 = arith.constant dense<0.000000e+00> : vector<64x2048xf32>
    %20 = tpu.matmul %19, %14, %cst_17 {dimension_numbers = #tpu.dot_dimension_numbers<[1], [0], [0], [1], [0, 0, 1, 1], [], []>} : vector<64x32xf32>, vector<32x2048xf32>, vector<64x2048xf32> -> vector<64x2048xf32>
    %21 = arith.addf %17, %20 : vector<64x2048xf32>
    %c0_18 = arith.constant 0 : index
    %c0_19 = arith.constant 0 : index
    %22 = vector.load %arg6[%c0_18, %c0_19] : memref<64x1xf32, #tpu.memory_space<vmem>>, vector<64x1xf32>
    %23 = vector.broadcast %22 : vector<64x1xf32> to vector<64x2048xf32>
    %24 = arith.addf %21, %23 : vector<64x2048xf32>
    %cst_20 = arith.constant 0.000000e+00 : f32
    %25 = vector.broadcast %cst_20 : f32 to vector<64x2048xf32>
    %26 = arith.maximumf %24, %25 : vector<64x2048xf32>
    %27 = arith.truncf %26 : vector<64x2048xf32> to vector<64x2048xbf16>
    %c0_21 = arith.constant 0 : index
    %c0_22 = arith.constant 0 : index
    %28 = vector.load %arg7[%c0_21, %c0_22] : memref<64x2048xbf16, #tpu.memory_space<vmem>>, vector<64x2048xbf16>
    tpu.vector_store %arg7[%c0_21, %c0_22], %27 {strides = array<i32>} : memref<64x2048xbf16, #tpu.memory_space<vmem>>, vector<64x2048xbf16>,
    return
  }
  func.func @transform_0(%arg0: i32) -> (i32, i32) {
    %c0_i32 = arith.constant 0 : i32
    %c0_i32_0 = arith.constant 0 : i32
    return %c0_i32, %arg0 : i32, i32
  }
  func.func @transform_1(%arg0: i32) -> (i32, i32) {
    %c0_i32 = arith.constant 0 : i32
    %c0_i32_0 = arith.constant 0 : i32
    return %c0_i32, %arg0 : i32, i32
  }
  func.func @transform_2(%arg0: i32) -> (i32, i32) {
    %c0_i32 = arith.constant 0 : i32
    %c0_i32_0 = arith.constant 0 : i32
    %c0_i32_1 = arith.constant 0 : i32
    return %c0_i32, %c0_i32_0 : i32, i32
  }
  func.func @transform_3(%arg0: i32) -> (i32, i32) {
    %c0_i32 = arith.constant 0 : i32
    %c0_i32_0 = arith.constant 0 : i32
    %c0_i32_1 = arith.constant 0 : i32
    return %c0_i32, %c0_i32_0 : i32, i32
  }
  func.func @transform_4(%arg0: i32) -> (i32, i32, i32) {
    %c0_i32 = arith.constant 0 : i32
    %c0_i32_0 = arith.constant 0 : i32
    %c0_i32_1 = arith.constant 0 : i32
    %c0_i32_2 = arith.constant 0 : i32
    return %c0_i32, %c0_i32_0, %c0_i32_1 : i32, i32, i32
  }
  func.func @transform_5(%arg0: i32) -> (i32, i32) {
    %c0_i32 = arith.constant 0 : i32
    %c0_i32_0 = arith.constant 0 : i32
    %c0_i32_1 = arith.constant 0 : i32
    return %c0_i32, %c0_i32_0 : i32, i32
  }
  func.func @transform_6(%arg0: i32) -> (i32, i32) {
    %c0_i32 = arith.constant 0 : i32
    %c0_i32_0 = arith.constant 0 : i32
    return %c0_i32, %arg0 : i32, i32
  }
}

module attributes {stable_mosaic.version = 11 : i64} {
  func.func @_head_kernel(%arg0: i32, %arg1: i32, %arg2: memref<8x16x128xbf16, #tpu.memory_space<vmem>>, %arg3: memref<8x128x256xbf16, #tpu.memory_space<vmem>>, %arg4: memref<1x256xf32, #tpu.memory_space<vmem>>, %arg5: memref<256x3xf32, #tpu.memory_space<vmem>>, %arg6: memref<1x3xf32, #tpu.memory_space<vmem>>, %arg7: memref<16x3xf32, #tpu.memory_space<vmem>>, %arg8: memref<16x256xf32, #tpu.memory_space<vmem>>) attributes {dimension_semantics = [#tpu.dimension_semantics<parallel>, #tpu.dimension_semantics<arbitrary>], iteration_bounds = array<i64: 1, 8>, scalar_prefetch = 0 : i64, scratch_operands = 1 : i64, tpu.core_type = #tpu.core_type<tc>, window_params = [{transform_indices = @transform_0, window_bounds = array<i64: 8, 16, 128>}, {transform_indices = @transform_1, window_bounds = array<i64: 8, 128, 256>}, {pipeline_mode = #tpu.pipeline_mode<synchronous>, transform_indices = @transform_2, window_bounds = array<i64: 1, 256>}, {pipeline_mode = #tpu.pipeline_mode<synchronous>, transform_indices = @transform_3, window_bounds = array<i64: 256, 3>}, {pipeline_mode = #tpu.pipeline_mode<synchronous>, transform_indices = @transform_4, window_bounds = array<i64: 1, 3>}, {transform_indices = @transform_5, window_bounds = array<i64: 16, 3>}]} {
    %c0_i32 = arith.constant 0 : i32
    %0 = arith.cmpi eq, %arg1, %c0_i32 : i32
    %1 = arith.extui %0 : i1 to i32
    %c0_i32_0 = arith.constant 0 : i32
    %2 = arith.cmpi ne, %1, %c0_i32_0 : i32
    scf.if %2 {
      %cst_53 = arith.constant 0.000000e+00 : f32
      %56 = vector.broadcast %cst_53 : f32 to vector<16x256xf32>
      %c0_54 = arith.constant 0 : index
      %c0_55 = arith.constant 0 : index
      %57 = vector.load %arg8[%c0_54, %c0_55] : memref<16x256xf32, #tpu.memory_space<vmem>>, vector<16x256xf32>
      tpu.vector_store %arg8[%c0_54, %c0_55], %56 {strides = array<i32>} : memref<16x256xf32, #tpu.memory_space<vmem>>, vector<16x256xf32>,
    } else {
    }
    %c0 = arith.constant 0 : index
    %c0_1 = arith.constant 0 : index
    %3 = vector.load %arg8[%c0, %c0_1] : memref<16x256xf32, #tpu.memory_space<vmem>>, vector<16x256xf32>
    %c0_2 = arith.constant 0 : index
    %c0_3 = arith.constant 0 : index
    %c0_4 = arith.constant 0 : index
    %4 = vector.load %arg2[%c0_2, %c0_3, %c0_4] : memref<8x16x128xbf16, #tpu.memory_space<vmem>>, vector<1x16x128xbf16>
    %5 = vector.shape_cast %4 : vector<1x16x128xbf16> to vector<16x128xbf16>
    %c0_5 = arith.constant 0 : index
    %c0_6 = arith.constant 0 : index
    %c0_7 = arith.constant 0 : index
    %6 = vector.load %arg3[%c0_5, %c0_6, %c0_7] : memref<8x128x256xbf16, #tpu.memory_space<vmem>>, vector<1x128x256xbf16>
    %7 = vector.shape_cast %6 : vector<1x128x256xbf16> to vector<128x256xbf16>
    %cst = arith.constant dense<0.000000e+00> : vector<16x256xf32>
    %8 = tpu.matmul %5, %7, %cst {dimension_numbers = #tpu.dot_dimension_numbers<[1], [0], [0], [1], [0, 0, 1, 1], [], []>} : vector<16x128xbf16>, vector<128x256xbf16>, vector<16x256xf32> -> vector<16x256xf32>
    %9 = arith.addf %3, %8 : vector<16x256xf32>
    %c1 = arith.constant 1 : index
    %c0_8 = arith.constant 0 : index
    %c0_9 = arith.constant 0 : index
    %10 = vector.load %arg2[%c1, %c0_8, %c0_9] : memref<8x16x128xbf16, #tpu.memory_space<vmem>>, vector<1x16x128xbf16>
    %11 = vector.shape_cast %10 : vector<1x16x128xbf16> to vector<16x128xbf16>
    %c1_10 = arith.constant 1 : index
    %c0_11 = arith.constant 0 : index
    %c0_12 = arith.constant 0 : index
    %12 = vector.load %arg3[%c1_10, %c0_11, %c0_12] : memref<8x128x256xbf16, #tpu.memory_space<vmem>>, vector<1x128x256xbf16>
    %13 = vector.shape_cast %12 : vector<1x128x256xbf16> to vector<128x256xbf16>
    %cst_13 = arith.constant dense<0.000000e+00> : vector<16x256xf32>
    %14 = tpu.matmul %11, %13, %cst_13 {dimension_numbers = #tpu.dot_dimension_numbers<[1], [0], [0], [1], [0, 0, 1, 1], [], []>} : vector<16x128xbf16>, vector<128x256xbf16>, vector<16x256xf32> -> vector<16x256xf32>
    %15 = arith.addf %9, %14 : vector<16x256xf32>
    %c2 = arith.constant 2 : index
    %c0_14 = arith.constant 0 : index
    %c0_15 = arith.constant 0 : index
    %16 = vector.load %arg2[%c2, %c0_14, %c0_15] : memref<8x16x128xbf16, #tpu.memory_space<vmem>>, vector<1x16x128xbf16>
    %17 = vector.shape_cast %16 : vector<1x16x128xbf16> to vector<16x128xbf16>
    %c2_16 = arith.constant 2 : index
    %c0_17 = arith.constant 0 : index
    %c0_18 = arith.constant 0 : index
    %18 = vector.load %arg3[%c2_16, %c0_17, %c0_18] : memref<8x128x256xbf16, #tpu.memory_space<vmem>>, vector<1x128x256xbf16>
    %19 = vector.shape_cast %18 : vector<1x128x256xbf16> to vector<128x256xbf16>
    %cst_19 = arith.constant dense<0.000000e+00> : vector<16x256xf32>
    %20 = tpu.matmul %17, %19, %cst_19 {dimension_numbers = #tpu.dot_dimension_numbers<[1], [0], [0], [1], [0, 0, 1, 1], [], []>} : vector<16x128xbf16>, vector<128x256xbf16>, vector<16x256xf32> -> vector<16x256xf32>
    %21 = arith.addf %15, %20 : vector<16x256xf32>
    %c3 = arith.constant 3 : index
    %c0_20 = arith.constant 0 : index
    %c0_21 = arith.constant 0 : index
    %22 = vector.load %arg2[%c3, %c0_20, %c0_21] : memref<8x16x128xbf16, #tpu.memory_space<vmem>>, vector<1x16x128xbf16>
    %23 = vector.shape_cast %22 : vector<1x16x128xbf16> to vector<16x128xbf16>
    %c3_22 = arith.constant 3 : index
    %c0_23 = arith.constant 0 : index
    %c0_24 = arith.constant 0 : index
    %24 = vector.load %arg3[%c3_22, %c0_23, %c0_24] : memref<8x128x256xbf16, #tpu.memory_space<vmem>>, vector<1x128x256xbf16>
    %25 = vector.shape_cast %24 : vector<1x128x256xbf16> to vector<128x256xbf16>
    %cst_25 = arith.constant dense<0.000000e+00> : vector<16x256xf32>
    %26 = tpu.matmul %23, %25, %cst_25 {dimension_numbers = #tpu.dot_dimension_numbers<[1], [0], [0], [1], [0, 0, 1, 1], [], []>} : vector<16x128xbf16>, vector<128x256xbf16>, vector<16x256xf32> -> vector<16x256xf32>
    %27 = arith.addf %21, %26 : vector<16x256xf32>
    %c4 = arith.constant 4 : index
    %c0_26 = arith.constant 0 : index
    %c0_27 = arith.constant 0 : index
    %28 = vector.load %arg2[%c4, %c0_26, %c0_27] : memref<8x16x128xbf16, #tpu.memory_space<vmem>>, vector<1x16x128xbf16>
    %29 = vector.shape_cast %28 : vector<1x16x128xbf16> to vector<16x128xbf16>
    %c4_28 = arith.constant 4 : index
    %c0_29 = arith.constant 0 : index
    %c0_30 = arith.constant 0 : index
    %30 = vector.load %arg3[%c4_28, %c0_29, %c0_30] : memref<8x128x256xbf16, #tpu.memory_space<vmem>>, vector<1x128x256xbf16>
    %31 = vector.shape_cast %30 : vector<1x128x256xbf16> to vector<128x256xbf16>
    %cst_31 = arith.constant dense<0.000000e+00> : vector<16x256xf32>
    %32 = tpu.matmul %29, %31, %cst_31 {dimension_numbers = #tpu.dot_dimension_numbers<[1], [0], [0], [1], [0, 0, 1, 1], [], []>} : vector<16x128xbf16>, vector<128x256xbf16>, vector<16x256xf32> -> vector<16x256xf32>
    %33 = arith.addf %27, %32 : vector<16x256xf32>
    %c5 = arith.constant 5 : index
    %c0_32 = arith.constant 0 : index
    %c0_33 = arith.constant 0 : index
    %34 = vector.load %arg2[%c5, %c0_32, %c0_33] : memref<8x16x128xbf16, #tpu.memory_space<vmem>>, vector<1x16x128xbf16>
    %35 = vector.shape_cast %34 : vector<1x16x128xbf16> to vector<16x128xbf16>
    %c5_34 = arith.constant 5 : index
    %c0_35 = arith.constant 0 : index
    %c0_36 = arith.constant 0 : index
    %36 = vector.load %arg3[%c5_34, %c0_35, %c0_36] : memref<8x128x256xbf16, #tpu.memory_space<vmem>>, vector<1x128x256xbf16>
    %37 = vector.shape_cast %36 : vector<1x128x256xbf16> to vector<128x256xbf16>
    %cst_37 = arith.constant dense<0.000000e+00> : vector<16x256xf32>
    %38 = tpu.matmul %35, %37, %cst_37 {dimension_numbers = #tpu.dot_dimension_numbers<[1], [0], [0], [1], [0, 0, 1, 1], [], []>} : vector<16x128xbf16>, vector<128x256xbf16>, vector<16x256xf32> -> vector<16x256xf32>
    %39 = arith.addf %33, %38 : vector<16x256xf32>
    %c6 = arith.constant 6 : index
    %c0_38 = arith.constant 0 : index
    %c0_39 = arith.constant 0 : index
    %40 = vector.load %arg2[%c6, %c0_38, %c0_39] : memref<8x16x128xbf16, #tpu.memory_space<vmem>>, vector<1x16x128xbf16>
    %41 = vector.shape_cast %40 : vector<1x16x128xbf16> to vector<16x128xbf16>
    %c6_40 = arith.constant 6 : index
    %c0_41 = arith.constant 0 : index
    %c0_42 = arith.constant 0 : index
    %42 = vector.load %arg3[%c6_40, %c0_41, %c0_42] : memref<8x128x256xbf16, #tpu.memory_space<vmem>>, vector<1x128x256xbf16>
    %43 = vector.shape_cast %42 : vector<1x128x256xbf16> to vector<128x256xbf16>
    %cst_43 = arith.constant dense<0.000000e+00> : vector<16x256xf32>
    %44 = tpu.matmul %41, %43, %cst_43 {dimension_numbers = #tpu.dot_dimension_numbers<[1], [0], [0], [1], [0, 0, 1, 1], [], []>} : vector<16x128xbf16>, vector<128x256xbf16>, vector<16x256xf32> -> vector<16x256xf32>
    %45 = arith.addf %39, %44 : vector<16x256xf32>
    %c7 = arith.constant 7 : index
    %c0_44 = arith.constant 0 : index
    %c0_45 = arith.constant 0 : index
    %46 = vector.load %arg2[%c7, %c0_44, %c0_45] : memref<8x16x128xbf16, #tpu.memory_space<vmem>>, vector<1x16x128xbf16>
    %47 = vector.shape_cast %46 : vector<1x16x128xbf16> to vector<16x128xbf16>
    %c7_46 = arith.constant 7 : index
    %c0_47 = arith.constant 0 : index
    %c0_48 = arith.constant 0 : index
    %48 = vector.load %arg3[%c7_46, %c0_47, %c0_48] : memref<8x128x256xbf16, #tpu.memory_space<vmem>>, vector<1x128x256xbf16>
    %49 = vector.shape_cast %48 : vector<1x128x256xbf16> to vector<128x256xbf16>
    %cst_49 = arith.constant dense<0.000000e+00> : vector<16x256xf32>
    %50 = tpu.matmul %47, %49, %cst_49 {dimension_numbers = #tpu.dot_dimension_numbers<[1], [0], [0], [1], [0, 0, 1, 1], [], []>} : vector<16x128xbf16>, vector<128x256xbf16>, vector<16x256xf32> -> vector<16x256xf32>
    %51 = arith.addf %45, %50 : vector<16x256xf32>
    %c0_50 = arith.constant 0 : index
    %c0_51 = arith.constant 0 : index
    %52 = vector.load %arg8[%c0_50, %c0_51] : memref<16x256xf32, #tpu.memory_space<vmem>>, vector<16x256xf32>
    tpu.vector_store %arg8[%c0_50, %c0_51], %51 {strides = array<i32>} : memref<16x256xf32, #tpu.memory_space<vmem>>, vector<16x256xf32>,
    %c7_i32 = arith.constant 7 : i32
    %53 = arith.cmpi eq, %arg1, %c7_i32 : i32
    %54 = arith.extui %53 : i1 to i32
    %c0_i32_52 = arith.constant 0 : i32
    %55 = arith.cmpi ne, %54, %c0_i32_52 : i32
    scf.if %55 {
      %c0_53 = arith.constant 0 : index
      %c0_54 = arith.constant 0 : index
      %56 = vector.load %arg8[%c0_53, %c0_54] : memref<16x256xf32, #tpu.memory_space<vmem>>, vector<16x256xf32>
      %c0_55 = arith.constant 0 : index
      %c0_56 = arith.constant 0 : index
      %57 = vector.load %arg4[%c0_55, %c0_56] : memref<1x256xf32, #tpu.memory_space<vmem>>, vector<1x256xf32>
      %58 = vector.broadcast %57 : vector<1x256xf32> to vector<16x256xf32>
      %59 = arith.addf %56, %58 : vector<16x256xf32>
      %cst_57 = arith.constant 0.000000e+00 : f32
      %60 = vector.broadcast %cst_57 : f32 to vector<16x256xf32>
      %61 = arith.maximumf %59, %60 : vector<16x256xf32>
      %c0_58 = arith.constant 0 : index
      %c0_59 = arith.constant 0 : index
      %62 = vector.load %arg5[%c0_58, %c0_59] : memref<256x3xf32, #tpu.memory_space<vmem>>, vector<256x3xf32>
      %cst_60 = arith.constant dense<0.000000e+00> : vector<16x3xf32>
      %63 = tpu.matmul %61, %62, %cst_60 {dimension_numbers = #tpu.dot_dimension_numbers<[1], [0], [0], [1], [0, 0, 1, 1], [], []>} : vector<16x256xf32>, vector<256x3xf32>, vector<16x3xf32> -> vector<16x3xf32>
      %c0_61 = arith.constant 0 : index
      %c0_62 = arith.constant 0 : index
      %64 = vector.load %arg6[%c0_61, %c0_62] : memref<1x3xf32, #tpu.memory_space<vmem>>, vector<1x3xf32>
      %65 = vector.broadcast %64 : vector<1x3xf32> to vector<16x3xf32>
      %66 = arith.addf %63, %65 : vector<16x3xf32>
      %67 = arith.negf %66 : vector<16x3xf32>
      %68 = math.exp %67 : vector<16x3xf32>
      %cst_63 = arith.constant 1.000000e+00 : f32
      %69 = vector.broadcast %cst_63 : f32 to vector<16x3xf32>
      %70 = arith.addf %69, %68 : vector<16x3xf32>
      %71 = arith.divf %69, %70 : vector<16x3xf32>
      %c0_64 = arith.constant 0 : index
      %c0_65 = arith.constant 0 : index
      %72 = vector.load %arg7[%c0_64, %c0_65] : memref<16x3xf32, #tpu.memory_space<vmem>>, vector<16x3xf32>
      tpu.vector_store %arg7[%c0_64, %c0_65], %71 {strides = array<i32>} : memref<16x3xf32, #tpu.memory_space<vmem>>, vector<16x3xf32>,
    } else {
    }
    return
  }
  func.func @transform_0(%arg0: i32, %arg1: i32) -> (i32, i32, i32) {
    %c0_i32 = arith.constant 0 : i32
    %c0_i32_0 = arith.constant 0 : i32
    return %arg1, %arg0, %c0_i32 : i32, i32, i32
  }
  func.func @transform_1(%arg0: i32, %arg1: i32) -> (i32, i32, i32) {
    %c0_i32 = arith.constant 0 : i32
    %c0_i32_0 = arith.constant 0 : i32
    %c0_i32_1 = arith.constant 0 : i32
    return %arg1, %c0_i32, %c0_i32_0 : i32, i32, i32
  }
  func.func @transform_2(%arg0: i32, %arg1: i32) -> (i32, i32) {
    %c0_i32 = arith.constant 0 : i32
    %c0_i32_0 = arith.constant 0 : i32
    %c0_i32_1 = arith.constant 0 : i32
    return %c0_i32, %c0_i32_0 : i32, i32
  }
  func.func @transform_3(%arg0: i32, %arg1: i32) -> (i32, i32) {
    %c0_i32 = arith.constant 0 : i32
    %c0_i32_0 = arith.constant 0 : i32
    %c0_i32_1 = arith.constant 0 : i32
    return %c0_i32, %c0_i32_0 : i32, i32
  }
  func.func @transform_4(%arg0: i32, %arg1: i32) -> (i32, i32) {
    %c0_i32 = arith.constant 0 : i32
    %c0_i32_0 = arith.constant 0 : i32
    %c0_i32_1 = arith.constant 0 : i32
    return %c0_i32, %c0_i32_0 : i32, i32
  }
  func.func @transform_5(%arg0: i32, %arg1: i32) -> (i32, i32) {
    %c0_i32 = arith.constant 0 : i32
    %c0_i32_0 = arith.constant 0 : i32
    return %arg0, %c0_i32 : i32, i32
  }
}

</mosaic_0001>

<llo_original>
// kernel: biege_forward.3
$region0: #{biege_forward.3}
  #allocation0 [shape = 'u32[]', space=smem, size = 0x4, offset = 0x4, fixed_abs, tag = 'smem constant byte address 0x4 - core index']
  #allocation1 [shape = 'u32[72,128]{1,0:T(1,128)}', space=vmem, size = 0x9000, scoped, tag = 'internal scratch']
  #allocation2 [shape = 'f32[16,256]{1,0:T(8,128)}', space=vmem, size = 0x4000, scoped, tag = 'scratch operand']
  %s0 = inlined_call_operand.vmem [shape: bf16[64,16,128], index: 0, kind: input, shape index: {}]
  %s1 = inlined_call_operand.hbm [shape: bf16[64,128,256], index: 1, kind: input, shape index: {}]
  %s2 = inlined_call_operand.hbm [shape: f32[1,256], index: 2, kind: input, shape index: {}]
  %s3 = inlined_call_operand.vmem [shape: f32[256,3], index: 3, kind: input, shape index: {}]
  %s4 = inlined_call_operand.hbm [shape: f32[1,3], index: 4, kind: input, shape index: {}]
  %s5 = inlined_call_operand.vmem [shape: f32[16,3], index: 5, kind: output, shape index: {}]
  %s6 = sld [smem:[#allocation0]]
  $region73: #{biege_forward.3} parent=0
    _
  %s8 = ssub.s32 1, %s6
  %s9 = scalar_select 0, %s8, %s6
  $region1: #{biege_forward.3} parent=0
    #allocation3 [shape = 'u8[1048576]{0}', space=vmem, size = 0x100000, scoped, tag = 'input window, operand 1']
    #allocation4 [shape = 's32[2]{0}', space=sflag, size = 0x8, scoped, tag = 'scoped memory for biege_forward.3']
    #allocation5 [shape = 'u8[1024]{0}', space=vmem, size = 0x400, scoped, tag = 'input window, operand 2, single buffered']
    #allocation6 [shape = 's32[1]{0}', space=sflag, size = 0x4, scoped, tag = 'scoped memory for biege_forward.3']
    #allocation7 [shape = 'u8[512]{0}', space=vmem, size = 0x400, scoped, tag = 'input window, operand 4, single buffered']
    %10 = vsyncpa [#allocation4], 0
    %s11 = scalar_lea.sflag [#allocation4], 1
    %12 = vsyncpa %s11, 0
    %13 = vsyncpa [#allocation6], 0
    loop: start=0, step=1, limit=10
    $region2: #{biege_forward.3} parent=1 // loop_pre_header
      _
    $region3: #{biege_forward.3} parent=1 // loop_header
      %s15 = sphi 0, %s19
      %p16 = scmp.ge.s32.totalorder %s15, 10
      %s22 = sphi 0, %s34
      %s23 = sphi 0, %s30
      %s24 = sphi 0, %s22
      %s25 = sphi 0, %s23
      %s26 = sphi 0, %s24
      %s27 = sphi 0, %s25
      %s39 = sphi 0, %s41
      %s42 = sphi 0, %s39
      %s43 = sphi 0, %s42
      %s59 = sphi 0, %s43
      %s65 = sphi 0, %s67
      %s68 = sphi 0, %s65
      %s69 = sphi 0, %s68
      %s85 = sphi 0, %s69
      %s89 = sphi 0, %s89
      %s91 = sphi 0, %s89
      %s92 = sphi 0, %s91
      %s106 = sphi 0, %s92
      %s110 = sphi 0, %s110
      %s112 = sphi 0, %s110
      %s113 = sphi 0, %s112
      %s127 = sphi 0, %s113
      %s131 = sphi 0, %s131
      %s133 = sphi 0, %s131
      %s134 = sphi 0, %s133
      %s148 = sphi 0, %s134
      %s154 = sphi 0, %s156
      %s157 = sphi 0, %s154
      %s158 = sphi 0, %s157
      %s174 = sphi 0, %s158
    $region4: #{biege_forward.3} parent=1 // loop_header_branch
      %18 = sbr.rel (%p16) target = $region8
    $region5: #{biege_forward.3} parent=1 // loop_body
      %s20 = ssub.s32 %s15, 1
      %s21 = ssub.s32 %s15, 2
      %s28 = sadd.s32 1, %s23
      %p29 = scmp.ge.s32.totalorder %s28, 8
      %s30 = scalar_select %p29, 0, %s28
      %s31 = sadd.s32 1, %s22
      %s32 = scalar_select %p29, %s31, %s22
      %p33 = scmp.ge.s32.totalorder %s32, 1
      %s34 = scalar_select %p33, 0, %s32
      %s35 = ssub.s32 %s23, %s30
      %s36 = ssub.s32 %s22, %s34
      %s37 = sor.u32 %s35, %s36
      %p38 = scmp.eq.s32.totalorder %s37, 0
      %s40 = sadd.s32 %s39, 1
      %s41 = scalar_select %p38, %s39, %s40
      %p44 = pneg %p38
      %p45 = scmp.eq.s32.totalorder %s15, 7
      %p46 = por %p44, %p45
      %p47 = scmp.ne.s32.totalorder %s39, %s42
      %p48 = scmp.eq.s32.totalorder %s15, 0
      %p49 = por %p47, %p48
      %p50 = scmp.ne.s32.totalorder %s39, %s42
      %p51 = scmp.eq.s32.totalorder %s20, 7
      %p52 = por %p50, %p51
      %p53 = scmp.ne.s32.totalorder %s42, %s43
      %p54 = scmp.eq.s32.totalorder %s20, 0
      %p55 = por %p53, %p54
      %p56 = scmp.ne.s32.totalorder %s42, %s43
      %p57 = scmp.eq.s32.totalorder %s21, 7
      %p58 = por %p56, %p57
      %p60 = scmp.ne.s32.totalorder %s43, %s59
      %p61 = scmp.eq.s32.totalorder %s21, 0
      %p62 = por %p60, %p61
      %s63 = ssub.s32 %s23, %s30
      %p64 = scmp.eq.s32.totalorder %s63, 0
      %s66 = sadd.s32 %s65, 1
      %s67 = scalar_select %p64, %s65, %s66
      %p70 = pneg %p64
      %p71 = scmp.eq.s32.totalorder %s15, 7
      %p72 = por %p70, %p71
      %p73 = scmp.ne.s32.totalorder %s65, %s68
      %p74 = scmp.eq.s32.totalorder %s15, 0
      %p75 = por %p73, %p74
      %p76 = scmp.ne.s32.totalorder %s65, %s68
      %p77 = scmp.eq.s32.totalorder %s20, 7
      %p78 = por %p76, %p77
      %p79 = scmp.ne.s32.totalorder %s68, %s69
      %p80 = scmp.eq.s32.totalorder %s20, 0
      %p81 = por %p79, %p80
      %p82 = scmp.ne.s32.totalorder %s68, %s69
      %p83 = scmp.eq.s32.totalorder %s21, 7
      %p84 = por %p82, %p83
      %p86 = scmp.ne.s32.totalorder %s69, %s85
      %p87 = scmp.eq.s32.totalorder %s21, 0
      %p88 = por %p86, %p87
      %s90 = sadd.s32 %s89, 1
      %p93 = scmp.eq.s32.totalorder %s15, 7
      %p94 = scmp.ne.s32.totalorder %s89, %s91
      %p95 = scmp.eq.s32.totalorder %s15, 0
      %p96 = por %p94, %p95
      %p97 = scmp.ne.s32.totalorder %s89, %s91
      %p98 = scmp.eq.s32.totalorder %s20, 7
      %p99 = por %p97, %p98
      %p100 = scmp.ne.s32.totalorder %s91, %s92
      %p101 = scmp.eq.s32.totalorder %s20, 0
      %p102 = por %p100, %p101
      %p103 = scmp.ne.s32.totalorder %s91, %s92
      %p104 = scmp.eq.s32.totalorder %s21, 7
      %p105 = por %p103, %p104
      %p107 = scmp.ne.s32.totalorder %s92, %s106
      %p108 = scmp.eq.s32.totalorder %s21, 0
      %p109 = por %p107, %p108
      %s111 = sadd.s32 %s110, 1
      %p114 = scmp.eq.s32.totalorder %s15, 7
      %p115 = scmp.ne.s32.totalorder %s110, %s112
      %p116 = scmp.eq.s32.totalorder %s15, 0
      %p117 = por %p115, %p116
      %p118 = scmp.ne.s32.totalorder %s110, %s112
      %p119 = scmp.eq.s32.totalorder %s20, 7
      %p120 = por %p118, %p119
      %p121 = scmp.ne.s32.totalorder %s112, %s113
      %p122 = scmp.eq.s32.totalorder %s20, 0
      %p123 = por %p121, %p122
      %p124 = scmp.ne.s32.totalorder %s112, %s113
      %p125 = scmp.eq.s32.totalorder %s21, 7
      %p126 = por %p124, %p125
      %p128 = scmp.ne.s32.totalorder %s113, %s127
      %p129 = scmp.eq.s32.totalorder %s21, 0
      %p130 = por %p128, %p129
      %s132 = sadd.s32 %s131, 1
      %p135 = scmp.eq.s32.totalorder %s15, 7
      %p136 = scmp.ne.s32.totalorder %s131, %s133
      %p137 = scmp.eq.s32.totalorder %s15, 0
      %p138 = por %p136, %p137
      %p139 = scmp.ne.s32.totalorder %s131, %s133
      %p140 = scmp.eq.s32.totalorder %s20, 7
      %p141 = por %p139, %p140
      %p142 = scmp.ne.s32.totalorder %s133, %s134
      %p143 = scmp.eq.s32.totalorder %s20, 0
      %p144 = por %p142, %p143
      %p145 = scmp.ne.s32.totalorder %s133, %s134
      %p146 = scmp.eq.s32.totalorder %s21, 7
      %p147 = por %p145, %p146
      %p149 = scmp.ne.s32.totalorder %s134, %s148
      %p150 = scmp.eq.s32.totalorder %s21, 0
      %p151 = por %p149, %p150
      %s152 = ssub.s32 %s22, %s34
      %p153 = scmp.eq.s32.totalorder %s152, 0
      %s155 = sadd.s32 %s154, 1
      %s156 = scalar_select %p153, %s154, %s155
      %p159 = pneg %p153
      %p160 = scmp.eq.s32.totalorder %s15, 7
      %p161 = por %p159, %p160
      %p162 = scmp.ne.s32.totalorder %s154, %s157
      %p163 = scmp.eq.s32.totalorder %s15, 0
      %p164 = por %p162, %p163
      %p165 = scmp.ne.s32.totalorder %s154, %s157
      %p166 = scmp.eq.s32.totalorder %s20, 7
      %p167 = por %p165, %p166
      %p168 = scmp.ne.s32.totalorder %s157, %s158
      %p169 = scmp.eq.s32.totalorder %s20, 0
      %p170 = por %p168, %p169
      %p171 = scmp.ne.s32.totalorder %s157, %s158
      %p172 = scmp.eq.s32.totalorder %s21, 7
      %p173 = por %p171, %p172
      %p175 = scmp.ne.s32.totalorder %s158, %s174
      %p176 = scmp.eq.s32.totalorder %s21, 0
      %p177 = por %p175, %p176
      %p178 = scmp.le.s32.totalorder 1, %s15
      %p179 = scmp.lt.s32.totalorder %s15, 9
      %p180 = pnand %p178, %p179
      %p181 = pneg %p180
      // Predicated region
      $region9: #{biege_forward.3} parent=5 // pred_check
        _
      $region10: #{biege_forward.3} parent=5 // pred_check_branch
        %183 = sbr.rel (%p180) target = $region12
      $region11: #{biege_forward.3} parent=5 // pred_region
        %s184 = ssub.s32 %s15, 1
        // Predicated region
        $region13: #{biege_forward.3} parent=11 // pred_check
          %p185 = pneg %p102
        $region14: #{biege_forward.3} parent=11 // pred_check_branch
          %187 = sbr.rel (%p185) target = $region16
        $region15: #{biege_forward.3} parent=11 // pred_region
          %189 = vsyncadd [#allocation6], 0
          %s191 = sshll.u32 %s2, 4
          %s192 = int_to_ptr.hbm [resolvable:$true] %s191
          %s193 = sshll.u32 [#allocation5], 4
          %s194 = int_to_ptr.vmem [resolvable:$true] %s193
          %196 = dma.hbm_to_vmem [thread:$0]  %s192, 32, %s194, [#allocation6]
        $region16: #{biege_forward.3} parent=11 // pred_fallthru
          _
        // Predicated region
        $region17: #{biege_forward.3} parent=11 // pred_check
          %p197 = pneg %p123
        $region18: #{biege_forward.3} parent=11 // pred_check_branch
          %199 = sbr.rel (%p197) target = $region20
        $region19: #{biege_forward.3} parent=11 // pred_region
          _
        $region20: #{biege_forward.3} parent=11 // pred_fallthru
          _
        // Predicated region
        $region21: #{biege_forward.3} parent=11 // pred_check
          %p200 = pneg %p144
        $region22: #{biege_forward.3} parent=11 // pred_check_branch
          %202 = sbr.rel (%p200) target = $region24
        $region23: #{biege_forward.3} parent=11 // pred_region
          %204 = vsyncadd [#allocation6], 0
          %s206 = sshll.u32 %s4, 4
          %s207 = int_to_ptr.hbm [resolvable:$true] %s206
          %s208 = sshll.u32 [#allocation7], 4
          %s209 = int_to_ptr.vmem [resolvable:$true] %s208
          %211 = dma.hbm_to_vmem [thread:$0]  %s207, 16, %s209, [#allocation6]
        $region24: #{biege_forward.3} parent=11 // pred_fallthru
          _
      $region12: #{biege_forward.3} parent=5 // pred_fallthru
        _
      %p212 = scmp.lt.s32.totalorder %s15, 8
      // Predicated region
      $region25: #{biege_forward.3} parent=5 // pred_check
        %p213 = pneg %p212
      $region26: #{biege_forward.3} parent=5 // pred_check_branch
        %215 = sbr.rel (%p213) target = $region28
      $region27: #{biege_forward.3} parent=5 // pred_region
        // Predicated region
        $region29: #{biege_forward.3} parent=27 // pred_check
          %p216 = pneg %p49
        $region30: #{biege_forward.3} parent=27 // pred_check_branch
          %218 = sbr.rel (%p216) target = $region32
        $region31: #{biege_forward.3} parent=27 // pred_region
          %s219 = smul.u32 8, %s23
          %s220 = smul.u32 2, %s22
          %p221 = scmp.lt.s32.totalorder %s219, 63
          %s222 = scalar_select %p221, %s219, 63
          %p223 = scmp.lt.s32.totalorder %s220, 1
          %s224 = scalar_select %p223, %s220, 1
          %s225 = smul.addr %s222, 2
          %s226 = sadd.s32 %s224, %s225
          %s227 = smul.addr %s226, 4
          %s228 = scalar_lea.vmem %s0, %s227
          %s229 = smul.u32 8, %s23
          %s230 = smul.u32 2, %s22
        $region32: #{biege_forward.3} parent=27 // pred_fallthru
          _
        // Predicated region
        $region33: #{biege_forward.3} parent=27 // pred_check
          %p231 = pneg %p75
        $region34: #{biege_forward.3} parent=27 // pred_check_branch
          %233 = sbr.rel (%p231) target = $region36
        $region35: #{biege_forward.3} parent=27 // pred_region
          %s234 = sand.u32 %s65, 1
          %s235 = scalar_lea.sflag [#allocation4], %s234
          %s236 = sand.u32 %s65, 1
          %s237 = smul.addr %s236, 1024
          %s238 = scalar_lea.vmem [#allocation3], %s237
          %s239 = smul.u32 8, %s23
          %241 = vsyncadd %s235, 0
          %s242 = smul.addr %s239, 32
          %s243 = smul.addr %s242, 4
          %s244 = scalar_lea.hbm %s1, %s243
          %s245 = sshll.u32 %s244, 4
          %s246 = int_to_ptr.hbm [resolvable:$true] %s245
          %s247 = sshll.u32 %s238, 4
          %s248 = int_to_ptr.vmem [resolvable:$true] %s247
          %253 = dma.hbm_to_vmem [thread:$0]  %s246, 16384, %s248, %s235, 128, 128, 8
        $region36: #{biege_forward.3} parent=27 // pred_fallthru
          _
      $region28: #{biege_forward.3} parent=5 // pred_fallthru
        _
      %p254 = scmp.le.s32.totalorder 1, %s15
      %p255 = scmp.lt.s32.totalorder %s15, 9
      %p256 = pnand %p254, %p255
      %p257 = pneg %p256
      // Predicated region
      $region37: #{biege_forward.3} parent=5 // pred_check
        _
      $region38: #{biege_forward.3} parent=5 // pred_check_branch
        %259 = sbr.rel (%p256) target = $region40
      $region39: #{biege_forward.3} parent=5 // pred_region
        %s260 = ssub.s32 %s15, 1
        %s261 = sand.u32 %s68, 1
        %s262 = scalar_lea.sflag [#allocation4], %s261
        %s263 = sand.u32 %s68, 1
        %s264 = smul.addr %s263, 1024
        %s265 = scalar_lea.vmem [#allocation3], %s264
        // Predicated region
        $region41: #{biege_forward.3} parent=39 // pred_check
          %p266 = pneg %p81
        $region42: #{biege_forward.3} parent=39 // pred_check_branch
          %268 = sbr.rel (%p266) target = $region44
        $region43: #{biege_forward.3} parent=39 // pred_region
          %270 = dma.done %s262, 16384
        $region44: #{biege_forward.3} parent=39 // pred_fallthru
          _
        // Predicated region
        $region45: #{biege_forward.3} parent=39 // pred_check
          %p271 = pneg %p102
        $region46: #{biege_forward.3} parent=39 // pred_check_branch
          %273 = sbr.rel (%p271) target = $region48
        $region47: #{biege_forward.3} parent=39 // pred_region
          %275 = dma.done [#allocation6], 32
        $region48: #{biege_forward.3} parent=39 // pred_fallthru
          _
        // Predicated region
        $region49: #{biege_forward.3} parent=39 // pred_check
          %p276 = pneg %p144
        $region50: #{biege_forward.3} parent=39 // pred_check_branch
          %278 = sbr.rel (%p276) target = $region52
        $region51: #{biege_forward.3} parent=39 // pred_region
          %280 = dma.done [#allocation6], 16
        $region52: #{biege_forward.3} parent=39 // pred_fallthru
          _
        %s281 = smul.u32 8, %s25
        %s282 = smul.u32 2, %s24
        %p283 = scmp.lt.s32.totalorder %s281, 63
        %s284 = scalar_select %p283, %s281, 63
        %p285 = scmp.lt.s32.totalorder %s282, 1
        %s286 = scalar_select %p285, %s282, 1
        %s287 = smul.addr %s284, 2
        %s288 = sadd.s32 %s286, %s287
        %s289 = smul.addr %s288, 4
        %s290 = scalar_lea.vmem %s0, %s289
        %p291 = pneg %p55
        %p292 = pneg %p52
        %s293 = sand.u32 %s68, 1
        %s294 = scalar_lea.sflag [#allocation4], %s293
        %s295 = sand.u32 %s68, 1
        %s296 = smul.addr %s295, 1024
        %s297 = scalar_lea.vmem [#allocation3], %s296
        %p298 = pneg %p81
        %p299 = pneg %p78
        %p300 = pneg %p102
        %p301 = pneg %p99
        %p302 = pneg %p123
        %p303 = pneg %p120
        %p304 = pneg %p144
        %p305 = pneg %p141
        %p306 = pneg %p170
        %p307 = pneg %p167
        %s308 = smul.u32 2, %s24
        %p309 = scmp.lt.s32.totalorder %s308, 1
        %s310 = scalar_select %p309, %s308, 1
        %s311 = smul.addr %s310, 8
        %s312 = scalar_lea.vmem %s5, %s311
        %s313 = smul.u32 8, %s25
        %s314 = smul.u32 2, %s24
        %p315 = scmp.lt.s32.totalorder %s313, 63
        %s316 = scalar_select %p315, %s313, 63
        %p317 = scmp.lt.s32.totalorder %s314, 1
        %s318 = scalar_select %p317, %s314, 1
        %s319 = smul.addr %s316, 2
        %s320 = sadd.s32 %s318, %s319
        %s321 = smul.addr %s320, 4
        %s322 = scalar_lea.vmem %s0, %s321
        %s323 = smul.u32 8, %s25
        %s324 = smul.u32 2, %s24
        %s325 = smul.u32 8, %s25
        %s326 = smul.u32 2, %s24
        %p327 = scmp.lt.s32.totalorder %s326, 1
        %s328 = scalar_select %p327, %s326, 1
        %s329 = smul.addr %s328, 8
        %s330 = scalar_lea.vmem %s5, %s329
        %s331 = smul.u32 2, %s24
        %p332 = scmp.eq.s32.totalorder %s25, 0
        // Predicated region
        $region53: #{biege_forward.3} parent=39 // pred_check
          %p333 = pneg %p332
        $region54: #{biege_forward.3} parent=39 // pred_check_branch
          %335 = sbr.rel (%p333) target = $region56
        $region55: #{biege_forward.3} parent=39 // pred_region
          %336 = vst [vmem:[#allocation2] sm:$0xff] 0.0
          %337 = vst [vmem:[#allocation2 + $0x8] sm:$0xff] 0.0
          %338 = vst [vmem:[#allocation2 + $0x10] sm:$0xff] 0.0
          %339 = vst [vmem:[#allocation2 + $0x18] sm:$0xff] 0.0
        $region56: #{biege_forward.3} parent=39 // pred_fallthru
          _
        %v340 = vld [vmem:[#allocation2] sm:$0xff]
        %v341 = vld [vmem:[#allocation2 + $0x8] sm:$0xff]
        %v342 = vld [vmem:[#allocation2 + $0x10] sm:$0xff]
        %v343 = vld [vmem:[#allocation2 + $0x18] sm:$0xff]
        %v344 = vld [vmem:[%s322] sm:$0xf]
        %v345 = vld [vmem:[%s322 + $0x4] sm:$0xf]
        %v346 = vld [vmem:[%s265] sm:$0xff]
        %v347 = vld [vmem:[%s265 + $0x8] sm:$0xff]
        %v348 = vld [vmem:[%s265 + $0x10] sm:$0xff]
        %v349 = vld [vmem:[%s265 + $0x18] sm:$0xff]
        %v350 = vld [vmem:[%s265 + $0x20] sm:$0xff]
        %v351 = vld [vmem:[%s265 + $0x28] sm:$0xff]
        %v352 = vld [vmem:[%s265 + $0x30] sm:$0xff]
        %v353 = vld [vmem:[%s265 + $0x38] sm:$0xff]
        %v354 = vld [vmem:[%s265 + $0x40] sm:$0xff]
        %v355 = vld [vmem:[%s265 + $0x48] sm:$0xff]
        %v356 = vld [vmem:[%s265 + $0x50] sm:$0xff]
        %v357 = vld [vmem:[%s265 + $0x58] sm:$0xff]
        %v358 = vld [vmem:[%s265 + $0x60] sm:$0xff]
        %v359 = vld [vmem:[%s265 + $0x68] sm:$0xff]
        %v360 = vld [vmem:[%s265 + $0x70] sm:$0xff]
        %v361 = vld [vmem:[%s265 + $0x78] sm:$0xff]
        %v364 = vunpack.c.l.b16 %v344
        %v365 = vunpack.c.l.b16 %v345
        %v366 = vpack.c.b16 %v365, %v364
        %v384 = vunpack.c.l.b16 %v346
        %v385 = vunpack.c.h.b16 %v346
        %v386 = vunpack.c.l.b16 %v347
        %v387 = vunpack.c.h.b16 %v347
        %v388 = vunpack.c.l.b16 %v348
        %v389 = vunpack.c.h.b16 %v348
        %v390 = vunpack.c.l.b16 %v349
        %v391 = vunpack.c.h.b16 %v349
        %v392 = vunpack.c.l.b16 %v350
        %v393 = vunpack.c.h.b16 %v350
        %v394 = vunpack.c.l.b16 %v351
        %v395 = vunpack.c.h.b16 %v351
        %v396 = vunpack.c.l.b16 %v352
        %v397 = vunpack.c.h.b16 %v352
        %v398 = vunpack.c.l.b16 %v353
        %v399 = vunpack.c.h.b16 %v353
        %v400 = vunpack.c.l.b16 %v354
        %v401 = vunpack.c.h.b16 %v354
        %v402 = vunpack.c.l.b16 %v355
        %v403 = vunpack.c.h.b16 %v355
        %v404 = vunpack.c.l.b16 %v356
        %v405 = vunpack.c.h.b16 %v356
        %v406 = vunpack.c.l.b16 %v357
        %v407 = vunpack.c.h.b16 %v357
        %v408 = vunpack.c.l.b16 %v358
        %v409 = vunpack.c.h.b16 %v358
        %v410 = vunpack.c.l.b16 %v359
        %v411 = vunpack.c.h.b16 %v359
        %v412 = vunpack.c.l.b16 %v360
        %v413 = vunpack.c.h.b16 %v360
        %v414 = vunpack.c.l.b16 %v361
        %v415 = vunpack.c.h.b16 %v361
        %v416 = vpack.c.b16 %v386, %v384
        %v417 = vpack.c.b16 %v387, %v385
        %v418 = vpack.c.b16 %v390, %v388
        %v419 = vpack.c.b16 %v391, %v389
        %v420 = vpack.c.b16 %v394, %v392
        %v421 = vpack.c.b16 %v395, %v393
        %v422 = vpack.c.b16 %v398, %v396
        %v423 = vpack.c.b16 %v399, %v397
        %v424 = vpack.c.b16 %v402, %v400
        %v425 = vpack.c.b16 %v403, %v401
        %v426 = vpack.c.b16 %v406, %v404
        %v427 = vpack.c.b16 %v407, %v405
        %v428 = vpack.c.b16 %v410, %v408
        %v429 = vpack.c.b16 %v411, %v409
        %v430 = vpack.c.b16 %v414, %v412
        %v431 = vpack.c.b16 %v415, %v413
        %448 = vmatpush.bf16.msra.mxu0 %v430
        %449 = vmatpush.bf16.msra.mxu0 %v428
        %450 = vmatpush.bf16.msra.mxu0 %v426
        %451 = vmatpush.bf16.msra.mxu0 %v424
        %452 = vmatpush.bf16.msra.mxu0 %v422
        %453 = vmatpush.bf16.msra.mxu0 %v420
        %454 = vmatpush.bf16.msra.mxu0 %v418
        %455 = vmatpush.bf16.msra.mxu0 %v416
        %456 = vmatmul.bf16.gmra.mxu0 %v366
        %v457 = vpop.f32.mrf.mxu0
        %v458 = vadd.f32 0.0, %v457
        %v459 = vpop.f32.mrf.mxu0
        %v460 = vadd.f32 0.0, %v459
        %461 = vdwg.mxu0
        %462 = vmatpush.bf16.msra.mxu0 %v431
        %463 = vmatpush.bf16.msra.mxu0 %v429
        %464 = vmatpush.bf16.msra.mxu0 %v427
        %465 = vmatpush.bf16.msra.mxu0 %v425
        %466 = vmatpush.bf16.msra.mxu0 %v423
        %467 = vmatpush.bf16.msra.mxu0 %v421
        %468 = vmatpush.bf16.msra.mxu0 %v419
        %469 = vmatpush.bf16.msra.mxu0 %v417
        %470 = vmatmul.bf16.gmra.mxu0 %v366
        %v471 = vpop.f32.mrf.mxu0
        %v472 = vadd.f32 0.0, %v471
        %v473 = vpop.f32.mrf.mxu0
        %v474 = vadd.f32 0.0, %v473
        %475 = vdwg.mxu0
        %v476 = vadd.f32 %v340, %v458
        %v477 = vadd.f32 %v341, %v472
        %v478 = vadd.f32 %v342, %v460
        %v479 = vadd.f32 %v343, %v474
        %s480 = scalar_lea.vmem %s322, 8
        %v481 = vld [vmem:[%s480] sm:$0xf]
        %v482 = vld [vmem:[%s480 + $0x4] sm:$0xf]
        %s483 = scalar_lea.vmem %s265, 128 [#allocation3]
        %v484 = vld [vmem:[%s483] sm:$0xff]
        %v485 = vld [vmem:[%s483 + $0x8] sm:$0xff]
        %v486 = vld [vmem:[%s483 + $0x10] sm:$0xff]
        %v487 = vld [vmem:[%s483 + $0x18] sm:$0xff]
        %v488 = vld [vmem:[%s483 + $0x20] sm:$0xff]
        %v489 = vld [vmem:[%s483 + $0x28] sm:$0xff]
        %v490 = vld [vmem:[%s483 + $0x30] sm:$0xff]
        %v491 = vld [vmem:[%s483 + $0x38] sm:$0xff]
        %v492 = vld [vmem:[%s483 + $0x40] sm:$0xff]
        %v493 = vld [vmem:[%s483 + $0x48] sm:$0xff]
        %v494 = vld [vmem:[%s483 + $0x50] sm:$0xff]
        %v495 = vld [vmem:[%s483 + $0x58] sm:$0xff]
        %v496 = vld [vmem:[%s483 + $0x60] sm:$0xff]
        %v497 = vld [vmem:[%s483 + $0x68] sm:$0xff]
        %v498 = vld [vmem:[%s483 + $0x70] sm:$0xff]
        %v499 = vld [vmem:[%s483 + $0x78] sm:$0xff]
        %v502 = vunpack.c.l.b16 %v481
        %v503 = vunpack.c.l.b16 %v482
        %v504 = vpack.c.b16 %v503, %v502
        %v522 = vunpack.c.l.b16 %v484
        %v523 = vunpack.c.h.b16 %v484
        %v524 = vunpack.c.l.b16 %v485
        %v525 = vunpack.c.h.b16 %v485
        %v526 = vunpack.c.l.b16 %v486
        %v527 = vunpack.c.h.b16 %v486
        %v528 = vunpack.c.l.b16 %v487
        %v529 = vunpack.c.h.b16 %v487
        %v530 = vunpack.c.l.b16 %v488
        %v531 = vunpack.c.h.b16 %v488
        %v532 = vunpack.c.l.b16 %v489
        %v533 = vunpack.c.h.b16 %v489
        %v534 = vunpack.c.l.b16 %v490
        %v535 = vunpack.c.h.b16 %v490
        %v536 = vunpack.c.l.b16 %v491
        %v537 = vunpack.c.h.b16 %v491
        %v538 = vunpack.c.l.b16 %v492
        %v539 = vunpack.c.h.b16 %v492
        %v540 = vunpack.c.l.b16 %v493
        %v541 = vunpack.c.h.b16 %v493
        %v542 = vunpack.c.l.b16 %v494
        %v543 = vunpack.c.h.b16 %v494
        %v544 = vunpack.c.l.b16 %v495
        %v545 = vunpack.c.h.b16 %v495
        %v546 = vunpack.c.l.b16 %v496
        %v547 = vunpack.c.h.b16 %v496
        %v548 = vunpack.c.l.b16 %v497
        %v549 = vunpack.c.h.b16 %v497
        %v550 = vunpack.c.l.b16 %v498
        %v551 = vunpack.c.h.b16 %v498
        %v552 = vunpack.c.l.b16 %v499
        %v553 = vunpack.c.h.b16 %v499
        %v554 = vpack.c.b16 %v524, %v522
        %v555 = vpack.c.b16 %v525, %v523
        %v556 = vpack.c.b16 %v528, %v526
        %v557 = vpack.c.b16 %v529, %v527
        %v558 = vpack.c.b16 %v532, %v530
        %v559 = vpack.c.b16 %v533, %v531
        %v560 = vpack.c.b16 %v536, %v534
        %v561 = vpack.c.b16 %v537, %v535
        %v562 = vpack.c.b16 %v540, %v538
        %v563 = vpack.c.b16 %v541, %v539
        %v564 = vpack.c.b16 %v544, %v542
        %v565 = vpack.c.b16 %v545, %v543
        %v566 = vpack.c.b16 %v548, %v546
        %v567 = vpack.c.b16 %v549, %v547
        %v568 = vpack.c.b16 %v552, %v550
        %v569 = vpack.c.b16 %v553, %v551
        %586 = vmatpush.bf16.msra.mxu0 %v568
        %587 = vmatpush.bf16.msra.mxu0 %v566
        %588 = vmatpush.bf16.msra.mxu0 %v564
        %589 = vmatpush.bf16.msra.mxu0 %v562
        %590 = vmatpush.bf16.msra.mxu0 %v560
        %591 = vmatpush.bf16.msra.mxu0 %v558
        %592 = vmatpush.bf16.msra.mxu0 %v556
        %593 = vmatpush.bf16.msra.mxu0 %v554
        %594 = vmatmul.bf16.gmra.mxu0 %v504
        %v595 = vpop.f32.mrf.mxu0
        %v596 = vadd.f32 0.0, %v595
        %v597 = vpop.f32.mrf.mxu0
        %v598 = vadd.f32 0.0, %v597
        %599 = vdwg.mxu0
        %600 = vmatpush.bf16.msra.mxu0 %v569
        %601 = vmatpush.bf16.msra.mxu0 %v567
        %602 = vmatpush.bf16.msra.mxu0 %v565
        %603 = vmatpush.bf16.msra.mxu0 %v563
        %604 = vmatpush.bf16.msra.mxu0 %v561
        %605 = vmatpush.bf16.msra.mxu0 %v559
        %606 = vmatpush.bf16.msra.mxu0 %v557
        %607 = vmatpush.bf16.msra.mxu0 %v555
        %608 = vmatmul.bf16.gmra.mxu0 %v504
        %v609 = vpop.f32.mrf.mxu0
        %v610 = vadd.f32 0.0, %v609
        %v611 = vpop.f32.mrf.mxu0
        %v612 = vadd.f32 0.0, %v611
        %613 = vdwg.mxu0
        %v614 = vadd.f32 %v476, %v596
        %v615 = vadd.f32 %v477, %v610
        %v616 = vadd.f32 %v478, %v598
        %v617 = vadd.f32 %v479, %v612
        %s618 = scalar_lea.vmem %s322, 16
        %v619 = vld [vmem:[%s618] sm:$0xf]
        %v620 = vld [vmem:[%s618 + $0x4] sm:$0xf]
        %s621 = scalar_lea.vmem %s265, 256 [#allocation3]
        %v622 = vld [vmem:[%s621] sm:$0xff]
        %v623 = vld [vmem:[%s621 + $0x8] sm:$0xff]
        %v624 = vld [vmem:[%s621 + $0x10] sm:$0xff]
        %v625 = vld [vmem:[%s621 + $0x18] sm:$0xff]
        %v626 = vld [vmem:[%s621 + $0x20] sm:$0xff]
        %v627 = vld [vmem:[%s621 + $0x28] sm:$0xff]
        %v628 = vld [vmem:[%s621 + $0x30] sm:$0xff]
        %v629 = vld [vmem:[%s621 + $0x38] sm:$0xff]
        %v630 = vld [vmem:[%s621 + $0x40] sm:$0xff]
        %v631 = vld [vmem:[%s621 + $0x48] sm:$0xff]
        %v632 = vld [vmem:[%s621 + $0x50] sm:$0xff]
        %v633 = vld [vmem:[%s621 + $0x58] sm:$0xff]
        %v634 = vld [vmem:[%s621 + $0x60] sm:$0xff]
        %v635 = vld [vmem:[%s621 + $0x68] sm:$0xff]
        %v636 = vld [vmem:[%s621 + $0x70] sm:$0xff]
        %v637 = vld [vmem:[%s621 + $0x78] sm:$0xff]
        %v640 = vunpack.c.l.b16 %v619
        %v641 = vunpack.c.l.b16 %v620
        %v642 = vpack.c.b16 %v641, %v640
        %v660 = vunpack.c.l.b16 %v622
        %v661 = vunpack.c.h.b16 %v622
        %v662 = vunpack.c.l.b16 %v623
        %v663 = vunpack.c.h.b16 %v623
        %v664 = vunpack.c.l.b16 %v624
        %v665 = vunpack.c.h.b16 %v624
        %v666 = vunpack.c.l.b16 %v625
        %v667 = vunpack.c.h.b16 %v625
        %v668 = vunpack.c.l.b16 %v626
        %v669 = vunpack.c.h.b16 %v626
        %v670 = vunpack.c.l.b16 %v627
        %v671 = vunpack.c.h.b16 %v627
        %v672 = vunpack.c.l.b16 %v628
        %v673 = vunpack.c.h.b16 %v628
        %v674 = vunpack.c.l.b16 %v629
        %v675 = vunpack.c.h.b16 %v629
        %v676 = vunpack.c.l.b16 %v630
        %v677 = vunpack.c.h.b16 %v630
        %v678 = vunpack.c.l.b16 %v631
        %v679 = vunpack.c.h.b16 %v631
        %v680 = vunpack.c.l.b16 %v632
        %v681 = vunpack.c.h.b16 %v632
        %v682 = vunpack.c.l.b16 %v633
        %v683 = vunpack.c.h.b16 %v633
        %v684 = vunpack.c.l.b16 %v634
        %v685 = vunpack.c.h.b16 %v634
        %v686 = vunpack.c.l.b16 %v635
        %v687 = vunpack.c.h.b16 %v635
        %v688 = vunpack.c.l.b16 %v636
        %v689 = vunpack.c.h.b16 %v636
        %v690 = vunpack.c.l.b16 %v637
        %v691 = vunpack.c.h.b16 %v637
        %v692 = vpack.c.b16 %v662, %v660
        %v693 = vpack.c.b16 %v663, %v661
        %v694 = vpack.c.b16 %v666, %v664
        %v695 = vpack.c.b16 %v667, %v665
        %v696 = vpack.c.b16 %v670, %v668
        %v697 = vpack.c.b16 %v671, %v669
        %v698 = vpack.c.b16 %v674, %v672
        %v699 = vpack.c.b16 %v675, %v673
        %v700 = vpack.c.b16 %v678, %v676
        %v701 = vpack.c.b16 %v679, %v677
        %v702 = vpack.c.b16 %v682, %v680
        %v703 = vpack.c.b16 %v683, %v681
        %v704 = vpack.c.b16 %v686, %v684
        %v705 = vpack.c.b16 %v687, %v685
        %v706 = vpack.c.b16 %v690, %v688
        %v707 = vpack.c.b16 %v691, %v689
        %724 = vmatpush.bf16.msra.mxu0 %v706
        %725 = vmatpush.bf16.msra.mxu0 %v704
        %726 = vmatpush.bf16.msra.mxu0 %v702
        %727 = vmatpush.bf16.msra.mxu0 %v700
        %728 = vmatpush.bf16.msra.mxu0 %v698
        %729 = vmatpush.bf16.msra.mxu0 %v696
        %730 = vmatpush.bf16.msra.mxu0 %v694
        %731 = vmatpush.bf16.msra.mxu0 %v692
        %732 = vmatmul.bf16.gmra.mxu0 %v642
        %v733 = vpop.f32.mrf.mxu0
        %v734 = vadd.f32 0.0, %v733
        %v735 = vpop.f32.mrf.mxu0
        %v736 = vadd.f32 0.0, %v735
        %737 = vdwg.mxu0
        %738 = vmatpush.bf16.msra.mxu0 %v707
        %739 = vmatpush.bf16.msra.mxu0 %v705
        %740 = vmatpush.bf16.msra.mxu0 %v703
        %741 = vmatpush.bf16.msra.mxu0 %v701
        %742 = vmatpush.bf16.msra.mxu0 %v699
        %743 = vmatpush.bf16.msra.mxu0 %v697
        %744 = vmatpush.bf16.msra.mxu0 %v695
        %745 = vmatpush.bf16.msra.mxu0 %v693
        %746 = vmatmul.bf16.gmra.mxu0 %v642
        %v747 = vpop.f32.mrf.mxu0
        %v748 = vadd.f32 0.0, %v747
        %v749 = vpop.f32.mrf.mxu0
        %v750 = vadd.f32 0.0, %v749
        %751 = vdwg.mxu0
        %v752 = vadd.f32 %v614, %v734
        %v753 = vadd.f32 %v615, %v748
        %v754 = vadd.f32 %v616, %v736
        %v755 = vadd.f32 %v617, %v750
        %s756 = scalar_lea.vmem %s322, 24
        %v757 = vld [vmem:[%s756] sm:$0xf]
        %v758 = vld [vmem:[%s756 + $0x4] sm:$0xf]
        %s759 = scalar_lea.vmem %s265, 384 [#allocation3]
        %v760 = vld [vmem:[%s759] sm:$0xff]
        %v761 = vld [vmem:[%s759 + $0x8] sm:$0xff]
        %v762 = vld [vmem:[%s759 + $0x10] sm:$0xff]
        %v763 = vld [vmem:[%s759 + $0x18] sm:$0xff]
        %v764 = vld [vmem:[%s759 + $0x20] sm:$0xff]
        %v765 = vld [vmem:[%s759 + $0x28] sm:$0xff]
        %v766 = vld [vmem:[%s759 + $0x30] sm:$0xff]
        %v767 = vld [vmem:[%s759 + $0x38] sm:$0xff]
        %v768 = vld [vmem:[%s759 + $0x40] sm:$0xff]
        %v769 = vld [vmem:[%s759 + $0x48] sm:$0xff]
        %v770 = vld [vmem:[%s759 + $0x50] sm:$0xff]
        %v771 = vld [vmem:[%s759 + $0x58] sm:$0xff]
        %v772 = vld [vmem:[%s759 + $0x60] sm:$0xff]
        %v773 = vld [vmem:[%s759 + $0x68] sm:$0xff]
        %v774 = vld [vmem:[%s759 + $0x70] sm:$0xff]
        %v775 = vld [vmem:[%s759 + $0x78] sm:$0xff]
        %v778 = vunpack.c.l.b16 %v757
        %v779 = vunpack.c.l.b16 %v758
        %v780 = vpack.c.b16 %v779, %v778
        %v798 = vunpack.c.l.b16 %v760
        %v799 = vunpack.c.h.b16 %v760
        %v800 = vunpack.c.l.b16 %v761
        %v801 = vunpack.c.h.b16 %v761
        %v802 = vunpack.c.l.b16 %v762
        %v803 = vunpack.c.h.b16 %v762
        %v804 = vunpack.c.l.b16 %v763
        %v805 = vunpack.c.h.b16 %v763
        %v806 = vunpack.c.l.b16 %v764
        %v807 = vunpack.c.h.b16 %v764
        %v808 = vunpack.c.l.b16 %v765
        %v809 = vunpack.c.h.b16 %v765
        %v810 = vunpack.c.l.b16 %v766
        %v811 = vunpack.c.h.b16 %v766
        %v812 = vunpack.c.l.b16 %v767
        %v813 = vunpack.c.h.b16 %v767
        %v814 = vunpack.c.l.b16 %v768
        %v815 = vunpack.c.h.b16 %v768
        %v816 = vunpack.c.l.b16 %v769
        %v817 = vunpack.c.h.b16 %v769
        %v818 = vunpack.c.l.b16 %v770
        %v819 = vunpack.c.h.b16 %v770
        %v820 = vunpack.c.l.b16 %v771
        %v821 = vunpack.c.h.b16 %v771
        %v822 = vunpack.c.l.b16 %v772
        %v823 = vunpack.c.h.b16 %v772
        %v824 = vunpack.c.l.b16 %v773
        %v825 = vunpack.c.h.b16 %v773
        %v826 = vunpack.c.l.b16 %v774
        %v827 = vunpack.c.h.b16 %v774
        %v828 = vunpack.c.l.b16 %v775
        %v829 = vunpack.c.h.b16 %v775
        %v830 = vpack.c.b16 %v800, %v798
        %v831 = vpack.c.b16 %v801, %v799
        %v832 = vpack.c.b16 %v804, %v802
        %v833 = vpack.c.b16 %v805, %v803
        %v834 = vpack.c.b16 %v808, %v806
        %v835 = vpack.c.b16 %v809, %v807
        %v836 = vpack.c.b16 %v812, %v810
        %v837 = vpack.c.b16 %v813, %v811
        %v838 = vpack.c.b16 %v816, %v814
        %v839 = vpack.c.b16 %v817, %v815
        %v840 = vpack.c.b16 %v820, %v818
        %v841 = vpack.c.b16 %v821, %v819
        %v842 = vpack.c.b16 %v824, %v822
        %v843 = vpack.c.b16 %v825, %v823
        %v844 = vpack.c.b16 %v828, %v826
        %v845 = vpack.c.b16 %v829, %v827
        %862 = vmatpush.bf16.msra.mxu0 %v844
        %863 = vmatpush.bf16.msra.mxu0 %v842
        %864 = vmatpush.bf16.msra.mxu0 %v840
        %865 = vmatpush.bf16.msra.mxu0 %v838
        %866 = vmatpush.bf16.msra.mxu0 %v836
        %867 = vmatpush.bf16.msra.mxu0 %v834
        %868 = vmatpush.bf16.msra.mxu0 %v832
        %869 = vmatpush.bf16.msra.mxu0 %v830
        %870 = vmatmul.bf16.gmra.mxu0 %v780
        %v871 = vpop.f32.mrf.mxu0
        %v872 = vadd.f32 0.0, %v871
        %v873 = vpop.f32.mrf.mxu0
        %v874 = vadd.f32 0.0, %v873
        %875 = vdwg.mxu0
        %876 = vmatpush.bf16.msra.mxu0 %v845
        %877 = vmatpush.bf16.msra.mxu0 %v843
        %878 = vmatpush.bf16.msra.mxu0 %v841
        %879 = vmatpush.bf16.msra.mxu0 %v839
        %880 = vmatpush.bf16.msra.mxu0 %v837
        %881 = vmatpush.bf16.msra.mxu0 %v835
        %882 = vmatpush.bf16.msra.mxu0 %v833
        %883 = vmatpush.bf16.msra.mxu0 %v831
        %884 = vmatmul.bf16.gmra.mxu0 %v780
        %v885 = vpop.f32.mrf.mxu0
        %v886 = vadd.f32 0.0, %v885
        %v887 = vpop.f32.mrf.mxu0
        %v888 = vadd.f32 0.0, %v887
        %889 = vdwg.mxu0
        %v890 = vadd.f32 %v752, %v872
        %v891 = vadd.f32 %v753, %v886
        %v892 = vadd.f32 %v754, %v874
        %v893 = vadd.f32 %v755, %v888
        %s894 = scalar_lea.vmem %s322, 32
        %v895 = vld [vmem:[%s894] sm:$0xf]
        %v896 = vld [vmem:[%s894 + $0x4] sm:$0xf]
        %s897 = scalar_lea.vmem %s265, 512 [#allocation3]
        %v898 = vld [vmem:[%s897] sm:$0xff]
        %v899 = vld [vmem:[%s897 + $0x8] sm:$0xff]
        %v900 = vld [vmem:[%s897 + $0x10] sm:$0xff]
        %v901 = vld [vmem:[%s897 + $0x18] sm:$0xff]
        %v902 = vld [vmem:[%s897 + $0x20] sm:$0xff]
        %v903 = vld [vmem:[%s897 + $0x28] sm:$0xff]
        %v904 = vld [vmem:[%s897 + $0x30] sm:$0xff]
        %v905 = vld [vmem:[%s897 + $0x38] sm:$0xff]
        %v906 = vld [vmem:[%s897 + $0x40] sm:$0xff]
        %v907 = vld [vmem:[%s897 + $0x48] sm:$0xff]
        %v908 = vld [vmem:[%s897 + $0x50] sm:$0xff]
        %v909 = vld [vmem:[%s897 + $0x58] sm:$0xff]
        %v910 = vld [vmem:[%s897 + $0x60] sm:$0xff]
        %v911 = vld [vmem:[%s897 + $0x68] sm:$0xff]
        %v912 = vld [vmem:[%s897 + $0x70] sm:$0xff]
        %v913 = vld [vmem:[%s897 + $0x78] sm:$0xff]
        %v916 = vunpack.c.l.b16 %v895
        %v917 = vunpack.c.l.b16 %v896
        %v918 = vpack.c.b16 %v917, %v916
        %v936 = vunpack.c.l.b16 %v898
        %v937 = vunpack.c.h.b16 %v898
        %v938 = vunpack.c.l.b16 %v899
        %v939 = vunpack.c.h.b16 %v899
        %v940 = vunpack.c.l.b16 %v900
        %v941 = vunpack.c.h.b16 %v900
        %v942 = vunpack.c.l.b16 %v901
        %v943 = vunpack.c.h.b16 %v901
        %v944 = vunpack.c.l.b16 %v902
        %v945 = vunpack.c.h.b16 %v902
        %v946 = vunpack.c.l.b16 %v903
        %v947 = vunpack.c.h.b16 %v903
        %v948 = vunpack.c.l.b16 %v904
        %v949 = vunpack.c.h.b16 %v904
        %v950 = vunpack.c.l.b16 %v905
        %v951 = vunpack.c.h.b16 %v905
        %v952 = vunpack.c.l.b16 %v906
        %v953 = vunpack.c.h.b16 %v906
        %v954 = vunpack.c.l.b16 %v907
        %v955 = vunpack.c.h.b16 %v907
        %v956 = vunpack.c.l.b16 %v908
        %v957 = vunpack.c.h.b16 %v908
        %v958 = vunpack.c.l.b16 %v909
        %v959 = vunpack.c.h.b16 %v909
        %v960 = vunpack.c.l.b16 %v910
        %v961 = vunpack.c.h.b16 %v910
        %v962 = vunpack.c.l.b16 %v911
        %v963 = vunpack.c.h.b16 %v911
        %v964 = vunpack.c.l.b16 %v912
        %v965 = vunpack.c.h.b16 %v912
        %v966 = vunpack.c.l.b16 %v913
        %v967 = vunpack.c.h.b16 %v913
        %v968 = vpack.c.b16 %v938, %v936
        %v969 = vpack.c.b16 %v939, %v937
        %v970 = vpack.c.b16 %v942, %v940
        %v971 = vpack.c.b16 %v943, %v941
        %v972 = vpack.c.b16 %v946, %v944
        %v973 = vpack.c.b16 %v947, %v945
        %v974 = vpack.c.b16 %v950, %v948
        %v975 = vpack.c.b16 %v951, %v949
        %v976 = vpack.c.b16 %v954, %v952
        %v977 = vpack.c.b16 %v955, %v953
        %v978 = vpack.c.b16 %v958, %v956
        %v979 = vpack.c.b16 %v959, %v957
        %v980 = vpack.c.b16 %v962, %v960
        %v981 = vpack.c.b16 %v963, %v961
        %v982 = vpack.c.b16 %v966, %v964
        %v983 = vpack.c.b16 %v967, %v965
        %1000 = vmatpush.bf16.msra.mxu0 %v982
        %1001 = vmatpush.bf16.msra.mxu0 %v980
        %1002 = vmatpush.bf16.msra.mxu0 %v978
        %1003 = vmatpush.bf16.msra.mxu0 %v976
        %1004 = vmatpush.bf16.msra.mxu0 %v974
        %1005 = vmatpush.bf16.msra.mxu0 %v972
        %1006 = vmatpush.bf16.msra.mxu0 %v970
        %1007 = vmatpush.bf16.msra.mxu0 %v968
        %1008 = vmatmul.bf16.gmra.mxu0 %v918
        %v1009 = vpop.f32.mrf.mxu0
        %v1010 = vadd.f32 0.0, %v1009
        %v1011 = vpop.f32.mrf.mxu0
        %v1012 = vadd.f32 0.0, %v1011
        %1013 = vdwg.mxu0
        %1014 = vmatpush.bf16.msra.mxu0 %v983
        %1015 = vmatpush.bf16.msra.mxu0 %v981
        %1016 = vmatpush.bf16.msra.mxu0 %v979
        %1017 = vmatpush.bf16.msra.mxu0 %v977
        %1018 = vmatpush.bf16.msra.mxu0 %v975
        %1019 = vmatpush.bf16.msra.mxu0 %v973
        %1020 = vmatpush.bf16.msra.mxu0 %v971
        %1021 = vmatpush.bf16.msra.mxu0 %v969
        %1022 = vmatmul.bf16.gmra.mxu0 %v918
        %v1023 = vpop.f32.mrf.mxu0
        %v1024 = vadd.f32 0.0, %v1023
        %v1025 = vpop.f32.mrf.mxu0
        %v1026 = vadd.f32 0.0, %v1025
        %1027 = vdwg.mxu0
        %v1028 = vadd.f32 %v890, %v1010
        %v1029 = vadd.f32 %v891, %v1024
        %v1030 = vadd.f32 %v892, %v1012
        %v1031 = vadd.f32 %v893, %v1026
        %s1032 = scalar_lea.vmem %s322, 40
        %v1033 = vld [vmem:[%s1032] sm:$0xf]
        %v1034 = vld [vmem:[%s1032 + $0x4] sm:$0xf]
        %s1035 = scalar_lea.vmem %s265, 640 [#allocation3]
        %v1036 = vld [vmem:[%s1035] sm:$0xff]
        %v1037 = vld [vmem:[%s1035 + $0x8] sm:$0xff]
        %v1038 = vld [vmem:[%s1035 + $0x10] sm:$0xff]
        %v1039 = vld [vmem:[%s1035 + $0x18] sm:$0xff]
        %v1040 = vld [vmem:[%s1035 + $0x20] sm:$0xff]
        %v1041 = vld [vmem:[%s1035 + $0x28] sm:$0xff]
        %v1042 = vld [vmem:[%s1035 + $0x30] sm:$0xff]
        %v1043 = vld [vmem:[%s1035 + $0x38] sm:$0xff]
        %v1044 = vld [vmem:[%s1035 + $0x40] sm:$0xff]
        %v1045 = vld [vmem:[%s1035 + $0x48] sm:$0xff]
        %v1046 = vld [vmem:[%s1035 + $0x50] sm:$0xff]
        %v1047 = vld [vmem:[%s1035 + $0x58] sm:$0xff]
        %v1048 = vld [vmem:[%s1035 + $0x60] sm:$0xff]
        %v1049 = vld [vmem:[%s1035 + $0x68] sm:$0xff]
        %v1050 = vld [vmem:[%s1035 + $0x70] sm:$0xff]
        %v1051 = vld [vmem:[%s1035 + $0x78] sm:$0xff]
        %v1054 = vunpack.c.l.b16 %v1033
        %v1055 = vunpack.c.l.b16 %v1034
        %v1056 = vpack.c.b16 %v1055, %v1054
        %v1074 = vunpack.c.l.b16 %v1036
        %v1075 = vunpack.c.h.b16 %v1036
        %v1076 = vunpack.c.l.b16 %v1037
        %v1077 = vunpack.c.h.b16 %v1037
        %v1078 = vunpack.c.l.b16 %v1038
        %v1079 = vunpack.c.h.b16 %v1038
        %v1080 = vunpack.c.l.b16 %v1039
        %v1081 = vunpack.c.h.b16 %v1039
        %v1082 = vunpack.c.l.b16 %v1040
        %v1083 = vunpack.c.h.b16 %v1040
        %v1084 = vunpack.c.l.b16 %v1041
        %v1085 = vunpack.c.h.b16 %v1041
        %v1086 = vunpack.c.l.b16 %v1042
        %v1087 = vunpack.c.h.b16 %v1042
        %v1088 = vunpack.c.l.b16 %v1043
        %v1089 = vunpack.c.h.b16 %v1043
        %v1090 = vunpack.c.l.b16 %v1044
        %v1091 = vunpack.c.h.b16 %v1044
        %v1092 = vunpack.c.l.b16 %v1045
        %v1093 = vunpack.c.h.b16 %v1045
        %v1094 = vunpack.c.l.b16 %v1046
        %v1095 = vunpack.c.h.b16 %v1046
        %v1096 = vunpack.c.l.b16 %v1047
        %v1097 = vunpack.c.h.b16 %v1047
        %v1098 = vunpack.c.l.b16 %v1048
        %v1099 = vunpack.c.h.b16 %v1048
        %v1100 = vunpack.c.l.b16 %v1049
        %v1101 = vunpack.c.h.b16 %v1049
        %v1102 = vunpack.c.l.b16 %v1050
        %v1103 = vunpack.c.h.b16 %v1050
        %v1104 = vunpack.c.l.b16 %v1051
        %v1105 = vunpack.c.h.b16 %v1051
        %v1106 = vpack.c.b16 %v1076, %v1074
        %v1107 = vpack.c.b16 %v1077, %v1075
        %v1108 = vpack.c.b16 %v1080, %v1078
        %v1109 = vpack.c.b16 %v1081, %v1079
        %v1110 = vpack.c.b16 %v1084, %v1082
        %v1111 = vpack.c.b16 %v1085, %v1083
        %v1112 = vpack.c.b16 %v1088, %v1086
        %v1113 = vpack.c.b16 %v1089, %v1087
        %v1114 = vpack.c.b16 %v1092, %v1090
        %v1115 = vpack.c.b16 %v1093, %v1091
        %v1116 = vpack.c.b16 %v1096, %v1094
        %v1117 = vpack.c.b16 %v1097, %v1095
        %v1118 = vpack.c.b16 %v1100, %v1098
        %v1119 = vpack.c.b16 %v1101, %v1099
        %v1120 = vpack.c.b16 %v1104, %v1102
        %v1121 = vpack.c.b16 %v1105, %v1103
        %1138 = vmatpush.bf16.msra.mxu0 %v1120
        %1139 = vmatpush.bf16.msra.mxu0 %v1118
        %1140 = vmatpush.bf16.msra.mxu0 %v1116
        %1141 = vmatpush.bf16.msra.mxu0 %v1114
        %1142 = vmatpush.bf16.msra.mxu0 %v1112
        %1143 = vmatpush.bf16.msra.mxu0 %v1110
        %1144 = vmatpush.bf16.msra.mxu0 %v1108
        %1145 = vmatpush.bf16.msra.mxu0 %v1106
        %1146 = vmatmul.bf16.gmra.mxu0 %v1056
        %v1147 = vpop.f32.mrf.mxu0
        %v1148 = vadd.f32 0.0, %v1147
        %v1149 = vpop.f32.mrf.mxu0
        %v1150 = vadd.f32 0.0, %v1149
        %1151 = vdwg.mxu0
        %1152 = vmatpush.bf16.msra.mxu0 %v1121
        %1153 = vmatpush.bf16.msra.mxu0 %v1119
        %1154 = vmatpush.bf16.msra.mxu0 %v1117
        %1155 = vmatpush.bf16.msra.mxu0 %v1115
        %1156 = vmatpush.bf16.msra.mxu0 %v1113
        %1157 = vmatpush.bf16.msra.mxu0 %v1111
        %1158 = vmatpush.bf16.msra.mxu0 %v1109
        %1159 = vmatpush.bf16.msra.mxu0 %v1107
        %1160 = vmatmul.bf16.gmra.mxu0 %v1056
        %v1161 = vpop.f32.mrf.mxu0
        %v1162 = vadd.f32 0.0, %v1161
        %v1163 = vpop.f32.mrf.mxu0
        %v1164 = vadd.f32 0.0, %v1163
        %1165 = vdwg.mxu0
        %v1166 = vadd.f32 %v1028, %v1148
        %v1167 = vadd.f32 %v1029, %v1162
        %v1168 = vadd.f32 %v1030, %v1150
        %v1169 = vadd.f32 %v1031, %v1164
        %s1170 = scalar_lea.vmem %s322, 48
        %v1171 = vld [vmem:[%s1170] sm:$0xf]
        %v1172 = vld [vmem:[%s1170 + $0x4] sm:$0xf]
        %s1173 = scalar_lea.vmem %s265, 768 [#allocation3]
        %v1174 = vld [vmem:[%s1173] sm:$0xff]
        %v1175 = vld [vmem:[%s1173 + $0x8] sm:$0xff]
        %v1176 = vld [vmem:[%s1173 + $0x10] sm:$0xff]
        %v1177 = vld [vmem:[%s1173 + $0x18] sm:$0xff]
        %v1178 = vld [vmem:[%s1173 + $0x20] sm:$0xff]
        %v1179 = vld [vmem:[%s1173 + $0x28] sm:$0xff]
        %v1180 = vld [vmem:[%s1173 + $0x30] sm:$0xff]
        %v1181 = vld [vmem:[%s1173 + $0x38] sm:$0xff]
        %v1182 = vld [vmem:[%s1173 + $0x40] sm:$0xff]
        %v1183 = vld [vmem:[%s1173 + $0x48] sm:$0xff]
        %v1184 = vld [vmem:[%s1173 + $0x50] sm:$0xff]
        %v1185 = vld [vmem:[%s1173 + $0x58] sm:$0xff]
        %v1186 = vld [vmem:[%s1173 + $0x60] sm:$0xff]
        %v1187 = vld [vmem:[%s1173 + $0x68] sm:$0xff]
        %v1188 = vld [vmem:[%s1173 + $0x70] sm:$0xff]
        %v1189 = vld [vmem:[%s1173 + $0x78] sm:$0xff]
        %v1192 = vunpack.c.l.b16 %v1171
        %v1193 = vunpack.c.l.b16 %v1172
        %v1194 = vpack.c.b16 %v1193, %v1192
        %v1212 = vunpack.c.l.b16 %v1174
        %v1213 = vunpack.c.h.b16 %v1174
        %v1214 = vunpack.c.l.b16 %v1175
        %v1215 = vunpack.c.h.b16 %v1175
        %v1216 = vunpack.c.l.b16 %v1176
        %v1217 = vunpack.c.h.b16 %v1176
        %v1218 = vunpack.c.l.b16 %v1177
        %v1219 = vunpack.c.h.b16 %v1177
        %v1220 = vunpack.c.l.b16 %v1178
        %v1221 = vunpack.c.h.b16 %v1178
        %v1222 = vunpack.c.l.b16 %v1179
        %v1223 = vunpack.c.h.b16 %v1179
        %v1224 = vunpack.c.l.b16 %v1180
        %v1225 = vunpack.c.h.b16 %v1180
        %v1226 = vunpack.c.l.b16 %v1181
        %v1227 = vunpack.c.h.b16 %v1181
        %v1228 = vunpack.c.l.b16 %v1182
        %v1229 = vunpack.c.h.b16 %v1182
        %v1230 = vunpack.c.l.b16 %v1183
        %v1231 = vunpack.c.h.b16 %v1183
        %v1232 = vunpack.c.l.b16 %v1184
        %v1233 = vunpack.c.h.b16 %v1184
        %v1234 = vunpack.c.l.b16 %v1185
        %v1235 = vunpack.c.h.b16 %v1185
        %v1236 = vunpack.c.l.b16 %v1186
        %v1237 = vunpack.c.h.b16 %v1186
        %v1238 = vunpack.c.l.b16 %v1187
        %v1239 = vunpack.c.h.b16 %v1187
        %v1240 = vunpack.c.l.b16 %v1188
        %v1241 = vunpack.c.h.b16 %v1188
        %v1242 = vunpack.c.l.b16 %v1189
        %v1243 = vunpack.c.h.b16 %v1189
        %v1244 = vpack.c.b16 %v1214, %v1212
        %v1245 = vpack.c.b16 %v1215, %v1213
        %v1246 = vpack.c.b16 %v1218, %v1216
        %v1247 = vpack.c.b16 %v1219, %v1217
        %v1248 = vpack.c.b16 %v1222, %v1220
        %v1249 = vpack.c.b16 %v1223, %v1221
        %v1250 = vpack.c.b16 %v1226, %v1224
        %v1251 = vpack.c.b16 %v1227, %v1225
        %v1252 = vpack.c.b16 %v1230, %v1228
        %v1253 = vpack.c.b16 %v1231, %v1229
        %v1254 = vpack.c.b16 %v1234, %v1232
        %v1255 = vpack.c.b16 %v1235, %v1233
        %v1256 = vpack.c.b16 %v1238, %v1236
        %v1257 = vpack.c.b16 %v1239, %v1237
        %v1258 = vpack.c.b16 %v1242, %v1240
        %v1259 = vpack.c.b16 %v1243, %v1241
        %1276 = vmatpush.bf16.msra.mxu0 %v1258
        %1277 = vmatpush.bf16.msra.mxu0 %v1256
        %1278 = vmatpush.bf16.msra.mxu0 %v1254
        %1279 = vmatpush.bf16.msra.mxu0 %v1252
        %1280 = vmatpush.bf16.msra.mxu0 %v1250
        %1281 = vmatpush.bf16.msra.mxu0 %v1248
        %1282 = vmatpush.bf16.msra.mxu0 %v1246
        %1283 = vmatpush.bf16.msra.mxu0 %v1244
        %1284 = vmatmul.bf16.gmra.mxu0 %v1194
        %v1285 = vpop.f32.mrf.mxu0
        %v1286 = vadd.f32 0.0, %v1285
        %v1287 = vpop.f32.mrf.mxu0
        %v1288 = vadd.f32 0.0, %v1287
        %1289 = vdwg.mxu0
        %1290 = vmatpush.bf16.msra.mxu0 %v1259
        %1291 = vmatpush.bf16.msra.mxu0 %v1257
        %1292 = vmatpush.bf16.msra.mxu0 %v1255
        %1293 = vmatpush.bf16.msra.mxu0 %v1253
        %1294 = vmatpush.bf16.msra.mxu0 %v1251
        %1295 = vmatpush.bf16.msra.mxu0 %v1249
        %1296 = vmatpush.bf16.msra.mxu0 %v1247
        %1297 = vmatpush.bf16.msra.mxu0 %v1245
        %1298 = vmatmul.bf16.gmra.mxu0 %v1194
        %v1299 = vpop.f32.mrf.mxu0
        %v1300 = vadd.f32 0.0, %v1299
        %v1301 = vpop.f32.mrf.mxu0
        %v1302 = vadd.f32 0.0, %v1301
        %1303 = vdwg.mxu0
        %v1304 = vadd.f32 %v1166, %v1286
        %v1305 = vadd.f32 %v1167, %v1300
        %v1306 = vadd.f32 %v1168, %v1288
        %v1307 = vadd.f32 %v1169, %v1302
        %s1308 = scalar_lea.vmem %s322, 56
        %v1309 = vld [vmem:[%s1308] sm:$0xf]
        %v1310 = vld [vmem:[%s1308 + $0x4] sm:$0xf]
        %s1311 = scalar_lea.vmem %s265, 896 [#allocation3]
        %v1312 = vld [vmem:[%s1311] sm:$0xff]
        %v1313 = vld [vmem:[%s1311 + $0x8] sm:$0xff]
        %v1314 = vld [vmem:[%s1311 + $0x10] sm:$0xff]
        %v1315 = vld [vmem:[%s1311 + $0x18] sm:$0xff]
        %v1316 = vld [vmem:[%s1311 + $0x20] sm:$0xff]
        %v1317 = vld [vmem:[%s1311 + $0x28] sm:$0xff]
        %v1318 = vld [vmem:[%s1311 + $0x30] sm:$0xff]
        %v1319 = vld [vmem:[%s1311 + $0x38] sm:$0xff]
        %v1320 = vld [vmem:[%s1311 + $0x40] sm:$0xff]
        %v1321 = vld [vmem:[%s1311 + $0x48] sm:$0xff]
        %v1322 = vld [vmem:[%s1311 + $0x50] sm:$0xff]
        %v1323 = vld [vmem:[%s1311 + $0x58] sm:$0xff]
        %v1324 = vld [vmem:[%s1311 + $0x60] sm:$0xff]
        %v1325 = vld [vmem:[%s1311 + $0x68] sm:$0xff]
        %v1326 = vld [vmem:[%s1311 + $0x70] sm:$0xff]
        %v1327 = vld [vmem:[%s1311 + $0x78] sm:$0xff]
        %v1330 = vunpack.c.l.b16 %v1309
        %v1331 = vunpack.c.l.b16 %v1310
        %v1332 = vpack.c.b16 %v1331, %v1330
        %v1350 = vunpack.c.l.b16 %v1312
        %v1351 = vunpack.c.h.b16 %v1312
        %v1352 = vunpack.c.l.b16 %v1313
        %v1353 = vunpack.c.h.b16 %v1313
        %v1354 = vunpack.c.l.b16 %v1314
        %v1355 = vunpack.c.h.b16 %v1314
        %v1356 = vunpack.c.l.b16 %v1315
        %v1357 = vunpack.c.h.b16 %v1315
        %v1358 = vunpack.c.l.b16 %v1316
        %v1359 = vunpack.c.h.b16 %v1316
        %v1360 = vunpack.c.l.b16 %v1317
        %v1361 = vunpack.c.h.b16 %v1317
        %v1362 = vunpack.c.l.b16 %v1318
        %v1363 = vunpack.c.h.b16 %v1318
        %v1364 = vunpack.c.l.b16 %v1319
        %v1365 = vunpack.c.h.b16 %v1319
        %v1366 = vunpack.c.l.b16 %v1320
        %v1367 = vunpack.c.h.b16 %v1320
        %v1368 = vunpack.c.l.b16 %v1321
        %v1369 = vunpack.c.h.b16 %v1321
        %v1370 = vunpack.c.l.b16 %v1322
        %v1371 = vunpack.c.h.b16 %v1322
        %v1372 = vunpack.c.l.b16 %v1323
        %v1373 = vunpack.c.h.b16 %v1323
        %v1374 = vunpack.c.l.b16 %v1324
        %v1375 = vunpack.c.h.b16 %v1324
        %v1376 = vunpack.c.l.b16 %v1325
        %v1377 = vunpack.c.h.b16 %v1325
        %v1378 = vunpack.c.l.b16 %v1326
        %v1379 = vunpack.c.h.b16 %v1326
        %v1380 = vunpack.c.l.b16 %v1327
        %v1381 = vunpack.c.h.b16 %v1327
        %v1382 = vpack.c.b16 %v1352, %v1350
        %v1383 = vpack.c.b16 %v1353, %v1351
        %v1384 = vpack.c.b16 %v1356, %v1354
        %v1385 = vpack.c.b16 %v1357, %v1355
        %v1386 = vpack.c.b16 %v1360, %v1358
        %v1387 = vpack.c.b16 %v1361, %v1359
        %v1388 = vpack.c.b16 %v1364, %v1362
        %v1389 = vpack.c.b16 %v1365, %v1363
        %v1390 = vpack.c.b16 %v1368, %v1366
        %v1391 = vpack.c.b16 %v1369, %v1367
        %v1392 = vpack.c.b16 %v1372, %v1370
        %v1393 = vpack.c.b16 %v1373, %v1371
        %v1394 = vpack.c.b16 %v1376, %v1374
        %v1395 = vpack.c.b16 %v1377, %v1375
        %v1396 = vpack.c.b16 %v1380, %v1378
        %v1397 = vpack.c.b16 %v1381, %v1379
        %1414 = vmatpush.bf16.msra.mxu0 %v1396
        %1415 = vmatpush.bf16.msra.mxu0 %v1394
        %1416 = vmatpush.bf16.msra.mxu0 %v1392
        %1417 = vmatpush.bf16.msra.mxu0 %v1390
        %1418 = vmatpush.bf16.msra.mxu0 %v1388
        %1419 = vmatpush.bf16.msra.mxu0 %v1386
        %1420 = vmatpush.bf16.msra.mxu0 %v1384
        %1421 = vmatpush.bf16.msra.mxu0 %v1382
        %1422 = vmatmul.bf16.gmra.mxu0 %v1332
        %v1423 = vpop.f32.mrf.mxu0
        %v1424 = vadd.f32 0.0, %v1423
        %v1425 = vpop.f32.mrf.mxu0
        %v1426 = vadd.f32 0.0, %v1425
        %1427 = vdwg.mxu0
        %1428 = vmatpush.bf16.msra.mxu0 %v1397
        %1429 = vmatpush.bf16.msra.mxu0 %v1395
        %1430 = vmatpush.bf16.msra.mxu0 %v1393
        %1431 = vmatpush.bf16.msra.mxu0 %v1391
        %1432 = vmatpush.bf16.msra.mxu0 %v1389
        %1433 = vmatpush.bf16.msra.mxu0 %v1387
        %1434 = vmatpush.bf16.msra.mxu0 %v1385
        %1435 = vmatpush.bf16.msra.mxu0 %v1383
        %1436 = vmatmul.bf16.gmra.mxu0 %v1332
        %v1437 = vpop.f32.mrf.mxu0
        %v1438 = vadd.f32 0.0, %v1437
        %v1439 = vpop.f32.mrf.mxu0
        %v1440 = vadd.f32 0.0, %v1439
        %1441 = vdwg.mxu0
        %v1442 = vadd.f32 %v1304, %v1424
        %v1443 = vadd.f32 %v1305, %v1438
        %v1444 = vadd.f32 %v1306, %v1426
        %v1445 = vadd.f32 %v1307, %v1440
        %1446 = vst [vmem:[#allocation2] sm:$0xff] %v1442
        %1447 = vst [vmem:[#allocation2 + $0x8] sm:$0xff] %v1443
        %1448 = vst [vmem:[#allocation2 + $0x10] sm:$0xff] %v1444
        %1449 = vst [vmem:[#allocation2 + $0x18] sm:$0xff] %v1445
        %p1450 = scmp.eq.s32.totalorder %s25, 7
        // Predicated region
        $region57: #{biege_forward.3} parent=39 // pred_check
          %p1451 = pneg %p1450
        $region58: #{biege_forward.3} parent=39 // pred_check_branch
          %1453 = sbr.rel (%p1451) target = $region60
        $region59: #{biege_forward.3} parent=39 // pred_region
          %v1454 = vld [vmem:[#allocation2] sm:$0xff]
          %v1455 = vld [vmem:[#allocation2 + $0x8] sm:$0xff]
          %v1456 = vld [vmem:[#allocation2 + $0x10] sm:$0xff]
          %v1457 = vld [vmem:[#allocation2 + $0x18] sm:$0xff]
          %v1458 = vld [vmem:[#allocation5] sm:$0x3]
          %v1460 = vperm.slane %v1458, 0
          %v1461 = vperm.slane %v1458, 1
          %v1464 = vadd.f32 %v1454, %v1460
          %v1465 = vadd.f32 %v1455, %v1461
          %v1466 = vadd.f32 %v1456, %v1460
          %v1467 = vadd.f32 %v1457, %v1461
          %v1468 = vmax.f32 %v1464, 0.0
          %v1469 = vmax.f32 %v1465, 0.0
          %v1470 = vmax.f32 %v1466, 0.0
          %v1471 = vmax.f32 %v1467, 0.0
          %v1472 = vld [vmem:[%s3] sm:$0xff]
          %v1473 = vld [vmem:[%s3 + $0x8] sm:$0xff]
          %v1474 = vld [vmem:[%s3 + $0x10] sm:$0xff]
          %v1475 = vld [vmem:[%s3 + $0x18] sm:$0xff]
          %v1476 = vld [vmem:[%s3 + $0x20] sm:$0xff]
          %v1477 = vld [vmem:[%s3 + $0x28] sm:$0xff]
          %v1478 = vld [vmem:[%s3 + $0x30] sm:$0xff]
          %v1479 = vld [vmem:[%s3 + $0x38] sm:$0xff]
          %v1480 = vld [vmem:[%s3 + $0x40] sm:$0xff]
          %v1481 = vld [vmem:[%s3 + $0x48] sm:$0xff]
          %v1482 = vld [vmem:[%s3 + $0x50] sm:$0xff]
          %v1483 = vld [vmem:[%s3 + $0x58] sm:$0xff]
          %v1484 = vld [vmem:[%s3 + $0x60] sm:$0xff]
          %v1485 = vld [vmem:[%s3 + $0x68] sm:$0xff]
          %v1486 = vld [vmem:[%s3 + $0x70] sm:$0xff]
          %v1487 = vld [vmem:[%s3 + $0x78] sm:$0xff]
          %v1488 = vld [vmem:[%s3 + $0x80] sm:$0xff]
          %v1489 = vld [vmem:[%s3 + $0x88] sm:$0xff]
          %v1490 = vld [vmem:[%s3 + $0x90] sm:$0xff]
          %v1491 = vld [vmem:[%s3 + $0x98] sm:$0xff]
          %v1492 = vld [vmem:[%s3 + $0xa0] sm:$0xff]
          %v1493 = vld [vmem:[%s3 + $0xa8] sm:$0xff]
          %v1494 = vld [vmem:[%s3 + $0xb0] sm:$0xff]
          %v1495 = vld [vmem:[%s3 + $0xb8] sm:$0xff]
          %v1496 = vld [vmem:[%s3 + $0xc0] sm:$0xff]
          %v1497 = vld [vmem:[%s3 + $0xc8] sm:$0xff]
          %v1498 = vld [vmem:[%s3 + $0xd0] sm:$0xff]
          %v1499 = vld [vmem:[%s3 + $0xd8] sm:$0xff]
          %v1500 = vld [vmem:[%s3 + $0xe0] sm:$0xff]
          %v1501 = vld [vmem:[%s3 + $0xe8] sm:$0xff]
          %v1502 = vld [vmem:[%s3 + $0xf0] sm:$0xff]
          %v1503 = vld [vmem:[%s3 + $0xf8] sm:$0xff]
          %v1504 = vld [vmem:[#allocation7] sm:$0x1]
          %v1506 = vperm.slane %v1504, 0
          %1508 = vmatpush.msra.mxu0 %v1487
          %1509 = vmatpush.msra.mxu0 %v1486
          %1510 = vmatpush.msra.mxu0 %v1485
          %1511 = vmatpush.msra.mxu0 %v1484
          %1512 = vmatpush.msra.mxu0 %v1483
          %1513 = vmatpush.msra.mxu0 %v1482
          %1514 = vmatpush.msra.mxu0 %v1481
          %1515 = vmatpush.msra.mxu0 %v1480
          %1516 = vmatpush.msra.mxu0 %v1479
          %1517 = vmatpush.msra.mxu0 %v1478
          %1518 = vmatpush.msra.mxu0 %v1477
          %1519 = vmatpush.msra.mxu0 %v1476
          %1520 = vmatpush.msra.mxu0 %v1475
          %1521 = vmatpush.msra.mxu0 %v1474
          %1522 = vmatpush.msra.mxu0 %v1473
          %1523 = vmatpush.msra.mxu0 %v1472
          %1524 = vmatmul.f32.gmra.mxu0 %v1468
          %v1525 = vpop.f32.mrf.mxu0
          %v1526 = vadd.f32 %v1506, %v1525
          %1527 = vmatmul.f32.gmra.mxu0 %v1470
          %v1528 = vpop.f32.mrf.mxu0
          %v1529 = vadd.f32 %v1506, %v1528
          %1530 = vdwg.mxu0
          %1531 = vmatpush.msra.mxu0 %v1503
          %1532 = vmatpush.msra.mxu0 %v1502
          %1533 = vmatpush.msra.mxu0 %v1501
          %1534 = vmatpush.msra.mxu0 %v1500
          %1535 = vmatpush.msra.mxu0 %v1499
          %1536 = vmatpush.msra.mxu0 %v1498
          %1537 = vmatpush.msra.mxu0 %v1497
          %1538 = vmatpush.msra.mxu0 %v1496
          %1539 = vmatpush.msra.mxu0 %v1495
          %1540 = vmatpush.msra.mxu0 %v1494
          %1541 = vmatpush.msra.mxu0 %v1493
          %1542 = vmatpush.msra.mxu0 %v1492
          %1543 = vmatpush.msra.mxu0 %v1491
          %1544 = vmatpush.msra.mxu0 %v1490
          %1545 = vmatpush.msra.mxu0 %v1489
          %1546 = vmatpush.msra.mxu0 %v1488
          %1547 = vmatmul.f32.gmra.mxu0 %v1469
          %v1548 = vpop.f32.mrf.mxu0
          %v1549 = vadd.f32 %v1526, %v1548
          %1550 = vmatmul.f32.gmra.mxu0 %v1471
          %v1551 = vpop.f32.mrf.mxu0
          %v1552 = vadd.f32 %v1529, %v1551
          %1553 = vdwg.mxu0
          %v1554 = vxor.u32 %v1549, 2147483648
          %v1555 = vxor.u32 %v1552, 2147483648
          %v1556 = vmul.f32 %v1554, 1.442695
          %v1557 = vpow.pop %v1556
          %v1558 = vmul.f32 %v1555, 1.442695
          %v1559 = vpow.pop %v1558
          %v1560 = vadd.f32 %v1557, 1.0
          %v1561 = vadd.f32 %v1559, 1.0
          %v1562 = vrcp.pop %v1560
          %v1563 = vmul.f32 %v1560, %v1562
          %v1564 = vsub.f32 1.0, %v1563
          %v1565 = vmul.f32 %v1562, %v1564
          %v1566 = vadd.f32 %v1562, %v1565
          %vm1567 = vweird.f32 %v1560
          %vm1568 = vweird.f32 %v1562
          %vm1569 = vmor %vm1567, %vm1568
          %v1570 = vsel %vm1569, %v1562, %v1566
          %v1571 = vand.u32 2147483647, %v1560
          %vm1572 = vcmp.eq.f32.partialorder %v1571, 8.507059e+37
          %v1573 = vand.u32 %v1560, 2147483648
          %v1574 = vor.u32 1.1754944e-38, %v1573
          %v1575 = vsel %vm1572, %v1574, %v1570
          %v1576 = vmul.f32 1.0, %v1575
          %v1577 = vrcp.pop %v1561
          %v1578 = vmul.f32 %v1561, %v1577
          %v1579 = vsub.f32 1.0, %v1578
          %v1580 = vmul.f32 %v1577, %v1579
          %v1581 = vadd.f32 %v1577, %v1580
          %vm1582 = vweird.f32 %v1561
          %vm1583 = vweird.f32 %v1577
          %vm1584 = vmor %vm1582, %vm1583
          %v1585 = vsel %vm1584, %v1577, %v1581
          %v1586 = vand.u32 2147483647, %v1561
          %vm1587 = vcmp.eq.f32.partialorder %v1586, 8.507059e+37
          %v1588 = vand.u32 %v1561, 2147483648
          %v1589 = vor.u32 1.1754944e-38, %v1588
          %v1590 = vsel %vm1587, %v1589, %v1585
          %v1591 = vmul.f32 1.0, %v1590
          %vm1592 = vcmask 23552
          %1593 = vst.msk [vmem:[%s330] sm:$0xff] %vm1592, %v1576
          %1594 = vst.msk [vmem:[%s330 + $0x8] sm:$0xff] %vm1592, %v1591
        $region60: #{biege_forward.3} parent=39 // pred_fallthru
          _
        %s1595 = smul.u32 2, %s24
        %p1596 = scmp.lt.s32.totalorder %s1595, 1
        %s1597 = scalar_select %p1596, %s1595, 1
        %s1598 = smul.addr %s1597, 8
        %s1599 = scalar_lea.vmem %s5, %s1598
        // Predicated region
        $region61: #{biege_forward.3} parent=39 // pred_check
          %p1600 = pneg %p167
        $region62: #{biege_forward.3} parent=39 // pred_check_branch
          %1602 = sbr.rel (%p1600) target = $region64
        $region63: #{biege_forward.3} parent=39 // pred_region
          %s1603 = smul.u32 2, %s24
        $region64: #{biege_forward.3} parent=39 // pred_fallthru
          _
        // Predicated region
        $region65: #{biege_forward.3} parent=39 // pred_check
          %p1604 = pneg %p167
        $region66: #{biege_forward.3} parent=39 // pred_check_branch
          %1606 = sbr.rel (%p1604) target = $region68
        $region67: #{biege_forward.3} parent=39 // pred_region
          %s1607 = smul.u32 2, %s24
          %p1608 = scmp.lt.s32.totalorder %s1607, 1
          %s1609 = scalar_select %p1608, %s1607, 1
          %s1610 = smul.addr %s1609, 8
          %s1611 = scalar_lea.vmem %s5, %s1610
        $region68: #{biege_forward.3} parent=39 // pred_fallthru
          _
      $region40: #{biege_forward.3} parent=5 // pred_fallthru
        _
      %p1612 = scmp.le.s32.totalorder 2, %s15
      // Predicated region
      $region69: #{biege_forward.3} parent=5 // pred_check
        %p1613 = pneg %p1612
      $region70: #{biege_forward.3} parent=5 // pred_check_branch
        %1615 = sbr.rel (%p1613) target = $region72
      $region71: #{biege_forward.3} parent=5 // pred_region
        %s1616 = ssub.s32 %s15, 2
      $region72: #{biege_forward.3} parent=5 // pred_fallthru
        _
    $region6: #{biege_forward.3} parent=1 // loop_footer
      %s19 = sadd.s32 1, %s15
    $region7: #{biege_forward.3} parent=1 // loop_footer_branch
      %14 = sbr.rel target = $region3
    $region8: #{biege_forward.3} parent=1 // loop_exit
      _
    %1617 = vsyncpa [#allocation4], 1
    %s1618 = scalar_lea.sflag [#allocation4], 1
    %1619 = vsyncpa %s1618, 1
    %1620 = vsyncpa [#allocation6], 1

// kernel: biege_forward.2
$region0: #{biege_forward.2}
  #allocation0 [shape = 'u32[]', space=smem, size = 0x4, offset = 0x4, fixed_abs, tag = 'smem constant byte address 0x4 - core index']
  #allocation1 [shape = 'u32[72,128]{1,0:T(1,128)}', space=vmem, size = 0x9000, scoped, tag = 'internal scratch']
  %s0 = inlined_call_operand.vmem [shape: f32[12,2048], index: 0, kind: input, shape index: {}]
  %s1 = inlined_call_operand.vmem [shape: f32[12,2048], index: 1, kind: input, shape index: {}]
  %s2 = inlined_call_operand.vmem [shape: f32[32,12], index: 2, kind: input, shape index: {}]
  %s3 = inlined_call_operand.vmem [shape: f32[32,1], index: 3, kind: input, shape index: {}]
  %s4 = inlined_call_operand.vmem [shape: f32[2,64,32], index: 4, kind: input, shape index: {}]
  %s5 = inlined_call_operand.vmem [shape: f32[64,1], index: 5, kind: input, shape index: {}]
  %s6 = inlined_call_operand.vmem [shape: bf16[64,2048], index: 6, kind: output, shape index: {}]
  %s7 = sld [smem:[#allocation0]]
  $region34: #{biege_forward.2} parent=0
    _
  %s9 = ssub.s32 1, %s7
  %s10 = scalar_select 0, %s9, %s7
  // Predicated region
  $region2: #{biege_forward.2} parent=0 // pred_check
    _
  $region3: #{biege_forward.2} parent=0 // pred_check_branch
    %12 = sbr.rel (0) target = $region5
  $region4: #{biege_forward.2} parent=0 // pred_region
    _
  $region5: #{biege_forward.2} parent=0 // pred_fallthru
    _
  // Predicated region
  $region6: #{biege_forward.2} parent=0 // pred_check
    _
  $region7: #{biege_forward.2} parent=0 // pred_check_branch
    %14 = sbr.rel (0) target = $region9
  $region8: #{biege_forward.2} parent=0 // pred_region
    _
  $region9: #{biege_forward.2} parent=0 // pred_fallthru
    _
  // Predicated region
  $region10: #{biege_forward.2} parent=0 // pred_check
    _
  $region11: #{biege_forward.2} parent=0 // pred_check_branch
    %16 = sbr.rel (0) target = $region13
  $region12: #{biege_forward.2} parent=0 // pred_region
    _
  $region13: #{biege_forward.2} parent=0 // pred_fallthru
    _
  // Predicated region
  $region14: #{biege_forward.2} parent=0 // pred_check
    _
  $region15: #{biege_forward.2} parent=0 // pred_check_branch
    %18 = sbr.rel (0) target = $region17
  $region16: #{biege_forward.2} parent=0 // pred_region
    _
  $region17: #{biege_forward.2} parent=0 // pred_fallthru
    _
  // Predicated region
  $region18: #{biege_forward.2} parent=0 // pred_check
    _
  $region19: #{biege_forward.2} parent=0 // pred_check_branch
    %20 = sbr.rel (0) target = $region21
  $region20: #{biege_forward.2} parent=0 // pred_region
    _
  $region21: #{biege_forward.2} parent=0 // pred_fallthru
    _
  // Predicated region
  $region22: #{biege_forward.2} parent=0 // pred_check
    _
  $region23: #{biege_forward.2} parent=0 // pred_check_branch
    %22 = sbr.rel (0) target = $region25
  $region24: #{biege_forward.2} parent=0 // pred_region
    _
  $region25: #{biege_forward.2} parent=0 // pred_fallthru
    _
  %v23 = vld [vmem:[%s2] sm:$0xff]
  %v24 = vld [vmem:[%s2 + $0x8] sm:$0xff]
  %v25 = vld [vmem:[%s2 + $0x10] sm:$0xff]
  %v26 = vld [vmem:[%s2 + $0x18] sm:$0xff]
  %v27 = vld [vmem:[%s0] sm:$0xff]
  %v28 = vld [vmem:[%s0 + $0x8] sm:$0xff]
  %v29 = vld [vmem:[%s0 + $0x10] sm:$0xff]
  %v30 = vld [vmem:[%s0 + $0x18] sm:$0xff]
  %v31 = vld [vmem:[%s0 + $0x20] sm:$0xff]
  %v32 = vld [vmem:[%s0 + $0x28] sm:$0xff]
  %v33 = vld [vmem:[%s0 + $0x30] sm:$0xff]
  %v34 = vld [vmem:[%s0 + $0x38] sm:$0xff]
  %v35 = vld [vmem:[%s0 + $0x40] sm:$0xff]
  %v36 = vld [vmem:[%s0 + $0x48] sm:$0xff]
  %v37 = vld [vmem:[%s0 + $0x50] sm:$0xff]
  %v38 = vld [vmem:[%s0 + $0x58] sm:$0xff]
  %v39 = vld [vmem:[%s0 + $0x60] sm:$0xff]
  %v40 = vld [vmem:[%s0 + $0x68] sm:$0xff]
  %v41 = vld [vmem:[%s0 + $0x70] sm:$0xff]
  %v42 = vld [vmem:[%s0 + $0x78] sm:$0xff]
  %v43 = vld [vmem:[%s0 + $0x80] sm:$0xf]
  %v44 = vld [vmem:[%s0 + $0x88] sm:$0xf]
  %v45 = vld [vmem:[%s0 + $0x90] sm:$0xf]
  %v46 = vld [vmem:[%s0 + $0x98] sm:$0xf]
  %v47 = vld [vmem:[%s0 + $0xa0] sm:$0xf]
  %v48 = vld [vmem:[%s0 + $0xa8] sm:$0xf]
  %v49 = vld [vmem:[%s0 + $0xb0] sm:$0xf]
  %v50 = vld [vmem:[%s0 + $0xb8] sm:$0xf]
  %v51 = vld [vmem:[%s0 + $0xc0] sm:$0xf]
  %v52 = vld [vmem:[%s0 + $0xc8] sm:$0xf]
  %v53 = vld [vmem:[%s0 + $0xd0] sm:$0xf]
  %v54 = vld [vmem:[%s0 + $0xd8] sm:$0xf]
  %v55 = vld [vmem:[%s0 + $0xe0] sm:$0xf]
  %v56 = vld [vmem:[%s0 + $0xe8] sm:$0xf]
  %v57 = vld [vmem:[%s0 + $0xf0] sm:$0xf]
  %v58 = vld [vmem:[%s0 + $0xf8] sm:$0xf]
  %vm59 = vcmask 97280
  %v61 = vsel %vm59, %v23, 0
  %v64 = vsel %vm59, %v24, 0
  %v67 = vsel %vm59, %v25, 0
  %v70 = vsel %vm59, %v26, 0
  %vm72 = vcmask 1043456
  %v74 = vsel %vm72, %v43, 0
  %v77 = vsel %vm72, %v44, 0
  %v80 = vsel %vm72, %v45, 0
  %v83 = vsel %vm72, %v46, 0
  %v86 = vsel %vm72, %v47, 0
  %v89 = vsel %vm72, %v48, 0
  %v92 = vsel %vm72, %v49, 0
  %v95 = vsel %vm72, %v50, 0
  %v98 = vsel %vm72, %v51, 0
  %v101 = vsel %vm72, %v52, 0
  %v104 = vsel %vm72, %v53, 0
  %v107 = vsel %vm72, %v54, 0
  %v110 = vsel %vm72, %v55, 0
  %v113 = vsel %vm72, %v56, 0
  %v116 = vsel %vm72, %v57, 0
  %v119 = vsel %vm72, %v58, 0
  %121 = vmatpush.msra.mxu0 0.0
  %122 = vmatpush.msra.mxu0 0.0
  %123 = vmatpush.msra.mxu0 0.0
  %124 = vmatpush.msra.mxu0 0.0
  %125 = vmatpush.msra.mxu0 0.0
  %126 = vmatpush.msra.mxu0 0.0
  %127 = vmatpush.msra.mxu0 0.0
  %128 = vmatpush.msra.mxu0 0.0
  %129 = vmatpush.msra.mxu0 0.0
  %130 = vmatpush.msra.mxu0 0.0
  %131 = vmatpush.msra.mxu0 0.0
  %132 = vmatpush.msra.mxu0 0.0
  %133 = vmatpush.msra.mxu0 0.0
  %134 = vmatpush.msra.mxu0 0.0
  %135 = vmatpush.msra.mxu0 %v74
  %136 = vmatpush.msra.mxu0 %v27
  %137 = vmatmul.f32.gmra.mxu0 %v61
  %v138 = vpop.f32.mrf.mxu0
  %v139 = vadd.f32 0.0, %v138
  %140 = vmatmul.f32.gmra.mxu0 %v64
  %v141 = vpop.f32.mrf.mxu0
  %v142 = vadd.f32 0.0, %v141
  %143 = vmatmul.f32.gmra.mxu0 %v67
  %v144 = vpop.f32.mrf.mxu0
  %v145 = vadd.f32 0.0, %v144
  %146 = vmatmul.f32.gmra.mxu0 %v70
  %v147 = vpop.f32.mrf.mxu0
  %v148 = vadd.f32 0.0, %v147
  %149 = vdwg.mxu0
  %150 = vmatpush.msra.mxu0 0.0
  %151 = vmatpush.msra.mxu0 0.0
  %152 = vmatpush.msra.mxu0 0.0
  %153 = vmatpush.msra.mxu0 0.0
  %154 = vmatpush.msra.mxu0 0.0
  %155 = vmatpush.msra.mxu0 0.0
  %156 = vmatpush.msra.mxu0 0.0
  %157 = vmatpush.msra.mxu0 0.0
  %158 = vmatpush.msra.mxu0 0.0
  %159 = vmatpush.msra.mxu0 0.0
  %160 = vmatpush.msra.mxu0 0.0
  %161 = vmatpush.msra.mxu0 0.0
  %162 = vmatpush.msra.mxu0 0.0
  %163 = vmatpush.msra.mxu0 0.0
  %164 = vmatpush.msra.mxu0 %v77
  %165 = vmatpush.msra.mxu0 %v28
  %166 = vmatmul.f32.gmra.mxu0 %v61
  %v167 = vpop.f32.mrf.mxu0
  %v168 = vadd.f32 0.0, %v167
  %169 = vmatmul.f32.gmra.mxu0 %v64
  %v170 = vpop.f32.mrf.mxu0
  %v171 = vadd.f32 0.0, %v170
  %172 = vmatmul.f32.gmra.mxu0 %v67
  %v173 = vpop.f32.mrf.mxu0
  %v174 = vadd.f32 0.0, %v173
  %175 = vmatmul.f32.gmra.mxu0 %v70
  %v176 = vpop.f32.mrf.mxu0
  %v177 = vadd.f32 0.0, %v176
  %178 = vdwg.mxu0
  %179 = vmatpush.msra.mxu0 0.0
  %180 = vmatpush.msra.mxu0 0.0
  %181 = vmatpush.msra.mxu0 0.0
  %182 = vmatpush.msra.mxu0 0.0
  %183 = vmatpush.msra.mxu0 0.0
  %184 = vmatpush.msra.mxu0 0.0
  %185 = vmatpush.msra.mxu0 0.0
  %186 = vmatpush.msra.mxu0 0.0
  %187 = vmatpush.msra.mxu0 0.0
  %188 = vmatpush.msra.mxu0 0.0
  %189 = vmatpush.msra.mxu0 0.0
  %190 = vmatpush.msra.mxu0 0.0
  %191 = vmatpush.msra.mxu0 0.0
  %192 = vmatpush.msra.mxu0 0.0
  %193 = vmatpush.msra.mxu0 %v80
  %194 = vmatpush.msra.mxu0 %v29
  %195 = vmatmul.f32.gmra.mxu0 %v61
  %v196 = vpop.f32.mrf.mxu0
  %v197 = vadd.f32 0.0, %v196
  %198 = vmatmul.f32.gmra.mxu0 %v64
  %v199 = vpop.f32.mrf.mxu0
  %v200 = vadd.f32 0.0, %v199
  %201 = vmatmul.f32.gmra.mxu0 %v67
  %v202 = vpop.f32.mrf.mxu0
  %v203 = vadd.f32 0.0, %v202
  %204 = vmatmul.f32.gmra.mxu0 %v70
  %v205 = vpop.f32.mrf.mxu0
  %v206 = vadd.f32 0.0, %v205
  %207 = vdwg.mxu0
  %208 = vmatpush.msra.mxu0 0.0
  %209 = vmatpush.msra.mxu0 0.0
  %210 = vmatpush.msra.mxu0 0.0
  %211 = vmatpush.msra.mxu0 0.0
  %212 = vmatpush.msra.mxu0 0.0
  %213 = vmatpush.msra.mxu0 0.0
  %214 = vmatpush.msra.mxu0 0.0
  %215 = vmatpush.msra.mxu0 0.0
  %216 = vmatpush.msra.mxu0 0.0
  %217 = vmatpush.msra.mxu0 0.0
  %218 = vmatpush.msra.mxu0 0.0
  %219 = vmatpush.msra.mxu0 0.0
  %220 = vmatpush.msra.mxu0 0.0
  %221 = vmatpush.msra.mxu0 0.0
  %222 = vmatpush.msra.mxu0 %v83
  %223 = vmatpush.msra.mxu0 %v30
  %224 = vmatmul.f32.gmra.mxu0 %v61
  %v225 = vpop.f32.mrf.mxu0
  %v226 = vadd.f32 0.0, %v225
  %227 = vmatmul.f32.gmra.mxu0 %v64
  %v228 = vpop.f32.mrf.mxu0
  %v229 = vadd.f32 0.0, %v228
  %230 = vmatmul.f32.gmra.mxu0 %v67
  %v231 = vpop.f32.mrf.mxu0
  %v232 = vadd.f32 0.0, %v231
  %233 = vmatmul.f32.gmra.mxu0 %v70
  %v234 = vpop.f32.mrf.mxu0
  %v235 = vadd.f32 0.0, %v234
  %236 = vdwg.mxu0
  %237 = vmatpush.msra.mxu0 0.0
  %238 = vmatpush.msra.mxu0 0.0
  %239 = vmatpush.msra.mxu0 0.0
  %240 = vmatpush.msra.mxu0 0.0
  %241 = vmatpush.msra.mxu0 0.0
  %242 = vmatpush.msra.mxu0 0.0
  %243 = vmatpush.msra.mxu0 0.0
  %244 = vmatpush.msra.mxu0 0.0
  %245 = vmatpush.msra.mxu0 0.0
  %246 = vmatpush.msra.mxu0 0.0
  %247 = vmatpush.msra.mxu0 0.0
  %248 = vmatpush.msra.mxu0 0.0
  %249 = vmatpush.msra.mxu0 0.0
  %250 = vmatpush.msra.mxu0 0.0
  %251 = vmatpush.msra.mxu0 %v86
  %252 = vmatpush.msra.mxu0 %v31
  %253 = vmatmul.f32.gmra.mxu0 %v61
  %v254 = vpop.f32.mrf.mxu0
  %v255 = vadd.f32 0.0, %v254
  %256 = vmatmul.f32.gmra.mxu0 %v64
  %v257 = vpop.f32.mrf.mxu0
  %v258 = vadd.f32 0.0, %v257
  %259 = vmatmul.f32.gmra.mxu0 %v67
  %v260 = vpop.f32.mrf.mxu0
  %v261 = vadd.f32 0.0, %v260
  %262 = vmatmul.f32.gmra.mxu0 %v70
  %v263 = vpop.f32.mrf.mxu0
  %v264 = vadd.f32 0.0, %v263
  %265 = vdwg.mxu0
  %266 = vmatpush.msra.mxu0 0.0
  %267 = vmatpush.msra.mxu0 0.0
  %268 = vmatpush.msra.mxu0 0.0
  %269 = vmatpush.msra.mxu0 0.0
  %270 = vmatpush.msra.mxu0 0.0
  %271 = vmatpush.msra.mxu0 0.0
  %272 = vmatpush.msra.mxu0 0.0
  %273 = vmatpush.msra.mxu0 0.0
  %274 = vmatpush.msra.mxu0 0.0
  %275 = vmatpush.msra.mxu0 0.0
  %276 = vmatpush.msra.mxu0 0.0
  %277 = vmatpush.msra.mxu0 0.0
  %278 = vmatpush.msra.mxu0 0.0
  %279 = vmatpush.msra.mxu0 0.0
  %280 = vmatpush.msra.mxu0 %v89
  %281 = vmatpush.msra.mxu0 %v32
  %282 = vmatmul.f32.gmra.mxu0 %v61
  %v283 = vpop.f32.mrf.mxu0
  %v284 = vadd.f32 0.0, %v283
  %285 = vmatmul.f32.gmra.mxu0 %v64
  %v286 = vpop.f32.mrf.mxu0
  %v287 = vadd.f32 0.0, %v286
  %288 = vmatmul.f32.gmra.mxu0 %v67
  %v289 = vpop.f32.mrf.mxu0
  %v290 = vadd.f32 0.0, %v289
  %291 = vmatmul.f32.gmra.mxu0 %v70
  %v292 = vpop.f32.mrf.mxu0
  %v293 = vadd.f32 0.0, %v292
  %294 = vdwg.mxu0
  %295 = vmatpush.msra.mxu0 0.0
  %296 = vmatpush.msra.mxu0 0.0
  %297 = vmatpush.msra.mxu0 0.0
  %298 = vmatpush.msra.mxu0 0.0
  %299 = vmatpush.msra.mxu0 0.0
  %300 = vmatpush.msra.mxu0 0.0
  %301 = vmatpush.msra.mxu0 0.0
  %302 = vmatpush.msra.mxu0 0.0
  %303 = vmatpush.msra.mxu0 0.0
  %304 = vmatpush.msra.mxu0 0.0
  %305 = vmatpush.msra.mxu0 0.0
  %306 = vmatpush.msra.mxu0 0.0
  %307 = vmatpush.msra.mxu0 0.0
  %308 = vmatpush.msra.mxu0 0.0
  %309 = vmatpush.msra.mxu0 %v92
  %310 = vmatpush.msra.mxu0 %v33
  %311 = vmatmul.f32.gmra.mxu0 %v61
  %v312 = vpop.f32.mrf.mxu0
  %v313 = vadd.f32 0.0, %v312
  %314 = vmatmul.f32.gmra.mxu0 %v64
  %v315 = vpop.f32.mrf.mxu0
  %v316 = vadd.f32 0.0, %v315
  %317 = vmatmul.f32.gmra.mxu0 %v67
  %v318 = vpop.f32.mrf.mxu0
  %v319 = vadd.f32 0.0, %v318
  %320 = vmatmul.f32.gmra.mxu0 %v70
  %v321 = vpop.f32.mrf.mxu0
  %v322 = vadd.f32 0.0, %v321
  %323 = vdwg.mxu0
  %324 = vmatpush.msra.mxu0 0.0
  %325 = vmatpush.msra.mxu0 0.0
  %326 = vmatpush.msra.mxu0 0.0
  %327 = vmatpush.msra.mxu0 0.0
  %328 = vmatpush.msra.mxu0 0.0
  %329 = vmatpush.msra.mxu0 0.0
  %330 = vmatpush.msra.mxu0 0.0
  %331 = vmatpush.msra.mxu0 0.0
  %332 = vmatpush.msra.mxu0 0.0
  %333 = vmatpush.msra.mxu0 0.0
  %334 = vmatpush.msra.mxu0 0.0
  %335 = vmatpush.msra.mxu0 0.0
  %336 = vmatpush.msra.mxu0 0.0
  %337 = vmatpush.msra.mxu0 0.0
  %338 = vmatpush.msra.mxu0 %v95
  %339 = vmatpush.msra.mxu0 %v34
  %340 = vmatmul.f32.gmra.mxu0 %v61
  %v341 = vpop.f32.mrf.mxu0
  %v342 = vadd.f32 0.0, %v341
  %343 = vmatmul.f32.gmra.mxu0 %v64
  %v344 = vpop.f32.mrf.mxu0
  %v345 = vadd.f32 0.0, %v344
  %346 = vmatmul.f32.gmra.mxu0 %v67
  %v347 = vpop.f32.mrf.mxu0
  %v348 = vadd.f32 0.0, %v347
  %349 = vmatmul.f32.gmra.mxu0 %v70
  %v350 = vpop.f32.mrf.mxu0
  %v351 = vadd.f32 0.0, %v350
  %352 = vdwg.mxu0
  %353 = vmatpush.msra.mxu0 0.0
  %354 = vmatpush.msra.mxu0 0.0
  %355 = vmatpush.msra.mxu0 0.0
  %356 = vmatpush.msra.mxu0 0.0
  %357 = vmatpush.msra.mxu0 0.0
  %358 = vmatpush.msra.mxu0 0.0
  %359 = vmatpush.msra.mxu0 0.0
  %360 = vmatpush.msra.mxu0 0.0
  %361 = vmatpush.msra.mxu0 0.0
  %362 = vmatpush.msra.mxu0 0.0
  %363 = vmatpush.msra.mxu0 0.0
  %364 = vmatpush.msra.mxu0 0.0
  %365 = vmatpush.msra.mxu0 0.0
  %366 = vmatpush.msra.mxu0 0.0
  %367 = vmatpush.msra.mxu0 %v98
  %368 = vmatpush.msra.mxu0 %v35
  %369 = vmatmul.f32.gmra.mxu0 %v61
  %v370 = vpop.f32.mrf.mxu0
  %v371 = vadd.f32 0.0, %v370
  %372 = vmatmul.f32.gmra.mxu0 %v64
  %v373 = vpop.f32.mrf.mxu0
  %v374 = vadd.f32 0.0, %v373
  %375 = vmatmul.f32.gmra.mxu0 %v67
  %v376 = vpop.f32.mrf.mxu0
  %v377 = vadd.f32 0.0, %v376
  %378 = vmatmul.f32.gmra.mxu0 %v70
  %v379 = vpop.f32.mrf.mxu0
  %v380 = vadd.f32 0.0, %v379
  %381 = vdwg.mxu0
  %382 = vmatpush.msra.mxu0 0.0
  %383 = vmatpush.msra.mxu0 0.0
  %384 = vmatpush.msra.mxu0 0.0
  %385 = vmatpush.msra.mxu0 0.0
  %386 = vmatpush.msra.mxu0 0.0
  %387 = vmatpush.msra.mxu0 0.0
  %388 = vmatpush.msra.mxu0 0.0
  %389 = vmatpush.msra.mxu0 0.0
  %390 = vmatpush.msra.mxu0 0.0
  %391 = vmatpush.msra.mxu0 0.0
  %392 = vmatpush.msra.mxu0 0.0
  %393 = vmatpush.msra.mxu0 0.0
  %394 = vmatpush.msra.mxu0 0.0
  %395 = vmatpush.msra.mxu0 0.0
  %396 = vmatpush.msra.mxu0 %v101
  %397 = vmatpush.msra.mxu0 %v36
  %398 = vmatmul.f32.gmra.mxu0 %v61
  %v399 = vpop.f32.mrf.mxu0
  %v400 = vadd.f32 0.0, %v399
  %401 = vmatmul.f32.gmra.mxu0 %v64
  %v402 = vpop.f32.mrf.mxu0
  %v403 = vadd.f32 0.0, %v402
  %404 = vmatmul.f32.gmra.mxu0 %v67
  %v405 = vpop.f32.mrf.mxu0
  %v406 = vadd.f32 0.0, %v405
  %407 = vmatmul.f32.gmra.mxu0 %v70
  %v408 = vpop.f32.mrf.mxu0
  %v409 = vadd.f32 0.0, %v408
  %410 = vdwg.mxu0
  %411 = vmatpush.msra.mxu0 0.0
  %412 = vmatpush.msra.mxu0 0.0
  %413 = vmatpush.msra.mxu0 0.0
  %414 = vmatpush.msra.mxu0 0.0
  %415 = vmatpush.msra.mxu0 0.0
  %416 = vmatpush.msra.mxu0 0.0
  %417 = vmatpush.msra.mxu0 0.0
  %418 = vmatpush.msra.mxu0 0.0
  %419 = vmatpush.msra.mxu0 0.0
  %420 = vmatpush.msra.mxu0 0.0
  %421 = vmatpush.msra.mxu0 0.0
  %422 = vmatpush.msra.mxu0 0.0
  %423 = vmatpush.msra.mxu0 0.0
  %424 = vmatpush.msra.mxu0 0.0
  %425 = vmatpush.msra.mxu0 %v104
  %426 = vmatpush.msra.mxu0 %v37
  %427 = vmatmul.f32.gmra.mxu0 %v61
  %v428 = vpop.f32.mrf.mxu0
  %v429 = vadd.f32 0.0, %v428
  %430 = vmatmul.f32.gmra.mxu0 %v64
  %v431 = vpop.f32.mrf.mxu0
  %v432 = vadd.f32 0.0, %v431
  %433 = vmatmul.f32.gmra.mxu0 %v67
  %v434 = vpop.f32.mrf.mxu0
  %v435 = vadd.f32 0.0, %v434
  %436 = vmatmul.f32.gmra.mxu0 %v70
  %v437 = vpop.f32.mrf.mxu0
  %v438 = vadd.f32 0.0, %v437
  %439 = vdwg.mxu0
  %440 = vmatpush.msra.mxu0 0.0
  %441 = vmatpush.msra.mxu0 0.0
  %442 = vmatpush.msra.mxu0 0.0
  %443 = vmatpush.msra.mxu0 0.0
  %444 = vmatpush.msra.mxu0 0.0
  %445 = vmatpush.msra.mxu0 0.0
  %446 = vmatpush.msra.mxu0 0.0
  %447 = vmatpush.msra.mxu0 0.0
  %448 = vmatpush.msra.mxu0 0.0
  %449 = vmatpush.msra.mxu0 0.0
  %450 = vmatpush.msra.mxu0 0.0
  %451 = vmatpush.msra.mxu0 0.0
  %452 = vmatpush.msra.mxu0 0.0
  %453 = vmatpush.msra.mxu0 0.0
  %454 = vmatpush.msra.mxu0 %v107
  %455 = vmatpush.msra.mxu0 %v38
  %456 = vmatmul.f32.gmra.mxu0 %v61
  %v457 = vpop.f32.mrf.mxu0
  %v458 = vadd.f32 0.0, %v457
  %459 = vmatmul.f32.gmra.mxu0 %v64
  %v460 = vpop.f32.mrf.mxu0
  %v461 = vadd.f32 0.0, %v460
  %462 = vmatmul.f32.gmra.mxu0 %v67
  %v463 = vpop.f32.mrf.mxu0
  %v464 = vadd.f32 0.0, %v463
  %465 = vmatmul.f32.gmra.mxu0 %v70
  %v466 = vpop.f32.mrf.mxu0
  %v467 = vadd.f32 0.0, %v466
  %468 = vdwg.mxu0
  %469 = vmatpush.msra.mxu0 0.0
  %470 = vmatpush.msra.mxu0 0.0
  %471 = vmatpush.msra.mxu0 0.0
  %472 = vmatpush.msra.mxu0 0.0
  %473 = vmatpush.msra.mxu0 0.0
  %474 = vmatpush.msra.mxu0 0.0
  %475 = vmatpush.msra.mxu0 0.0
  %476 = vmatpush.msra.mxu0 0.0
  %477 = vmatpush.msra.mxu0 0.0
  %478 = vmatpush.msra.mxu0 0.0
  %479 = vmatpush.msra.mxu0 0.0
  %480 = vmatpush.msra.mxu0 0.0
  %481 = vmatpush.msra.mxu0 0.0
  %482 = vmatpush.msra.mxu0 0.0
  %483 = vmatpush.msra.mxu0 %v110
  %484 = vmatpush.msra.mxu0 %v39
  %485 = vmatmul.f32.gmra.mxu0 %v61
  %v486 = vpop.f32.mrf.mxu0
  %v487 = vadd.f32 0.0, %v486
  %488 = vmatmul.f32.gmra.mxu0 %v64
  %v489 = vpop.f32.mrf.mxu0
  %v490 = vadd.f32 0.0, %v489
  %491 = vmatmul.f32.gmra.mxu0 %v67
  %v492 = vpop.f32.mrf.mxu0
  %v493 = vadd.f32 0.0, %v492
  %494 = vmatmul.f32.gmra.mxu0 %v70
  %v495 = vpop.f32.mrf.mxu0
  %v496 = vadd.f32 0.0, %v495
  %497 = vdwg.mxu0
  %498 = vmatpush.msra.mxu0 0.0
  %499 = vmatpush.msra.mxu0 0.0
  %500 = vmatpush.msra.mxu0 0.0
  %501 = vmatpush.msra.mxu0 0.0
  %502 = vmatpush.msra.mxu0 0.0
  %503 = vmatpush.msra.mxu0 0.0
  %504 = vmatpush.msra.mxu0 0.0
  %505 = vmatpush.msra.mxu0 0.0
  %506 = vmatpush.msra.mxu0 0.0
  %507 = vmatpush.msra.mxu0 0.0
  %508 = vmatpush.msra.mxu0 0.0
  %509 = vmatpush.msra.mxu0 0.0
  %510 = vmatpush.msra.mxu0 0.0
  %511 = vmatpush.msra.mxu0 0.0
  %512 = vmatpush.msra.mxu0 %v113
  %513 = vmatpush.msra.mxu0 %v40
  %514 = vmatmul.f32.gmra.mxu0 %v61
  %v515 = vpop.f32.mrf.mxu0
  %v516 = vadd.f32 0.0, %v515
  %517 = vmatmul.f32.gmra.mxu0 %v64
  %v518 = vpop.f32.mrf.mxu0
  %v519 = vadd.f32 0.0, %v518
  %520 = vmatmul.f32.gmra.mxu0 %v67
  %v521 = vpop.f32.mrf.mxu0
  %v522 = vadd.f32 0.0, %v521
  %523 = vmatmul.f32.gmra.mxu0 %v70
  %v524 = vpop.f32.mrf.mxu0
  %v525 = vadd.f32 0.0, %v524
  %526 = vdwg.mxu0
  %527 = vmatpush.msra.mxu0 0.0
  %528 = vmatpush.msra.mxu0 0.0
  %529 = vmatpush.msra.mxu0 0.0
  %530 = vmatpush.msra.mxu0 0.0
  %531 = vmatpush.msra.mxu0 0.0
  %532 = vmatpush.msra.mxu0 0.0
  %533 = vmatpush.msra.mxu0 0.0
  %534 = vmatpush.msra.mxu0 0.0
  %535 = vmatpush.msra.mxu0 0.0
  %536 = vmatpush.msra.mxu0 0.0
  %537 = vmatpush.msra.mxu0 0.0
  %538 = vmatpush.msra.mxu0 0.0
  %539 = vmatpush.msra.mxu0 0.0
  %540 = vmatpush.msra.mxu0 0.0
  %541 = vmatpush.msra.mxu0 %v116
  %542 = vmatpush.msra.mxu0 %v41
  %543 = vmatmul.f32.gmra.mxu0 %v61
  %v544 = vpop.f32.mrf.mxu0
  %v545 = vadd.f32 0.0, %v544
  %546 = vmatmul.f32.gmra.mxu0 %v64
  %v547 = vpop.f32.mrf.mxu0
  %v548 = vadd.f32 0.0, %v547
  %549 = vmatmul.f32.gmra.mxu0 %v67
  %v550 = vpop.f32.mrf.mxu0
  %v551 = vadd.f32 0.0, %v550
  %552 = vmatmul.f32.gmra.mxu0 %v70
  %v553 = vpop.f32.mrf.mxu0
  %v554 = vadd.f32 0.0, %v553
  %555 = vdwg.mxu0
  %556 = vmatpush.msra.mxu0 0.0
  %557 = vmatpush.msra.mxu0 0.0
  %558 = vmatpush.msra.mxu0 0.0
  %559 = vmatpush.msra.mxu0 0.0
  %560 = vmatpush.msra.mxu0 0.0
  %561 = vmatpush.msra.mxu0 0.0
  %562 = vmatpush.msra.mxu0 0.0
  %563 = vmatpush.msra.mxu0 0.0
  %564 = vmatpush.msra.mxu0 0.0
  %565 = vmatpush.msra.mxu0 0.0
  %566 = vmatpush.msra.mxu0 0.0
  %567 = vmatpush.msra.mxu0 0.0
  %568 = vmatpush.msra.mxu0 0.0
  %569 = vmatpush.msra.mxu0 0.0
  %570 = vmatpush.msra.mxu0 %v119
  %571 = vmatpush.msra.mxu0 %v42
  %572 = vmatmul.f32.gmra.mxu0 %v61
  %v573 = vpop.f32.mrf.mxu0
  %v574 = vadd.f32 0.0, %v573
  %575 = vmatmul.f32.gmra.mxu0 %v64
  %v576 = vpop.f32.mrf.mxu0
  %v577 = vadd.f32 0.0, %v576
  %578 = vmatmul.f32.gmra.mxu0 %v67
  %v579 = vpop.f32.mrf.mxu0
  %v580 = vadd.f32 0.0, %v579
  %581 = vmatmul.f32.gmra.mxu0 %v70
  %v582 = vpop.f32.mrf.mxu0
  %v583 = vadd.f32 0.0, %v582
  %584 = vdwg.mxu0
  %v585 = vld [vmem:[%s1] sm:$0xff]
  %v586 = vld [vmem:[%s1 + $0x8] sm:$0xff]
  %v587 = vld [vmem:[%s1 + $0x10] sm:$0xff]
  %v588 = vld [vmem:[%s1 + $0x18] sm:$0xff]
  %v589 = vld [vmem:[%s1 + $0x20] sm:$0xff]
  %v590 = vld [vmem:[%s1 + $0x28] sm:$0xff]
  %v591 = vld [vmem:[%s1 + $0x30] sm:$0xff]
  %v592 = vld [vmem:[%s1 + $0x38] sm:$0xff]
  %v593 = vld [vmem:[%s1 + $0x40] sm:$0xff]
  %v594 = vld [vmem:[%s1 + $0x48] sm:$0xff]
  %v595 = vld [vmem:[%s1 + $0x50] sm:$0xff]
  %v596 = vld [vmem:[%s1 + $0x58] sm:$0xff]
  %v597 = vld [vmem:[%s1 + $0x60] sm:$0xff]
  %v598 = vld [vmem:[%s1 + $0x68] sm:$0xff]
  %v599 = vld [vmem:[%s1 + $0x70] sm:$0xff]
  %v600 = vld [vmem:[%s1 + $0x78] sm:$0xff]
  %v601 = vld [vmem:[%s1 + $0x80] sm:$0xf]
  %v602 = vld [vmem:[%s1 + $0x88] sm:$0xf]
  %v603 = vld [vmem:[%s1 + $0x90] sm:$0xf]
  %v604 = vld [vmem:[%s1 + $0x98] sm:$0xf]
  %v605 = vld [vmem:[%s1 + $0xa0] sm:$0xf]
  %v606 = vld [vmem:[%s1 + $0xa8] sm:$0xf]
  %v607 = vld [vmem:[%s1 + $0xb0] sm:$0xf]
  %v608 = vld [vmem:[%s1 + $0xb8] sm:$0xf]
  %v609 = vld [vmem:[%s1 + $0xc0] sm:$0xf]
  %v610 = vld [vmem:[%s1 + $0xc8] sm:$0xf]
  %v611 = vld [vmem:[%s1 + $0xd0] sm:$0xf]
  %v612 = vld [vmem:[%s1 + $0xd8] sm:$0xf]
  %v613 = vld [vmem:[%s1 + $0xe0] sm:$0xf]
  %v614 = vld [vmem:[%s1 + $0xe8] sm:$0xf]
  %v615 = vld [vmem:[%s1 + $0xf0] sm:$0xf]
  %v616 = vld [vmem:[%s1 + $0xf8] sm:$0xf]
  %v618 = vsel %vm72, %v601, 0
  %v621 = vsel %vm72, %v602, 0
  %v624 = vsel %vm72, %v603, 0
  %v627 = vsel %vm72, %v604, 0
  %v630 = vsel %vm72, %v605, 0
  %v633 = vsel %vm72, %v606, 0
  %v636 = vsel %vm72, %v607, 0
  %v639 = vsel %vm72, %v608, 0
  %v642 = vsel %vm72, %v609, 0
  %v645 = vsel %vm72, %v610, 0
  %v648 = vsel %vm72, %v611, 0
  %v651 = vsel %vm72, %v612, 0
  %v654 = vsel %vm72, %v613, 0
  %v657 = vsel %vm72, %v614, 0
  %v660 = vsel %vm72, %v615, 0
  %v663 = vsel %vm72, %v616, 0
  %665 = vmatpush.msra.mxu0 0.0
  %666 = vmatpush.msra.mxu0 0.0
  %667 = vmatpush.msra.mxu0 0.0
  %668 = vmatpush.msra.mxu0 0.0
  %669 = vmatpush.msra.mxu0 0.0
  %670 = vmatpush.msra.mxu0 0.0
  %671 = vmatpush.msra.mxu0 0.0
  %672 = vmatpush.msra.mxu0 0.0
  %673 = vmatpush.msra.mxu0 0.0
  %674 = vmatpush.msra.mxu0 0.0
  %675 = vmatpush.msra.mxu0 0.0
  %676 = vmatpush.msra.mxu0 0.0
  %677 = vmatpush.msra.mxu0 0.0
  %678 = vmatpush.msra.mxu0 0.0
  %679 = vmatpush.msra.mxu0 %v618
  %680 = vmatpush.msra.mxu0 %v585
  %681 = vmatmul.f32.gmra.mxu0 %v61
  %v682 = vpop.f32.mrf.mxu0
  %v683 = vadd.f32 0.0, %v682
  %684 = vmatmul.f32.gmra.mxu0 %v64
  %v685 = vpop.f32.mrf.mxu0
  %v686 = vadd.f32 0.0, %v685
  %687 = vmatmul.f32.gmra.mxu0 %v67
  %v688 = vpop.f32.mrf.mxu0
  %v689 = vadd.f32 0.0, %v688
  %690 = vmatmul.f32.gmra.mxu0 %v70
  %v691 = vpop.f32.mrf.mxu0
  %v692 = vadd.f32 0.0, %v691
  %693 = vdwg.mxu0
  %694 = vmatpush.msra.mxu0 0.0
  %695 = vmatpush.msra.mxu0 0.0
  %696 = vmatpush.msra.mxu0 0.0
  %697 = vmatpush.msra.mxu0 0.0
  %698 = vmatpush.msra.mxu0 0.0
  %699 = vmatpush.msra.mxu0 0.0
  %700 = vmatpush.msra.mxu0 0.0
  %701 = vmatpush.msra.mxu0 0.0
  %702 = vmatpush.msra.mxu0 0.0
  %703 = vmatpush.msra.mxu0 0.0
  %704 = vmatpush.msra.mxu0 0.0
  %705 = vmatpush.msra.mxu0 0.0
  %706 = vmatpush.msra.mxu0 0.0
  %707 = vmatpush.msra.mxu0 0.0
  %708 = vmatpush.msra.mxu0 %v621
  %709 = vmatpush.msra.mxu0 %v586
  %710 = vmatmul.f32.gmra.mxu0 %v61
  %v711 = vpop.f32.mrf.mxu0
  %v712 = vadd.f32 0.0, %v711
  %713 = vmatmul.f32.gmra.mxu0 %v64
  %v714 = vpop.f32.mrf.mxu0
  %v715 = vadd.f32 0.0, %v714
  %716 = vmatmul.f32.gmra.mxu0 %v67
  %v717 = vpop.f32.mrf.mxu0
  %v718 = vadd.f32 0.0, %v717
  %719 = vmatmul.f32.gmra.mxu0 %v70
  %v720 = vpop.f32.mrf.mxu0
  %v721 = vadd.f32 0.0, %v720
  %722 = vdwg.mxu0
  %723 = vmatpush.msra.mxu0 0.0
  %724 = vmatpush.msra.mxu0 0.0
  %725 = vmatpush.msra.mxu0 0.0
  %726 = vmatpush.msra.mxu0 0.0
  %727 = vmatpush.msra.mxu0 0.0
  %728 = vmatpush.msra.mxu0 0.0
  %729 = vmatpush.msra.mxu0 0.0
  %730 = vmatpush.msra.mxu0 0.0
  %731 = vmatpush.msra.mxu0 0.0
  %732 = vmatpush.msra.mxu0 0.0
  %733 = vmatpush.msra.mxu0 0.0
  %734 = vmatpush.msra.mxu0 0.0
  %735 = vmatpush.msra.mxu0 0.0
  %736 = vmatpush.msra.mxu0 0.0
  %737 = vmatpush.msra.mxu0 %v624
  %738 = vmatpush.msra.mxu0 %v587
  %739 = vmatmul.f32.gmra.mxu0 %v61
  %v740 = vpop.f32.mrf.mxu0
  %v741 = vadd.f32 0.0, %v740
  %742 = vmatmul.f32.gmra.mxu0 %v64
  %v743 = vpop.f32.mrf.mxu0
  %v744 = vadd.f32 0.0, %v743
  %745 = vmatmul.f32.gmra.mxu0 %v67
  %v746 = vpop.f32.mrf.mxu0
  %v747 = vadd.f32 0.0, %v746
  %748 = vmatmul.f32.gmra.mxu0 %v70
  %v749 = vpop.f32.mrf.mxu0
  %v750 = vadd.f32 0.0, %v749
  %751 = vdwg.mxu0
  %752 = vmatpush.msra.mxu0 0.0
  %753 = vmatpush.msra.mxu0 0.0
  %754 = vmatpush.msra.mxu0 0.0
  %755 = vmatpush.msra.mxu0 0.0
  %756 = vmatpush.msra.mxu0 0.0
  %757 = vmatpush.msra.mxu0 0.0
  %758 = vmatpush.msra.mxu0 0.0
  %759 = vmatpush.msra.mxu0 0.0
  %760 = vmatpush.msra.mxu0 0.0
  %761 = vmatpush.msra.mxu0 0.0
  %762 = vmatpush.msra.mxu0 0.0
  %763 = vmatpush.msra.mxu0 0.0
  %764 = vmatpush.msra.mxu0 0.0
  %765 = vmatpush.msra.mxu0 0.0
  %766 = vmatpush.msra.mxu0 %v627
  %767 = vmatpush.msra.mxu0 %v588
  %768 = vmatmul.f32.gmra.mxu0 %v61
  %v769 = vpop.f32.mrf.mxu0
  %v770 = vadd.f32 0.0, %v769
  %771 = vmatmul.f32.gmra.mxu0 %v64
  %v772 = vpop.f32.mrf.mxu0
  %v773 = vadd.f32 0.0, %v772
  %774 = vmatmul.f32.gmra.mxu0 %v67
  %v775 = vpop.f32.mrf.mxu0
  %v776 = vadd.f32 0.0, %v775
  %777 = vmatmul.f32.gmra.mxu0 %v70
  %v778 = vpop.f32.mrf.mxu0
  %v779 = vadd.f32 0.0, %v778
  %780 = vdwg.mxu0
  %781 = vmatpush.msra.mxu0 0.0
  %782 = vmatpush.msra.mxu0 0.0
  %783 = vmatpush.msra.mxu0 0.0
  %784 = vmatpush.msra.mxu0 0.0
  %785 = vmatpush.msra.mxu0 0.0
  %786 = vmatpush.msra.mxu0 0.0
  %787 = vmatpush.msra.mxu0 0.0
  %788 = vmatpush.msra.mxu0 0.0
  %789 = vmatpush.msra.mxu0 0.0
  %790 = vmatpush.msra.mxu0 0.0
  %791 = vmatpush.msra.mxu0 0.0
  %792 = vmatpush.msra.mxu0 0.0
  %793 = vmatpush.msra.mxu0 0.0
  %794 = vmatpush.msra.mxu0 0.0
  %795 = vmatpush.msra.mxu0 %v630
  %796 = vmatpush.msra.mxu0 %v589
  %797 = vmatmul.f32.gmra.mxu0 %v61
  %v798 = vpop.f32.mrf.mxu0
  %v799 = vadd.f32 0.0, %v798
  %800 = vmatmul.f32.gmra.mxu0 %v64
  %v801 = vpop.f32.mrf.mxu0
  %v802 = vadd.f32 0.0, %v801
  %803 = vmatmul.f32.gmra.mxu0 %v67
  %v804 = vpop.f32.mrf.mxu0
  %v805 = vadd.f32 0.0, %v804
  %806 = vmatmul.f32.gmra.mxu0 %v70
  %v807 = vpop.f32.mrf.mxu0
  %v808 = vadd.f32 0.0, %v807
  %809 = vdwg.mxu0
  %810 = vmatpush.msra.mxu0 0.0
  %811 = vmatpush.msra.mxu0 0.0
  %812 = vmatpush.msra.mxu0 0.0
  %813 = vmatpush.msra.mxu0 0.0
  %814 = vmatpush.msra.mxu0 0.0
  %815 = vmatpush.msra.mxu0 0.0
  %816 = vmatpush.msra.mxu0 0.0
  %817 = vmatpush.msra.mxu0 0.0
  %818 = vmatpush.msra.mxu0 0.0
  %819 = vmatpush.msra.mxu0 0.0
  %820 = vmatpush.msra.mxu0 0.0
  %821 = vmatpush.msra.mxu0 0.0
  %822 = vmatpush.msra.mxu0 0.0
  %823 = vmatpush.msra.mxu0 0.0
  %824 = vmatpush.msra.mxu0 %v633
  %825 = vmatpush.msra.mxu0 %v590
  %826 = vmatmul.f32.gmra.mxu0 %v61
  %v827 = vpop.f32.mrf.mxu0
  %v828 = vadd.f32 0.0, %v827
  %829 = vmatmul.f32.gmra.mxu0 %v64
  %v830 = vpop.f32.mrf.mxu0
  %v831 = vadd.f32 0.0, %v830
  %832 = vmatmul.f32.gmra.mxu0 %v67
  %v833 = vpop.f32.mrf.mxu0
  %v834 = vadd.f32 0.0, %v833
  %835 = vmatmul.f32.gmra.mxu0 %v70
  %v836 = vpop.f32.mrf.mxu0
  %v837 = vadd.f32 0.0, %v836
  %838 = vdwg.mxu0
  %839 = vmatpush.msra.mxu0 0.0
  %840 = vmatpush.msra.mxu0 0.0
  %841 = vmatpush.msra.mxu0 0.0
  %842 = vmatpush.msra.mxu0 0.0
  %843 = vmatpush.msra.mxu0 0.0
  %844 = vmatpush.msra.mxu0 0.0
  %845 = vmatpush.msra.mxu0 0.0
  %846 = vmatpush.msra.mxu0 0.0
  %847 = vmatpush.msra.mxu0 0.0
  %848 = vmatpush.msra.mxu0 0.0
  %849 = vmatpush.msra.mxu0 0.0
  %850 = vmatpush.msra.mxu0 0.0
  %851 = vmatpush.msra.mxu0 0.0
  %852 = vmatpush.msra.mxu0 0.0
  %853 = vmatpush.msra.mxu0 %v636
  %854 = vmatpush.msra.mxu0 %v591
  %855 = vmatmul.f32.gmra.mxu0 %v61
  %v856 = vpop.f32.mrf.mxu0
  %v857 = vadd.f32 0.0, %v856
  %858 = vmatmul.f32.gmra.mxu0 %v64
  %v859 = vpop.f32.mrf.mxu0
  %v860 = vadd.f32 0.0, %v859
  %861 = vmatmul.f32.gmra.mxu0 %v67
  %v862 = vpop.f32.mrf.mxu0
  %v863 = vadd.f32 0.0, %v862
  %864 = vmatmul.f32.gmra.mxu0 %v70
  %v865 = vpop.f32.mrf.mxu0
  %v866 = vadd.f32 0.0, %v865
  %867 = vdwg.mxu0
  %868 = vmatpush.msra.mxu0 0.0
  %869 = vmatpush.msra.mxu0 0.0
  %870 = vmatpush.msra.mxu0 0.0
  %871 = vmatpush.msra.mxu0 0.0
  %872 = vmatpush.msra.mxu0 0.0
  %873 = vmatpush.msra.mxu0 0.0
  %874 = vmatpush.msra.mxu0 0.0
  %875 = vmatpush.msra.mxu0 0.0
  %876 = vmatpush.msra.mxu0 0.0
  %877 = vmatpush.msra.mxu0 0.0
  %878 = vmatpush.msra.mxu0 0.0
  %879 = vmatpush.msra.mxu0 0.0
  %880 = vmatpush.msra.mxu0 0.0
  %881 = vmatpush.msra.mxu0 0.0
  %882 = vmatpush.msra.mxu0 %v639
  %883 = vmatpush.msra.mxu0 %v592
  %884 = vmatmul.f32.gmra.mxu0 %v61
  %v885 = vpop.f32.mrf.mxu0
  %v886 = vadd.f32 0.0, %v885
  %887 = vmatmul.f32.gmra.mxu0 %v64
  %v888 = vpop.f32.mrf.mxu0
  %v889 = vadd.f32 0.0, %v888
  %890 = vmatmul.f32.gmra.mxu0 %v67
  %v891 = vpop.f32.mrf.mxu0
  %v892 = vadd.f32 0.0, %v891
  %893 = vmatmul.f32.gmra.mxu0 %v70
  %v894 = vpop.f32.mrf.mxu0
  %v895 = vadd.f32 0.0, %v894
  %896 = vdwg.mxu0
  %897 = vmatpush.msra.mxu0 0.0
  %898 = vmatpush.msra.mxu0 0.0
  %899 = vmatpush.msra.mxu0 0.0
  %900 = vmatpush.msra.mxu0 0.0
  %901 = vmatpush.msra.mxu0 0.0
  %902 = vmatpush.msra.mxu0 0.0
  %903 = vmatpush.msra.mxu0 0.0
  %904 = vmatpush.msra.mxu0 0.0
  %905 = vmatpush.msra.mxu0 0.0
  %906 = vmatpush.msra.mxu0 0.0
  %907 = vmatpush.msra.mxu0 0.0
  %908 = vmatpush.msra.mxu0 0.0
  %909 = vmatpush.msra.mxu0 0.0
  %910 = vmatpush.msra.mxu0 0.0
  %911 = vmatpush.msra.mxu0 %v642
  %912 = vmatpush.msra.mxu0 %v593
  %913 = vmatmul.f32.gmra.mxu0 %v61
  %v914 = vpop.f32.mrf.mxu0
  %v915 = vadd.f32 0.0, %v914
  %916 = vmatmul.f32.gmra.mxu0 %v64
  %v917 = vpop.f32.mrf.mxu0
  %v918 = vadd.f32 0.0, %v917
  %919 = vmatmul.f32.gmra.mxu0 %v67
  %v920 = vpop.f32.mrf.mxu0
  %v921 = vadd.f32 0.0, %v920
  %922 = vmatmul.f32.gmra.mxu0 %v70
  %v923 = vpop.f32.mrf.mxu0
  %v924 = vadd.f32 0.0, %v923
  %925 = vdwg.mxu0
  %926 = vmatpush.msra.mxu0 0.0
  %927 = vmatpush.msra.mxu0 0.0
  %928 = vmatpush.msra.mxu0 0.0
  %929 = vmatpush.msra.mxu0 0.0
  %930 = vmatpush.msra.mxu0 0.0
  %931 = vmatpush.msra.mxu0 0.0
  %932 = vmatpush.msra.mxu0 0.0
  %933 = vmatpush.msra.mxu0 0.0
  %934 = vmatpush.msra.mxu0 0.0
  %935 = vmatpush.msra.mxu0 0.0
  %936 = vmatpush.msra.mxu0 0.0
  %937 = vmatpush.msra.mxu0 0.0
  %938 = vmatpush.msra.mxu0 0.0
  %939 = vmatpush.msra.mxu0 0.0
  %940 = vmatpush.msra.mxu0 %v645
  %941 = vmatpush.msra.mxu0 %v594
  %942 = vmatmul.f32.gmra.mxu0 %v61
  %v943 = vpop.f32.mrf.mxu0
  %v944 = vadd.f32 0.0, %v943
  %945 = vmatmul.f32.gmra.mxu0 %v64
  %v946 = vpop.f32.mrf.mxu0
  %v947 = vadd.f32 0.0, %v946
  %948 = vmatmul.f32.gmra.mxu0 %v67
  %v949 = vpop.f32.mrf.mxu0
  %v950 = vadd.f32 0.0, %v949
  %951 = vmatmul.f32.gmra.mxu0 %v70
  %v952 = vpop.f32.mrf.mxu0
  %v953 = vadd.f32 0.0, %v952
  %954 = vdwg.mxu0
  %955 = vmatpush.msra.mxu0 0.0
  %956 = vmatpush.msra.mxu0 0.0
  %957 = vmatpush.msra.mxu0 0.0
  %958 = vmatpush.msra.mxu0 0.0
  %959 = vmatpush.msra.mxu0 0.0
  %960 = vmatpush.msra.mxu0 0.0
  %961 = vmatpush.msra.mxu0 0.0
  %962 = vmatpush.msra.mxu0 0.0
  %963 = vmatpush.msra.mxu0 0.0
  %964 = vmatpush.msra.mxu0 0.0
  %965 = vmatpush.msra.mxu0 0.0
  %966 = vmatpush.msra.mxu0 0.0
  %967 = vmatpush.msra.mxu0 0.0
  %968 = vmatpush.msra.mxu0 0.0
  %969 = vmatpush.msra.mxu0 %v648
  %970 = vmatpush.msra.mxu0 %v595
  %971 = vmatmul.f32.gmra.mxu0 %v61
  %v972 = vpop.f32.mrf.mxu0
  %v973 = vadd.f32 0.0, %v972
  %974 = vmatmul.f32.gmra.mxu0 %v64
  %v975 = vpop.f32.mrf.mxu0
  %v976 = vadd.f32 0.0, %v975
  %977 = vmatmul.f32.gmra.mxu0 %v67
  %v978 = vpop.f32.mrf.mxu0
  %v979 = vadd.f32 0.0, %v978
  %980 = vmatmul.f32.gmra.mxu0 %v70
  %v981 = vpop.f32.mrf.mxu0
  %v982 = vadd.f32 0.0, %v981
  %983 = vdwg.mxu0
  %984 = vmatpush.msra.mxu0 0.0
  %985 = vmatpush.msra.mxu0 0.0
  %986 = vmatpush.msra.mxu0 0.0
  %987 = vmatpush.msra.mxu0 0.0
  %988 = vmatpush.msra.mxu0 0.0
  %989 = vmatpush.msra.mxu0 0.0
  %990 = vmatpush.msra.mxu0 0.0
  %991 = vmatpush.msra.mxu0 0.0
  %992 = vmatpush.msra.mxu0 0.0
  %993 = vmatpush.msra.mxu0 0.0
  %994 = vmatpush.msra.mxu0 0.0
  %995 = vmatpush.msra.mxu0 0.0
  %996 = vmatpush.msra.mxu0 0.0
  %997 = vmatpush.msra.mxu0 0.0
  %998 = vmatpush.msra.mxu0 %v651
  %999 = vmatpush.msra.mxu0 %v596
  %1000 = vmatmul.f32.gmra.mxu0 %v61
  %v1001 = vpop.f32.mrf.mxu0
  %v1002 = vadd.f32 0.0, %v1001
  %1003 = vmatmul.f32.gmra.mxu0 %v64
  %v1004 = vpop.f32.mrf.mxu0
  %v1005 = vadd.f32 0.0, %v1004
  %1006 = vmatmul.f32.gmra.mxu0 %v67
  %v1007 = vpop.f32.mrf.mxu0
  %v1008 = vadd.f32 0.0, %v1007
  %1009 = vmatmul.f32.gmra.mxu0 %v70
  %v1010 = vpop.f32.mrf.mxu0
  %v1011 = vadd.f32 0.0, %v1010
  %1012 = vdwg.mxu0
  %1013 = vmatpush.msra.mxu0 0.0
  %1014 = vmatpush.msra.mxu0 0.0
  %1015 = vmatpush.msra.mxu0 0.0
  %1016 = vmatpush.msra.mxu0 0.0
  %1017 = vmatpush.msra.mxu0 0.0
  %1018 = vmatpush.msra.mxu0 0.0
  %1019 = vmatpush.msra.mxu0 0.0
  %1020 = vmatpush.msra.mxu0 0.0
  %1021 = vmatpush.msra.mxu0 0.0
  %1022 = vmatpush.msra.mxu0 0.0
  %1023 = vmatpush.msra.mxu0 0.0
  %1024 = vmatpush.msra.mxu0 0.0
  %1025 = vmatpush.msra.mxu0 0.0
  %1026 = vmatpush.msra.mxu0 0.0
  %1027 = vmatpush.msra.mxu0 %v654
  %1028 = vmatpush.msra.mxu0 %v597
  %1029 = vmatmul.f32.gmra.mxu0 %v61
  %v1030 = vpop.f32.mrf.mxu0
  %v1031 = vadd.f32 0.0, %v1030
  %1032 = vmatmul.f32.gmra.mxu0 %v64
  %v1033 = vpop.f32.mrf.mxu0
  %v1034 = vadd.f32 0.0, %v1033
  %1035 = vmatmul.f32.gmra.mxu0 %v67
  %v1036 = vpop.f32.mrf.mxu0
  %v1037 = vadd.f32 0.0, %v1036
  %1038 = vmatmul.f32.gmra.mxu0 %v70
  %v1039 = vpop.f32.mrf.mxu0
  %v1040 = vadd.f32 0.0, %v1039
  %1041 = vdwg.mxu0
  %1042 = vmatpush.msra.mxu0 0.0
  %1043 = vmatpush.msra.mxu0 0.0
  %1044 = vmatpush.msra.mxu0 0.0
  %1045 = vmatpush.msra.mxu0 0.0
  %1046 = vmatpush.msra.mxu0 0.0
  %1047 = vmatpush.msra.mxu0 0.0
  %1048 = vmatpush.msra.mxu0 0.0
  %1049 = vmatpush.msra.mxu0 0.0
  %1050 = vmatpush.msra.mxu0 0.0
  %1051 = vmatpush.msra.mxu0 0.0
  %1052 = vmatpush.msra.mxu0 0.0
  %1053 = vmatpush.msra.mxu0 0.0
  %1054 = vmatpush.msra.mxu0 0.0
  %1055 = vmatpush.msra.mxu0 0.0
  %1056 = vmatpush.msra.mxu0 %v657
  %1057 = vmatpush.msra.mxu0 %v598
  %1058 = vmatmul.f32.gmra.mxu0 %v61
  %v1059 = vpop.f32.mrf.mxu0
  %v1060 = vadd.f32 0.0, %v1059
  %1061 = vmatmul.f32.gmra.mxu0 %v64
  %v1062 = vpop.f32.mrf.mxu0
  %v1063 = vadd.f32 0.0, %v1062
  %1064 = vmatmul.f32.gmra.mxu0 %v67
  %v1065 = vpop.f32.mrf.mxu0
  %v1066 = vadd.f32 0.0, %v1065
  %1067 = vmatmul.f32.gmra.mxu0 %v70
  %v1068 = vpop.f32.mrf.mxu0
  %v1069 = vadd.f32 0.0, %v1068
  %1070 = vdwg.mxu0
  %1071 = vmatpush.msra.mxu0 0.0
  %1072 = vmatpush.msra.mxu0 0.0
  %1073 = vmatpush.msra.mxu0 0.0
  %1074 = vmatpush.msra.mxu0 0.0
  %1075 = vmatpush.msra.mxu0 0.0
  %1076 = vmatpush.msra.mxu0 0.0
  %1077 = vmatpush.msra.mxu0 0.0
  %1078 = vmatpush.msra.mxu0 0.0
  %1079 = vmatpush.msra.mxu0 0.0
  %1080 = vmatpush.msra.mxu0 0.0
  %1081 = vmatpush.msra.mxu0 0.0
  %1082 = vmatpush.msra.mxu0 0.0
  %1083 = vmatpush.msra.mxu0 0.0
  %1084 = vmatpush.msra.mxu0 0.0
  %1085 = vmatpush.msra.mxu0 %v660
  %1086 = vmatpush.msra.mxu0 %v599
  %1087 = vmatmul.f32.gmra.mxu0 %v61
  %v1088 = vpop.f32.mrf.mxu0
  %v1089 = vadd.f32 0.0, %v1088
  %1090 = vmatmul.f32.gmra.mxu0 %v64
  %v1091 = vpop.f32.mrf.mxu0
  %v1092 = vadd.f32 0.0, %v1091
  %1093 = vmatmul.f32.gmra.mxu0 %v67
  %v1094 = vpop.f32.mrf.mxu0
  %v1095 = vadd.f32 0.0, %v1094
  %1096 = vmatmul.f32.gmra.mxu0 %v70
  %v1097 = vpop.f32.mrf.mxu0
  %v1098 = vadd.f32 0.0, %v1097
  %1099 = vdwg.mxu0
  %1100 = vmatpush.msra.mxu0 0.0
  %1101 = vmatpush.msra.mxu0 0.0
  %1102 = vmatpush.msra.mxu0 0.0
  %1103 = vmatpush.msra.mxu0 0.0
  %1104 = vmatpush.msra.mxu0 0.0
  %1105 = vmatpush.msra.mxu0 0.0
  %1106 = vmatpush.msra.mxu0 0.0
  %1107 = vmatpush.msra.mxu0 0.0
  %1108 = vmatpush.msra.mxu0 0.0
  %1109 = vmatpush.msra.mxu0 0.0
  %1110 = vmatpush.msra.mxu0 0.0
  %1111 = vmatpush.msra.mxu0 0.0
  %1112 = vmatpush.msra.mxu0 0.0
  %1113 = vmatpush.msra.mxu0 0.0
  %1114 = vmatpush.msra.mxu0 %v663
  %1115 = vmatpush.msra.mxu0 %v600
  %1116 = vmatmul.f32.gmra.mxu0 %v61
  %v1117 = vpop.f32.mrf.mxu0
  %v1118 = vadd.f32 0.0, %v1117
  %1119 = vmatmul.f32.gmra.mxu0 %v64
  %v1120 = vpop.f32.mrf.mxu0
  %v1121 = vadd.f32 0.0, %v1120
  %1122 = vmatmul.f32.gmra.mxu0 %v67
  %v1123 = vpop.f32.mrf.mxu0
  %v1124 = vadd.f32 0.0, %v1123
  %1125 = vmatmul.f32.gmra.mxu0 %v70
  %v1126 = vpop.f32.mrf.mxu0
  %v1127 = vadd.f32 0.0, %v1126
  %1128 = vdwg.mxu0
  %v1129 = vmax.f32 %v139, %v683
  %v1130 = vmax.f32 %v168, %v712
  %v1131 = vmax.f32 %v197, %v741
  %v1132 = vmax.f32 %v226, %v770
  %v1133 = vmax.f32 %v255, %v799
  %v1134 = vmax.f32 %v284, %v828
  %v1135 = vmax.f32 %v313, %v857
  %v1136 = vmax.f32 %v342, %v886
  %v1137 = vmax.f32 %v371, %v915
  %v1138 = vmax.f32 %v400, %v944
  %v1139 = vmax.f32 %v429, %v973
  %v1140 = vmax.f32 %v458, %v1002
  %v1141 = vmax.f32 %v487, %v1031
  %v1142 = vmax.f32 %v516, %v1060
  %v1143 = vmax.f32 %v545, %v1089
  %v1144 = vmax.f32 %v574, %v1118
  %v1145 = vmax.f32 %v142, %v686
  %v1146 = vmax.f32 %v171, %v715
  %v1147 = vmax.f32 %v200, %v744
  %v1148 = vmax.f32 %v229, %v773
  %v1149 = vmax.f32 %v258, %v802
  %v1150 = vmax.f32 %v287, %v831
  %v1151 = vmax.f32 %v316, %v860
  %v1152 = vmax.f32 %v345, %v889
  %v1153 = vmax.f32 %v374, %v918
  %v1154 = vmax.f32 %v403, %v947
  %v1155 = vmax.f32 %v432, %v976
  %v1156 = vmax.f32 %v461, %v1005
  %v1157 = vmax.f32 %v490, %v1034
  %v1158 = vmax.f32 %v519, %v1063
  %v1159 = vmax.f32 %v548, %v1092
  %v1160 = vmax.f32 %v577, %v1121
  %v1161 = vmax.f32 %v145, %v689
  %v1162 = vmax.f32 %v174, %v718
  %v1163 = vmax.f32 %v203, %v747
  %v1164 = vmax.f32 %v232, %v776
  %v1165 = vmax.f32 %v261, %v805
  %v1166 = vmax.f32 %v290, %v834
  %v1167 = vmax.f32 %v319, %v863
  %v1168 = vmax.f32 %v348, %v892
  %v1169 = vmax.f32 %v377, %v921
  %v1170 = vmax.f32 %v406, %v950
  %v1171 = vmax.f32 %v435, %v979
  %v1172 = vmax.f32 %v464, %v1008
  %v1173 = vmax.f32 %v493, %v1037
  %v1174 = vmax.f32 %v522, %v1066
  %v1175 = vmax.f32 %v551, %v1095
  %v1176 = vmax.f32 %v580, %v1124
  %v1177 = vmax.f32 %v148, %v692
  %v1178 = vmax.f32 %v177, %v721
  %v1179 = vmax.f32 %v206, %v750
  %v1180 = vmax.f32 %v235, %v779
  %v1181 = vmax.f32 %v264, %v808
  %v1182 = vmax.f32 %v293, %v837
  %v1183 = vmax.f32 %v322, %v866
  %v1184 = vmax.f32 %v351, %v895
  %v1185 = vmax.f32 %v380, %v924
  %v1186 = vmax.f32 %v409, %v953
  %v1187 = vmax.f32 %v438, %v982
  %v1188 = vmax.f32 %v467, %v1011
  %v1189 = vmax.f32 %v496, %v1040
  %v1190 = vmax.f32 %v525, %v1069
  %v1191 = vmax.f32 %v554, %v1098
  %v1192 = vmax.f32 %v583, %v1127
  %v1193 = vld [vmem:[%s3] sm:$0xff]
  %v1194 = vld [vmem:[%s3 + $0x8] sm:$0xff]
  %v1195 = vld [vmem:[%s3 + $0x10] sm:$0xff]
  %v1196 = vld [vmem:[%s3 + $0x18] sm:$0xff]
  %1198 = vset.pattern.permute.xlu0 0
  %1199 = vperm.xlu0 %1198, %v1193
  %v1200 = vpop.permute.xlu0 %1199
  %1203 = vset.pattern.permute.xlu0 0
  %1204 = vperm.xlu0 %1203, %v1194
  %v1205 = vpop.permute.xlu0 %1204
  %1208 = vset.pattern.permute.xlu0 0
  %1209 = vperm.xlu0 %1208, %v1195
  %v1210 = vpop.permute.xlu0 %1209
  %1213 = vset.pattern.permute.xlu0 0
  %1214 = vperm.xlu0 %1213, %v1196
  %v1215 = vpop.permute.xlu0 %1214
  %v1217 = vadd.f32 %v1129, %v1200
  %v1218 = vadd.f32 %v1130, %v1200
  %v1219 = vadd.f32 %v1131, %v1200
  %v1220 = vadd.f32 %v1132, %v1200
  %v1221 = vadd.f32 %v1133, %v1200
  %v1222 = vadd.f32 %v1134, %v1200
  %v1223 = vadd.f32 %v1135, %v1200
  %v1224 = vadd.f32 %v1136, %v1200
  %v1225 = vadd.f32 %v1137, %v1200
  %v1226 = vadd.f32 %v1138, %v1200
  %v1227 = vadd.f32 %v1139, %v1200
  %v1228 = vadd.f32 %v1140, %v1200
  %v1229 = vadd.f32 %v1141, %v1200
  %v1230 = vadd.f32 %v1142, %v1200
  %v1231 = vadd.f32 %v1143, %v1200
  %v1232 = vadd.f32 %v1144, %v1200
  %v1233 = vadd.f32 %v1145, %v1205
  %v1234 = vadd.f32 %v1146, %v1205
  %v1235 = vadd.f32 %v1147, %v1205
  %v1236 = vadd.f32 %v1148, %v1205
  %v1237 = vadd.f32 %v1149, %v1205
  %v1238 = vadd.f32 %v1150, %v1205
  %v1239 = vadd.f32 %v1151, %v1205
  %v1240 = vadd.f32 %v1152, %v1205
  %v1241 = vadd.f32 %v1153, %v1205
  %v1242 = vadd.f32 %v1154, %v1205
  %v1243 = vadd.f32 %v1155, %v1205
  %v1244 = vadd.f32 %v1156, %v1205
  %v1245 = vadd.f32 %v1157, %v1205
  %v1246 = vadd.f32 %v1158, %v1205
  %v1247 = vadd.f32 %v1159, %v1205
  %v1248 = vadd.f32 %v1160, %v1205
  %v1249 = vadd.f32 %v1161, %v1210
  %v1250 = vadd.f32 %v1162, %v1210
  %v1251 = vadd.f32 %v1163, %v1210
  %v1252 = vadd.f32 %v1164, %v1210
  %v1253 = vadd.f32 %v1165, %v1210
  %v1254 = vadd.f32 %v1166, %v1210
  %v1255 = vadd.f32 %v1167, %v1210
  %v1256 = vadd.f32 %v1168, %v1210
  %v1257 = vadd.f32 %v1169, %v1210
  %v1258 = vadd.f32 %v1170, %v1210
  %v1259 = vadd.f32 %v1171, %v1210
  %v1260 = vadd.f32 %v1172, %v1210
  %v1261 = vadd.f32 %v1173, %v1210
  %v1262 = vadd.f32 %v1174, %v1210
  %v1263 = vadd.f32 %v1175, %v1210
  %v1264 = vadd.f32 %v1176, %v1210
  %v1265 = vadd.f32 %v1177, %v1215
  %v1266 = vadd.f32 %v1178, %v1215
  %v1267 = vadd.f32 %v1179, %v1215
  %v1268 = vadd.f32 %v1180, %v1215
  %v1269 = vadd.f32 %v1181, %v1215
  %v1270 = vadd.f32 %v1182, %v1215
  %v1271 = vadd.f32 %v1183, %v1215
  %v1272 = vadd.f32 %v1184, %v1215
  %v1273 = vadd.f32 %v1185, %v1215
  %v1274 = vadd.f32 %v1186, %v1215
  %v1275 = vadd.f32 %v1187, %v1215
  %v1276 = vadd.f32 %v1188, %v1215
  %v1277 = vadd.f32 %v1189, %v1215
  %v1278 = vadd.f32 %v1190, %v1215
  %v1279 = vadd.f32 %v1191, %v1215
  %v1280 = vadd.f32 %v1192, %v1215
  %v1281 = vmax.f32 %v1217, 0.0
  %v1282 = vmax.f32 %v1218, 0.0
  %v1283 = vmax.f32 %v1219, 0.0
  %v1284 = vmax.f32 %v1220, 0.0
  %v1285 = vmax.f32 %v1221, 0.0
  %v1286 = vmax.f32 %v1222, 0.0
  %v1287 = vmax.f32 %v1223, 0.0
  %v1288 = vmax.f32 %v1224, 0.0
  %v1289 = vmax.f32 %v1225, 0.0
  %v1290 = vmax.f32 %v1226, 0.0
  %v1291 = vmax.f32 %v1227, 0.0
  %v1292 = vmax.f32 %v1228, 0.0
  %v1293 = vmax.f32 %v1229, 0.0
  %v1294 = vmax.f32 %v1230, 0.0
  %v1295 = vmax.f32 %v1231, 0.0
  %v1296 = vmax.f32 %v1232, 0.0
  %v1297 = vmax.f32 %v1233, 0.0
  %v1298 = vmax.f32 %v1234, 0.0
  %v1299 = vmax.f32 %v1235, 0.0
  %v1300 = vmax.f32 %v1236, 0.0
  %v1301 = vmax.f32 %v1237, 0.0
  %v1302 = vmax.f32 %v1238, 0.0
  %v1303 = vmax.f32 %v1239, 0.0
  %v1304 = vmax.f32 %v1240, 0.0
  %v1305 = vmax.f32 %v1241, 0.0
  %v1306 = vmax.f32 %v1242, 0.0
  %v1307 = vmax.f32 %v1243, 0.0
  %v1308 = vmax.f32 %v1244, 0.0
  %v1309 = vmax.f32 %v1245, 0.0
  %v1310 = vmax.f32 %v1246, 0.0
  %v1311 = vmax.f32 %v1247, 0.0
  %v1312 = vmax.f32 %v1248, 0.0
  %v1313 = vmax.f32 %v1249, 0.0
  %v1314 = vmax.f32 %v1250, 0.0
  %v1315 = vmax.f32 %v1251, 0.0
  %v1316 = vmax.f32 %v1252, 0.0
  %v1317 = vmax.f32 %v1253, 0.0
  %v1318 = vmax.f32 %v1254, 0.0
  %v1319 = vmax.f32 %v1255, 0.0
  %v1320 = vmax.f32 %v1256, 0.0
  %v1321 = vmax.f32 %v1257, 0.0
  %v1322 = vmax.f32 %v1258, 0.0
  %v1323 = vmax.f32 %v1259, 0.0
  %v1324 = vmax.f32 %v1260, 0.0
  %v1325 = vmax.f32 %v1261, 0.0
  %v1326 = vmax.f32 %v1262, 0.0
  %v1327 = vmax.f32 %v1263, 0.0
  %v1328 = vmax.f32 %v1264, 0.0
  %v1329 = vmax.f32 %v1265, 0.0
  %v1330 = vmax.f32 %v1266, 0.0
  %v1331 = vmax.f32 %v1267, 0.0
  %v1332 = vmax.f32 %v1268, 0.0
  %v1333 = vmax.f32 %v1269, 0.0
  %v1334 = vmax.f32 %v1270, 0.0
  %v1335 = vmax.f32 %v1271, 0.0
  %v1336 = vmax.f32 %v1272, 0.0
  %v1337 = vmax.f32 %v1273, 0.0
  %v1338 = vmax.f32 %v1274, 0.0
  %v1339 = vmax.f32 %v1275, 0.0
  %v1340 = vmax.f32 %v1276, 0.0
  %v1341 = vmax.f32 %v1277, 0.0
  %v1342 = vmax.f32 %v1278, 0.0
  %v1343 = vmax.f32 %v1279, 0.0
  %v1344 = vmax.f32 %v1280, 0.0
  %1409 = vrot.lane.b32.xlu0 %v1281, 127
  %v1410 = vpop.permute.xlu0 %1409
  %1411 = vrot.lane.b32.xlu0 %v1282, 127
  %v1412 = vpop.permute.xlu0 %1411
  %1413 = vrot.lane.b32.xlu0 %v1283, 127
  %v1414 = vpop.permute.xlu0 %1413
  %1415 = vrot.lane.b32.xlu0 %v1284, 127
  %v1416 = vpop.permute.xlu0 %1415
  %1417 = vrot.lane.b32.xlu0 %v1285, 127
  %v1418 = vpop.permute.xlu0 %1417
  %1419 = vrot.lane.b32.xlu0 %v1286, 127
  %v1420 = vpop.permute.xlu0 %1419
  %1421 = vrot.lane.b32.xlu0 %v1287, 127
  %v1422 = vpop.permute.xlu0 %1421
  %1423 = vrot.lane.b32.xlu0 %v1288, 127
  %v1424 = vpop.permute.xlu0 %1423
  %1425 = vrot.lane.b32.xlu0 %v1289, 127
  %v1426 = vpop.permute.xlu0 %1425
  %1427 = vrot.lane.b32.xlu0 %v1290, 127
  %v1428 = vpop.permute.xlu0 %1427
  %1429 = vrot.lane.b32.xlu0 %v1291, 127
  %v1430 = vpop.permute.xlu0 %1429
  %1431 = vrot.lane.b32.xlu0 %v1292, 127
  %v1432 = vpop.permute.xlu0 %1431
  %1433 = vrot.lane.b32.xlu0 %v1293, 127
  %v1434 = vpop.permute.xlu0 %1433
  %1435 = vrot.lane.b32.xlu0 %v1294, 127
  %v1436 = vpop.permute.xlu0 %1435
  %1437 = vrot.lane.b32.xlu0 %v1295, 127
  %v1438 = vpop.permute.xlu0 %1437
  %1439 = vrot.lane.b32.xlu0 %v1296, 127
  %v1440 = vpop.permute.xlu0 %1439
  %1441 = vrot.lane.b32.xlu0 %v1297, 127
  %v1442 = vpop.permute.xlu0 %1441
  %1443 = vrot.lane.b32.xlu0 %v1298, 127
  %v1444 = vpop.permute.xlu0 %1443
  %1445 = vrot.lane.b32.xlu0 %v1299, 127
  %v1446 = vpop.permute.xlu0 %1445
  %1447 = vrot.lane.b32.xlu0 %v1300, 127
  %v1448 = vpop.permute.xlu0 %1447
  %1449 = vrot.lane.b32.xlu0 %v1301, 127
  %v1450 = vpop.permute.xlu0 %1449
  %1451 = vrot.lane.b32.xlu0 %v1302, 127
  %v1452 = vpop.permute.xlu0 %1451
  %1453 = vrot.lane.b32.xlu0 %v1303, 127
  %v1454 = vpop.permute.xlu0 %1453
  %1455 = vrot.lane.b32.xlu0 %v1304, 127
  %v1456 = vpop.permute.xlu0 %1455
  %1457 = vrot.lane.b32.xlu0 %v1305, 127
  %v1458 = vpop.permute.xlu0 %1457
  %1459 = vrot.lane.b32.xlu0 %v1306, 127
  %v1460 = vpop.permute.xlu0 %1459
  %1461 = vrot.lane.b32.xlu0 %v1307, 127
  %v1462 = vpop.permute.xlu0 %1461
  %1463 = vrot.lane.b32.xlu0 %v1308, 127
  %v1464 = vpop.permute.xlu0 %1463
  %1465 = vrot.lane.b32.xlu0 %v1309, 127
  %v1466 = vpop.permute.xlu0 %1465
  %1467 = vrot.lane.b32.xlu0 %v1310, 127
  %v1468 = vpop.permute.xlu0 %1467
  %1469 = vrot.lane.b32.xlu0 %v1311, 127
  %v1470 = vpop.permute.xlu0 %1469
  %1471 = vrot.lane.b32.xlu0 %v1312, 127
  %v1472 = vpop.permute.xlu0 %1471
  %1473 = vrot.lane.b32.xlu0 %v1313, 127
  %v1474 = vpop.permute.xlu0 %1473
  %1475 = vrot.lane.b32.xlu0 %v1314, 127
  %v1476 = vpop.permute.xlu0 %1475
  %1477 = vrot.lane.b32.xlu0 %v1315, 127
  %v1478 = vpop.permute.xlu0 %1477
  %1479 = vrot.lane.b32.xlu0 %v1316, 127
  %v1480 = vpop.permute.xlu0 %1479
  %1481 = vrot.lane.b32.xlu0 %v1317, 127
  %v1482 = vpop.permute.xlu0 %1481
  %1483 = vrot.lane.b32.xlu0 %v1318, 127
  %v1484 = vpop.permute.xlu0 %1483
  %1485 = vrot.lane.b32.xlu0 %v1319, 127
  %v1486 = vpop.permute.xlu0 %1485
  %1487 = vrot.lane.b32.xlu0 %v1320, 127
  %v1488 = vpop.permute.xlu0 %1487
  %1489 = vrot.lane.b32.xlu0 %v1321, 127
  %v1490 = vpop.permute.xlu0 %1489
  %1491 = vrot.lane.b32.xlu0 %v1322, 127
  %v1492 = vpop.permute.xlu0 %1491
  %1493 = vrot.lane.b32.xlu0 %v1323, 127
  %v1494 = vpop.permute.xlu0 %1493
  %1495 = vrot.lane.b32.xlu0 %v1324, 127
  %v1496 = vpop.permute.xlu0 %1495
  %1497 = vrot.lane.b32.xlu0 %v1325, 127
  %v1498 = vpop.permute.xlu0 %1497
  %1499 = vrot.lane.b32.xlu0 %v1326, 127
  %v1500 = vpop.permute.xlu0 %1499
  %1501 = vrot.lane.b32.xlu0 %v1327, 127
  %v1502 = vpop.permute.xlu0 %1501
  %1503 = vrot.lane.b32.xlu0 %v1328, 127
  %v1504 = vpop.permute.xlu0 %1503
  %1505 = vrot.lane.b32.xlu0 %v1329, 127
  %v1506 = vpop.permute.xlu0 %1505
  %1507 = vrot.lane.b32.xlu0 %v1330, 127
  %v1508 = vpop.permute.xlu0 %1507
  %1509 = vrot.lane.b32.xlu0 %v1331, 127
  %v1510 = vpop.permute.xlu0 %1509
  %1511 = vrot.lane.b32.xlu0 %v1332, 127
  %v1512 = vpop.permute.xlu0 %1511
  %1513 = vrot.lane.b32.xlu0 %v1333, 127
  %v1514 = vpop.permute.xlu0 %1513
  %1515 = vrot.lane.b32.xlu0 %v1334, 127
  %v1516 = vpop.permute.xlu0 %1515
  %1517 = vrot.lane.b32.xlu0 %v1335, 127
  %v1518 = vpop.permute.xlu0 %1517
  %1519 = vrot.lane.b32.xlu0 %v1336, 127
  %v1520 = vpop.permute.xlu0 %1519
  %1521 = vrot.lane.b32.xlu0 %v1337, 127
  %v1522 = vpop.permute.xlu0 %1521
  %1523 = vrot.lane.b32.xlu0 %v1338, 127
  %v1524 = vpop.permute.xlu0 %1523
  %1525 = vrot.lane.b32.xlu0 %v1339, 127
  %v1526 = vpop.permute.xlu0 %1525
  %1527 = vrot.lane.b32.xlu0 %v1340, 127
  %v1528 = vpop.permute.xlu0 %1527
  %1529 = vrot.lane.b32.xlu0 %v1341, 127
  %v1530 = vpop.permute.xlu0 %1529
  %1531 = vrot.lane.b32.xlu0 %v1342, 127
  %v1532 = vpop.permute.xlu0 %1531
  %1533 = vrot.lane.b32.xlu0 %v1343, 127
  %v1534 = vpop.permute.xlu0 %1533
  %1535 = vrot.lane.b32.xlu0 %v1344, 127
  %v1536 = vpop.permute.xlu0 %1535
  %vm1537 = vcmask 1039360
  %v1538 = vsel %vm1537, %v1410, %v1412
  %v1539 = vsel %vm1537, %v1412, %v1414
  %v1540 = vsel %vm1537, %v1414, %v1416
  %v1541 = vsel %vm1537, %v1416, %v1418
  %v1542 = vsel %vm1537, %v1418, %v1420
  %v1543 = vsel %vm1537, %v1420, %v1422
  %v1544 = vsel %vm1537, %v1422, %v1424
  %v1545 = vsel %vm1537, %v1424, %v1426
  %v1546 = vsel %vm1537, %v1426, %v1428
  %v1547 = vsel %vm1537, %v1428, %v1430
  %v1548 = vsel %vm1537, %v1430, %v1432
  %v1549 = vsel %vm1537, %v1432, %v1434
  %v1550 = vsel %vm1537, %v1434, %v1436
  %v1551 = vsel %vm1537, %v1436, %v1438
  %v1552 = vsel %vm1537, %v1438, %v1440
  %v1553 = vsel %vm1537, %v1442, %v1444
  %v1554 = vsel %vm1537, %v1444, %v1446
  %v1555 = vsel %vm1537, %v1446, %v1448
  %v1556 = vsel %vm1537, %v1448, %v1450
  %v1557 = vsel %vm1537, %v1450, %v1452
  %v1558 = vsel %vm1537, %v1452, %v1454
  %v1559 = vsel %vm1537, %v1454, %v1456
  %v1560 = vsel %vm1537, %v1456, %v1458
  %v1561 = vsel %vm1537, %v1458, %v1460
  %v1562 = vsel %vm1537, %v1460, %v1462
  %v1563 = vsel %vm1537, %v1462, %v1464
  %v1564 = vsel %vm1537, %v1464, %v1466
  %v1565 = vsel %vm1537, %v1466, %v1468
  %v1566 = vsel %vm1537, %v1468, %v1470
  %v1567 = vsel %vm1537, %v1470, %v1472
  %v1568 = vsel %vm1537, %v1474, %v1476
  %v1569 = vsel %vm1537, %v1476, %v1478
  %v1570 = vsel %vm1537, %v1478, %v1480
  %v1571 = vsel %vm1537, %v1480, %v1482
  %v1572 = vsel %vm1537, %v1482, %v1484
  %v1573 = vsel %vm1537, %v1484, %v1486
  %v1574 = vsel %vm1537, %v1486, %v1488
  %v1575 = vsel %vm1537, %v1488, %v1490
  %v1576 = vsel %vm1537, %v1490, %v1492
  %v1577 = vsel %vm1537, %v1492, %v1494
  %v1578 = vsel %vm1537, %v1494, %v1496
  %v1579 = vsel %vm1537, %v1496, %v1498
  %v1580 = vsel %vm1537, %v1498, %v1500
  %v1581 = vsel %vm1537, %v1500, %v1502
  %v1582 = vsel %vm1537, %v1502, %v1504
  %v1583 = vsel %vm1537, %v1506, %v1508
  %v1584 = vsel %vm1537, %v1508, %v1510
  %v1585 = vsel %vm1537, %v1510, %v1512
  %v1586 = vsel %vm1537, %v1512, %v1514
  %v1587 = vsel %vm1537, %v1514, %v1516
  %v1588 = vsel %vm1537, %v1516, %v1518
  %v1589 = vsel %vm1537, %v1518, %v1520
  %v1590 = vsel %vm1537, %v1520, %v1522
  %v1591 = vsel %vm1537, %v1522, %v1524
  %v1592 = vsel %vm1537, %v1524, %v1526
  %v1593 = vsel %vm1537, %v1526, %v1528
  %v1594 = vsel %vm1537, %v1528, %v1530
  %v1595 = vsel %vm1537, %v1530, %v1532
  %v1596 = vsel %vm1537, %v1532, %v1534
  %v1597 = vsel %vm1537, %v1534, %v1536
  %v1666 = vsel %vm1537, %v1440, %v1410
  %v1667 = vsel %vm1537, %v1472, %v1442
  %v1668 = vsel %vm1537, %v1504, %v1474
  %v1669 = vsel %vm1537, %v1536, %v1506
  %v1670 = vld [vmem:[%s4] sm:$0xff]
  %v1671 = vld [vmem:[%s4 + $0x8] sm:$0xff]
  %v1672 = vld [vmem:[%s4 + $0x10] sm:$0xff]
  %v1673 = vld [vmem:[%s4 + $0x18] sm:$0xff]
  %v1674 = vld [vmem:[%s4 + $0x20] sm:$0xff]
  %v1675 = vld [vmem:[%s4 + $0x28] sm:$0xff]
  %v1676 = vld [vmem:[%s4 + $0x30] sm:$0xff]
  %v1677 = vld [vmem:[%s4 + $0x38] sm:$0xff]
  %s1678 = scalar_lea.vmem %s4, 64
  %v1679 = vld [vmem:[%s1678] sm:$0xff]
  %v1680 = vld [vmem:[%s1678 + $0x8] sm:$0xff]
  %v1681 = vld [vmem:[%s1678 + $0x10] sm:$0xff]
  %v1682 = vld [vmem:[%s1678 + $0x18] sm:$0xff]
  %v1683 = vld [vmem:[%s1678 + $0x20] sm:$0xff]
  %v1684 = vld [vmem:[%s1678 + $0x28] sm:$0xff]
  %v1685 = vld [vmem:[%s1678 + $0x30] sm:$0xff]
  %v1686 = vld [vmem:[%s1678 + $0x38] sm:$0xff]
  %vm1687 = vcmask 261120
  %v1689 = vsel %vm1687, %v1679, 0
  %v1692 = vsel %vm1687, %v1680, 0
  %v1695 = vsel %vm1687, %v1681, 0
  %v1698 = vsel %vm1687, %v1682, 0
  %v1701 = vsel %vm1687, %v1683, 0
  %v1704 = vsel %vm1687, %v1684, 0
  %v1707 = vsel %vm1687, %v1685, 0
  %v1710 = vsel %vm1687, %v1686, 0
  %1712 = vmatpush.msra.mxu0 0.0
  %1713 = vmatpush.msra.mxu0 0.0
  %1714 = vmatpush.msra.mxu0 0.0
  %1715 = vmatpush.msra.mxu0 0.0
  %1716 = vmatpush.msra.mxu0 0.0
  %1717 = vmatpush.msra.mxu0 0.0
  %1718 = vmatpush.msra.mxu0 0.0
  %1719 = vmatpush.msra.mxu0 0.0
  %1720 = vmatpush.msra.mxu0 0.0
  %1721 = vmatpush.msra.mxu0 0.0
  %1722 = vmatpush.msra.mxu0 0.0
  %1723 = vmatpush.msra.mxu0 0.0
  %1724 = vmatpush.msra.mxu0 %v1583
  %1725 = vmatpush.msra.mxu0 %v1568
  %1726 = vmatpush.msra.mxu0 %v1553
  %1727 = vmatpush.msra.mxu0 %v1538
  %1728 = vmatmul.f32.gmra.mxu0 %v1689
  %v1729 = vpop.f32.mrf.mxu0
  %v1730 = vadd.f32 0.0, %v1729
  %1731 = vmatmul.f32.gmra.mxu0 %v1692
  %v1732 = vpop.f32.mrf.mxu0
  %v1733 = vadd.f32 0.0, %v1732
  %1734 = vmatmul.f32.gmra.mxu0 %v1695
  %v1735 = vpop.f32.mrf.mxu0
  %v1736 = vadd.f32 0.0, %v1735
  %1737 = vmatmul.f32.gmra.mxu0 %v1698
  %v1738 = vpop.f32.mrf.mxu0
  %v1739 = vadd.f32 0.0, %v1738
  %1740 = vmatmul.f32.gmra.mxu0 %v1701
  %v1741 = vpop.f32.mrf.mxu0
  %v1742 = vadd.f32 0.0, %v1741
  %1743 = vmatmul.f32.gmra.mxu0 %v1704
  %v1744 = vpop.f32.mrf.mxu0
  %v1745 = vadd.f32 0.0, %v1744
  %1746 = vmatmul.f32.gmra.mxu0 %v1707
  %v1747 = vpop.f32.mrf.mxu0
  %v1748 = vadd.f32 0.0, %v1747
  %1749 = vmatmul.f32.gmra.mxu0 %v1710
  %v1750 = vpop.f32.mrf.mxu0
  %v1751 = vadd.f32 0.0, %v1750
  %1752 = vdwg.mxu0
  %1753 = vmatpush.msra.mxu0 0.0
  %1754 = vmatpush.msra.mxu0 0.0
  %1755 = vmatpush.msra.mxu0 0.0
  %1756 = vmatpush.msra.mxu0 0.0
  %1757 = vmatpush.msra.mxu0 0.0
  %1758 = vmatpush.msra.mxu0 0.0
  %1759 = vmatpush.msra.mxu0 0.0
  %1760 = vmatpush.msra.mxu0 0.0
  %1761 = vmatpush.msra.mxu0 0.0
  %1762 = vmatpush.msra.mxu0 0.0
  %1763 = vmatpush.msra.mxu0 0.0
  %1764 = vmatpush.msra.mxu0 0.0
  %1765 = vmatpush.msra.mxu0 %v1584
  %1766 = vmatpush.msra.mxu0 %v1569
  %1767 = vmatpush.msra.mxu0 %v1554
  %1768 = vmatpush.msra.mxu0 %v1539
  %1769 = vmatmul.f32.gmra.mxu0 %v1689
  %v1770 = vpop.f32.mrf.mxu0
  %v1771 = vadd.f32 0.0, %v1770
  %1772 = vmatmul.f32.gmra.mxu0 %v1692
  %v1773 = vpop.f32.mrf.mxu0
  %v1774 = vadd.f32 0.0, %v1773
  %1775 = vmatmul.f32.gmra.mxu0 %v1695
  %v1776 = vpop.f32.mrf.mxu0
  %v1777 = vadd.f32 0.0, %v1776
  %1778 = vmatmul.f32.gmra.mxu0 %v1698
  %v1779 = vpop.f32.mrf.mxu0
  %v1780 = vadd.f32 0.0, %v1779
  %1781 = vmatmul.f32.gmra.mxu0 %v1701
  %v1782 = vpop.f32.mrf.mxu0
  %v1783 = vadd.f32 0.0, %v1782
  %1784 = vmatmul.f32.gmra.mxu0 %v1704
  %v1785 = vpop.f32.mrf.mxu0
  %v1786 = vadd.f32 0.0, %v1785
  %1787 = vmatmul.f32.gmra.mxu0 %v1707
  %v1788 = vpop.f32.mrf.mxu0
  %v1789 = vadd.f32 0.0, %v1788
  %1790 = vmatmul.f32.gmra.mxu0 %v1710
  %v1791 = vpop.f32.mrf.mxu0
  %v1792 = vadd.f32 0.0, %v1791
  %1793 = vdwg.mxu0
  %1794 = vmatpush.msra.mxu0 0.0
  %1795 = vmatpush.msra.mxu0 0.0
  %1796 = vmatpush.msra.mxu0 0.0
  %1797 = vmatpush.msra.mxu0 0.0
  %1798 = vmatpush.msra.mxu0 0.0
  %1799 = vmatpush.msra.mxu0 0.0
  %1800 = vmatpush.msra.mxu0 0.0
  %1801 = vmatpush.msra.mxu0 0.0
  %1802 = vmatpush.msra.mxu0 0.0
  %1803 = vmatpush.msra.mxu0 0.0
  %1804 = vmatpush.msra.mxu0 0.0
  %1805 = vmatpush.msra.mxu0 0.0
  %1806 = vmatpush.msra.mxu0 %v1585
  %1807 = vmatpush.msra.mxu0 %v1570
  %1808 = vmatpush.msra.mxu0 %v1555
  %1809 = vmatpush.msra.mxu0 %v1540
  %1810 = vmatmul.f32.gmra.mxu0 %v1689
  %v1811 = vpop.f32.mrf.mxu0
  %v1812 = vadd.f32 0.0, %v1811
  %1813 = vmatmul.f32.gmra.mxu0 %v1692
  %v1814 = vpop.f32.mrf.mxu0
  %v1815 = vadd.f32 0.0, %v1814
  %1816 = vmatmul.f32.gmra.mxu0 %v1695
  %v1817 = vpop.f32.mrf.mxu0
  %v1818 = vadd.f32 0.0, %v1817
  %1819 = vmatmul.f32.gmra.mxu0 %v1698
  %v1820 = vpop.f32.mrf.mxu0
  %v1821 = vadd.f32 0.0, %v1820
  %1822 = vmatmul.f32.gmra.mxu0 %v1701
  %v1823 = vpop.f32.mrf.mxu0
  %v1824 = vadd.f32 0.0, %v1823
  %1825 = vmatmul.f32.gmra.mxu0 %v1704
  %v1826 = vpop.f32.mrf.mxu0
  %v1827 = vadd.f32 0.0, %v1826
  %1828 = vmatmul.f32.gmra.mxu0 %v1707
  %v1829 = vpop.f32.mrf.mxu0
  %v1830 = vadd.f32 0.0, %v1829
  %1831 = vmatmul.f32.gmra.mxu0 %v1710
  %v1832 = vpop.f32.mrf.mxu0
  %v1833 = vadd.f32 0.0, %v1832
  %1834 = vdwg.mxu0
  %1835 = vmatpush.msra.mxu0 0.0
  %1836 = vmatpush.msra.mxu0 0.0
  %1837 = vmatpush.msra.mxu0 0.0
  %1838 = vmatpush.msra.mxu0 0.0
  %1839 = vmatpush.msra.mxu0 0.0
  %1840 = vmatpush.msra.mxu0 0.0
  %1841 = vmatpush.msra.mxu0 0.0
  %1842 = vmatpush.msra.mxu0 0.0
  %1843 = vmatpush.msra.mxu0 0.0
  %1844 = vmatpush.msra.mxu0 0.0
  %1845 = vmatpush.msra.mxu0 0.0
  %1846 = vmatpush.msra.mxu0 0.0
  %1847 = vmatpush.msra.mxu0 %v1586
  %1848 = vmatpush.msra.mxu0 %v1571
  %1849 = vmatpush.msra.mxu0 %v1556
  %1850 = vmatpush.msra.mxu0 %v1541
  %1851 = vmatmul.f32.gmra.mxu0 %v1689
  %v1852 = vpop.f32.mrf.mxu0
  %v1853 = vadd.f32 0.0, %v1852
  %1854 = vmatmul.f32.gmra.mxu0 %v1692
  %v1855 = vpop.f32.mrf.mxu0
  %v1856 = vadd.f32 0.0, %v1855
  %1857 = vmatmul.f32.gmra.mxu0 %v1695
  %v1858 = vpop.f32.mrf.mxu0
  %v1859 = vadd.f32 0.0, %v1858
  %1860 = vmatmul.f32.gmra.mxu0 %v1698
  %v1861 = vpop.f32.mrf.mxu0
  %v1862 = vadd.f32 0.0, %v1861
  %1863 = vmatmul.f32.gmra.mxu0 %v1701
  %v1864 = vpop.f32.mrf.mxu0
  %v1865 = vadd.f32 0.0, %v1864
  %1866 = vmatmul.f32.gmra.mxu0 %v1704
  %v1867 = vpop.f32.mrf.mxu0
  %v1868 = vadd.f32 0.0, %v1867
  %1869 = vmatmul.f32.gmra.mxu0 %v1707
  %v1870 = vpop.f32.mrf.mxu0
  %v1871 = vadd.f32 0.0, %v1870
  %1872 = vmatmul.f32.gmra.mxu0 %v1710
  %v1873 = vpop.f32.mrf.mxu0
  %v1874 = vadd.f32 0.0, %v1873
  %1875 = vdwg.mxu0
  %1876 = vmatpush.msra.mxu0 0.0
  %1877 = vmatpush.msra.mxu0 0.0
  %1878 = vmatpush.msra.mxu0 0.0
  %1879 = vmatpush.msra.mxu0 0.0
  %1880 = vmatpush.msra.mxu0 0.0
  %1881 = vmatpush.msra.mxu0 0.0
  %1882 = vmatpush.msra.mxu0 0.0
  %1883 = vmatpush.msra.mxu0 0.0
  %1884 = vmatpush.msra.mxu0 0.0
  %1885 = vmatpush.msra.mxu0 0.0
  %1886 = vmatpush.msra.mxu0 0.0
  %1887 = vmatpush.msra.mxu0 0.0
  %1888 = vmatpush.msra.mxu0 %v1587
  %1889 = vmatpush.msra.mxu0 %v1572
  %1890 = vmatpush.msra.mxu0 %v1557
  %1891 = vmatpush.msra.mxu0 %v1542
  %1892 = vmatmul.f32.gmra.mxu0 %v1689
  %v1893 = vpop.f32.mrf.mxu0
  %v1894 = vadd.f32 0.0, %v1893
  %1895 = vmatmul.f32.gmra.mxu0 %v1692
  %v1896 = vpop.f32.mrf.mxu0
  %v1897 = vadd.f32 0.0, %v1896
  %1898 = vmatmul.f32.gmra.mxu0 %v1695
  %v1899 = vpop.f32.mrf.mxu0
  %v1900 = vadd.f32 0.0, %v1899
  %1901 = vmatmul.f32.gmra.mxu0 %v1698
  %v1902 = vpop.f32.mrf.mxu0
  %v1903 = vadd.f32 0.0, %v1902
  %1904 = vmatmul.f32.gmra.mxu0 %v1701
  %v1905 = vpop.f32.mrf.mxu0
  %v1906 = vadd.f32 0.0, %v1905
  %1907 = vmatmul.f32.gmra.mxu0 %v1704
  %v1908 = vpop.f32.mrf.mxu0
  %v1909 = vadd.f32 0.0, %v1908
  %1910 = vmatmul.f32.gmra.mxu0 %v1707
  %v1911 = vpop.f32.mrf.mxu0
  %v1912 = vadd.f32 0.0, %v1911
  %1913 = vmatmul.f32.gmra.mxu0 %v1710
  %v1914 = vpop.f32.mrf.mxu0
  %v1915 = vadd.f32 0.0, %v1914
  %1916 = vdwg.mxu0
  %1917 = vmatpush.msra.mxu0 0.0
  %1918 = vmatpush.msra.mxu0 0.0
  %1919 = vmatpush.msra.mxu0 0.0
  %1920 = vmatpush.msra.mxu0 0.0
  %1921 = vmatpush.msra.mxu0 0.0
  %1922 = vmatpush.msra.mxu0 0.0
  %1923 = vmatpush.msra.mxu0 0.0
  %1924 = vmatpush.msra.mxu0 0.0
  %1925 = vmatpush.msra.mxu0 0.0
  %1926 = vmatpush.msra.mxu0 0.0
  %1927 = vmatpush.msra.mxu0 0.0
  %1928 = vmatpush.msra.mxu0 0.0
  %1929 = vmatpush.msra.mxu0 %v1588
  %1930 = vmatpush.msra.mxu0 %v1573
  %1931 = vmatpush.msra.mxu0 %v1558
  %1932 = vmatpush.msra.mxu0 %v1543
  %1933 = vmatmul.f32.gmra.mxu0 %v1689
  %v1934 = vpop.f32.mrf.mxu0
  %v1935 = vadd.f32 0.0, %v1934
  %1936 = vmatmul.f32.gmra.mxu0 %v1692
  %v1937 = vpop.f32.mrf.mxu0
  %v1938 = vadd.f32 0.0, %v1937
  %1939 = vmatmul.f32.gmra.mxu0 %v1695
  %v1940 = vpop.f32.mrf.mxu0
  %v1941 = vadd.f32 0.0, %v1940
  %1942 = vmatmul.f32.gmra.mxu0 %v1698
  %v1943 = vpop.f32.mrf.mxu0
  %v1944 = vadd.f32 0.0, %v1943
  %1945 = vmatmul.f32.gmra.mxu0 %v1701
  %v1946 = vpop.f32.mrf.mxu0
  %v1947 = vadd.f32 0.0, %v1946
  %1948 = vmatmul.f32.gmra.mxu0 %v1704
  %v1949 = vpop.f32.mrf.mxu0
  %v1950 = vadd.f32 0.0, %v1949
  %1951 = vmatmul.f32.gmra.mxu0 %v1707
  %v1952 = vpop.f32.mrf.mxu0
  %v1953 = vadd.f32 0.0, %v1952
  %1954 = vmatmul.f32.gmra.mxu0 %v1710
  %v1955 = vpop.f32.mrf.mxu0
  %v1956 = vadd.f32 0.0, %v1955
  %1957 = vdwg.mxu0
  %1958 = vmatpush.msra.mxu0 0.0
  %1959 = vmatpush.msra.mxu0 0.0
  %1960 = vmatpush.msra.mxu0 0.0
  %1961 = vmatpush.msra.mxu0 0.0
  %1962 = vmatpush.msra.mxu0 0.0
  %1963 = vmatpush.msra.mxu0 0.0
  %1964 = vmatpush.msra.mxu0 0.0
  %1965 = vmatpush.msra.mxu0 0.0
  %1966 = vmatpush.msra.mxu0 0.0
  %1967 = vmatpush.msra.mxu0 0.0
  %1968 = vmatpush.msra.mxu0 0.0
  %1969 = vmatpush.msra.mxu0 0.0
  %1970 = vmatpush.msra.mxu0 %v1589
  %1971 = vmatpush.msra.mxu0 %v1574
  %1972 = vmatpush.msra.mxu0 %v1559
  %1973 = vmatpush.msra.mxu0 %v1544
  %1974 = vmatmul.f32.gmra.mxu0 %v1689
  %v1975 = vpop.f32.mrf.mxu0
  %v1976 = vadd.f32 0.0, %v1975
  %1977 = vmatmul.f32.gmra.mxu0 %v1692
  %v1978 = vpop.f32.mrf.mxu0
  %v1979 = vadd.f32 0.0, %v1978
  %1980 = vmatmul.f32.gmra.mxu0 %v1695
  %v1981 = vpop.f32.mrf.mxu0
  %v1982 = vadd.f32 0.0, %v1981
  %1983 = vmatmul.f32.gmra.mxu0 %v1698
  %v1984 = vpop.f32.mrf.mxu0
  %v1985 = vadd.f32 0.0, %v1984
  %1986 = vmatmul.f32.gmra.mxu0 %v1701
  %v1987 = vpop.f32.mrf.mxu0
  %v1988 = vadd.f32 0.0, %v1987
  %1989 = vmatmul.f32.gmra.mxu0 %v1704
  %v1990 = vpop.f32.mrf.mxu0
  %v1991 = vadd.f32 0.0, %v1990
  %1992 = vmatmul.f32.gmra.mxu0 %v1707
  %v1993 = vpop.f32.mrf.mxu0
  %v1994 = vadd.f32 0.0, %v1993
  %1995 = vmatmul.f32.gmra.mxu0 %v1710
  %v1996 = vpop.f32.mrf.mxu0
  %v1997 = vadd.f32 0.0, %v1996
  %1998 = vdwg.mxu0
  %1999 = vmatpush.msra.mxu0 0.0
  %2000 = vmatpush.msra.mxu0 0.0
  %2001 = vmatpush.msra.mxu0 0.0
  %2002 = vmatpush.msra.mxu0 0.0
  %2003 = vmatpush.msra.mxu0 0.0
  %2004 = vmatpush.msra.mxu0 0.0
  %2005 = vmatpush.msra.mxu0 0.0
  %2006 = vmatpush.msra.mxu0 0.0
  %2007 = vmatpush.msra.mxu0 0.0
  %2008 = vmatpush.msra.mxu0 0.0
  %2009 = vmatpush.msra.mxu0 0.0
  %2010 = vmatpush.msra.mxu0 0.0
  %2011 = vmatpush.msra.mxu0 %v1590
  %2012 = vmatpush.msra.mxu0 %v1575
  %2013 = vmatpush.msra.mxu0 %v1560
  %2014 = vmatpush.msra.mxu0 %v1545
  %2015 = vmatmul.f32.gmra.mxu0 %v1689
  %v2016 = vpop.f32.mrf.mxu0
  %v2017 = vadd.f32 0.0, %v2016
  %2018 = vmatmul.f32.gmra.mxu0 %v1692
  %v2019 = vpop.f32.mrf.mxu0
  %v2020 = vadd.f32 0.0, %v2019
  %2021 = vmatmul.f32.gmra.mxu0 %v1695
  %v2022 = vpop.f32.mrf.mxu0
  %v2023 = vadd.f32 0.0, %v2022
  %2024 = vmatmul.f32.gmra.mxu0 %v1698
  %v2025 = vpop.f32.mrf.mxu0
  %v2026 = vadd.f32 0.0, %v2025
  %2027 = vmatmul.f32.gmra.mxu0 %v1701
  %v2028 = vpop.f32.mrf.mxu0
  %v2029 = vadd.f32 0.0, %v2028
  %2030 = vmatmul.f32.gmra.mxu0 %v1704
  %v2031 = vpop.f32.mrf.mxu0
  %v2032 = vadd.f32 0.0, %v2031
  %2033 = vmatmul.f32.gmra.mxu0 %v1707
  %v2034 = vpop.f32.mrf.mxu0
  %v2035 = vadd.f32 0.0, %v2034
  %2036 = vmatmul.f32.gmra.mxu0 %v1710
  %v2037 = vpop.f32.mrf.mxu0
  %v2038 = vadd.f32 0.0, %v2037
  %2039 = vdwg.mxu0
  %2040 = vmatpush.msra.mxu0 0.0
  %2041 = vmatpush.msra.mxu0 0.0
  %2042 = vmatpush.msra.mxu0 0.0
  %2043 = vmatpush.msra.mxu0 0.0
  %2044 = vmatpush.msra.mxu0 0.0
  %2045 = vmatpush.msra.mxu0 0.0
  %2046 = vmatpush.msra.mxu0 0.0
  %2047 = vmatpush.msra.mxu0 0.0
  %2048 = vmatpush.msra.mxu0 0.0
  %2049 = vmatpush.msra.mxu0 0.0
  %2050 = vmatpush.msra.mxu0 0.0
  %2051 = vmatpush.msra.mxu0 0.0
  %2052 = vmatpush.msra.mxu0 %v1591
  %2053 = vmatpush.msra.mxu0 %v1576
  %2054 = vmatpush.msra.mxu0 %v1561
  %2055 = vmatpush.msra.mxu0 %v1546
  %2056 = vmatmul.f32.gmra.mxu0 %v1689
  %v2057 = vpop.f32.mrf.mxu0
  %v2058 = vadd.f32 0.0, %v2057
  %2059 = vmatmul.f32.gmra.mxu0 %v1692
  %v2060 = vpop.f32.mrf.mxu0
  %v2061 = vadd.f32 0.0, %v2060
  %2062 = vmatmul.f32.gmra.mxu0 %v1695
  %v2063 = vpop.f32.mrf.mxu0
  %v2064 = vadd.f32 0.0, %v2063
  %2065 = vmatmul.f32.gmra.mxu0 %v1698
  %v2066 = vpop.f32.mrf.mxu0
  %v2067 = vadd.f32 0.0, %v2066
  %2068 = vmatmul.f32.gmra.mxu0 %v1701
  %v2069 = vpop.f32.mrf.mxu0
  %v2070 = vadd.f32 0.0, %v2069
  %2071 = vmatmul.f32.gmra.mxu0 %v1704
  %v2072 = vpop.f32.mrf.mxu0
  %v2073 = vadd.f32 0.0, %v2072
  %2074 = vmatmul.f32.gmra.mxu0 %v1707
  %v2075 = vpop.f32.mrf.mxu0
  %v2076 = vadd.f32 0.0, %v2075
  %2077 = vmatmul.f32.gmra.mxu0 %v1710
  %v2078 = vpop.f32.mrf.mxu0
  %v2079 = vadd.f32 0.0, %v2078
  %2080 = vdwg.mxu0
  %2081 = vmatpush.msra.mxu0 0.0
  %2082 = vmatpush.msra.mxu0 0.0
  %2083 = vmatpush.msra.mxu0 0.0
  %2084 = vmatpush.msra.mxu0 0.0
  %2085 = vmatpush.msra.mxu0 0.0
  %2086 = vmatpush.msra.mxu0 0.0
  %2087 = vmatpush.msra.mxu0 0.0
  %2088 = vmatpush.msra.mxu0 0.0
  %2089 = vmatpush.msra.mxu0 0.0
  %2090 = vmatpush.msra.mxu0 0.0
  %2091 = vmatpush.msra.mxu0 0.0
  %2092 = vmatpush.msra.mxu0 0.0
  %2093 = vmatpush.msra.mxu0 %v1592
  %2094 = vmatpush.msra.mxu0 %v1577
  %2095 = vmatpush.msra.mxu0 %v1562
  %2096 = vmatpush.msra.mxu0 %v1547
  %2097 = vmatmul.f32.gmra.mxu0 %v1689
  %v2098 = vpop.f32.mrf.mxu0
  %v2099 = vadd.f32 0.0, %v2098
  %2100 = vmatmul.f32.gmra.mxu0 %v1692
  %v2101 = vpop.f32.mrf.mxu0
  %v2102 = vadd.f32 0.0, %v2101
  %2103 = vmatmul.f32.gmra.mxu0 %v1695
  %v2104 = vpop.f32.mrf.mxu0
  %v2105 = vadd.f32 0.0, %v2104
  %2106 = vmatmul.f32.gmra.mxu0 %v1698
  %v2107 = vpop.f32.mrf.mxu0
  %v2108 = vadd.f32 0.0, %v2107
  %2109 = vmatmul.f32.gmra.mxu0 %v1701
  %v2110 = vpop.f32.mrf.mxu0
  %v2111 = vadd.f32 0.0, %v2110
  %2112 = vmatmul.f32.gmra.mxu0 %v1704
  %v2113 = vpop.f32.mrf.mxu0
  %v2114 = vadd.f32 0.0, %v2113
  %2115 = vmatmul.f32.gmra.mxu0 %v1707
  %v2116 = vpop.f32.mrf.mxu0
  %v2117 = vadd.f32 0.0, %v2116
  %2118 = vmatmul.f32.gmra.mxu0 %v1710
  %v2119 = vpop.f32.mrf.mxu0
  %v2120 = vadd.f32 0.0, %v2119
  %2121 = vdwg.mxu0
  %2122 = vmatpush.msra.mxu0 0.0
  %2123 = vmatpush.msra.mxu0 0.0
  %2124 = vmatpush.msra.mxu0 0.0
  %2125 = vmatpush.msra.mxu0 0.0
  %2126 = vmatpush.msra.mxu0 0.0
  %2127 = vmatpush.msra.mxu0 0.0
  %2128 = vmatpush.msra.mxu0 0.0
  %2129 = vmatpush.msra.mxu0 0.0
  %2130 = vmatpush.msra.mxu0 0.0
  %2131 = vmatpush.msra.mxu0 0.0
  %2132 = vmatpush.msra.mxu0 0.0
  %2133 = vmatpush.msra.mxu0 0.0
  %2134 = vmatpush.msra.mxu0 %v1593
  %2135 = vmatpush.msra.mxu0 %v1578
  %2136 = vmatpush.msra.mxu0 %v1563
  %2137 = vmatpush.msra.mxu0 %v1548
  %2138 = vmatmul.f32.gmra.mxu0 %v1689
  %v2139 = vpop.f32.mrf.mxu0
  %v2140 = vadd.f32 0.0, %v2139
  %2141 = vmatmul.f32.gmra.mxu0 %v1692
  %v2142 = vpop.f32.mrf.mxu0
  %v2143 = vadd.f32 0.0, %v2142
  %2144 = vmatmul.f32.gmra.mxu0 %v1695
  %v2145 = vpop.f32.mrf.mxu0
  %v2146 = vadd.f32 0.0, %v2145
  %2147 = vmatmul.f32.gmra.mxu0 %v1698
  %v2148 = vpop.f32.mrf.mxu0
  %v2149 = vadd.f32 0.0, %v2148
  %2150 = vmatmul.f32.gmra.mxu0 %v1701
  %v2151 = vpop.f32.mrf.mxu0
  %v2152 = vadd.f32 0.0, %v2151
  %2153 = vmatmul.f32.gmra.mxu0 %v1704
  %v2154 = vpop.f32.mrf.mxu0
  %v2155 = vadd.f32 0.0, %v2154
  %2156 = vmatmul.f32.gmra.mxu0 %v1707
  %v2157 = vpop.f32.mrf.mxu0
  %v2158 = vadd.f32 0.0, %v2157
  %2159 = vmatmul.f32.gmra.mxu0 %v1710
  %v2160 = vpop.f32.mrf.mxu0
  %v2161 = vadd.f32 0.0, %v2160
  %2162 = vdwg.mxu0
  %2163 = vmatpush.msra.mxu0 0.0
  %2164 = vmatpush.msra.mxu0 0.0
  %2165 = vmatpush.msra.mxu0 0.0
  %2166 = vmatpush.msra.mxu0 0.0
  %2167 = vmatpush.msra.mxu0 0.0
  %2168 = vmatpush.msra.mxu0 0.0
  %2169 = vmatpush.msra.mxu0 0.0
  %2170 = vmatpush.msra.mxu0 0.0
  %2171 = vmatpush.msra.mxu0 0.0
  %2172 = vmatpush.msra.mxu0 0.0
  %2173 = vmatpush.msra.mxu0 0.0
  %2174 = vmatpush.msra.mxu0 0.0
  %2175 = vmatpush.msra.mxu0 %v1594
  %2176 = vmatpush.msra.mxu0 %v1579
  %2177 = vmatpush.msra.mxu0 %v1564
  %2178 = vmatpush.msra.mxu0 %v1549
  %2179 = vmatmul.f32.gmra.mxu0 %v1689
  %v2180 = vpop.f32.mrf.mxu0
  %v2181 = vadd.f32 0.0, %v2180
  %2182 = vmatmul.f32.gmra.mxu0 %v1692
  %v2183 = vpop.f32.mrf.mxu0
  %v2184 = vadd.f32 0.0, %v2183
  %2185 = vmatmul.f32.gmra.mxu0 %v1695
  %v2186 = vpop.f32.mrf.mxu0
  %v2187 = vadd.f32 0.0, %v2186
  %2188 = vmatmul.f32.gmra.mxu0 %v1698
  %v2189 = vpop.f32.mrf.mxu0
  %v2190 = vadd.f32 0.0, %v2189
  %2191 = vmatmul.f32.gmra.mxu0 %v1701
  %v2192 = vpop.f32.mrf.mxu0
  %v2193 = vadd.f32 0.0, %v2192
  %2194 = vmatmul.f32.gmra.mxu0 %v1704
  %v2195 = vpop.f32.mrf.mxu0
  %v2196 = vadd.f32 0.0, %v2195
  %2197 = vmatmul.f32.gmra.mxu0 %v1707
  %v2198 = vpop.f32.mrf.mxu0
  %v2199 = vadd.f32 0.0, %v2198
  %2200 = vmatmul.f32.gmra.mxu0 %v1710
  %v2201 = vpop.f32.mrf.mxu0
  %v2202 = vadd.f32 0.0, %v2201
  %2203 = vdwg.mxu0
  %2204 = vmatpush.msra.mxu0 0.0
  %2205 = vmatpush.msra.mxu0 0.0
  %2206 = vmatpush.msra.mxu0 0.0
  %2207 = vmatpush.msra.mxu0 0.0
  %2208 = vmatpush.msra.mxu0 0.0
  %2209 = vmatpush.msra.mxu0 0.0
  %2210 = vmatpush.msra.mxu0 0.0
  %2211 = vmatpush.msra.mxu0 0.0
  %2212 = vmatpush.msra.mxu0 0.0
  %2213 = vmatpush.msra.mxu0 0.0
  %2214 = vmatpush.msra.mxu0 0.0
  %2215 = vmatpush.msra.mxu0 0.0
  %2216 = vmatpush.msra.mxu0 %v1595
  %2217 = vmatpush.msra.mxu0 %v1580
  %2218 = vmatpush.msra.mxu0 %v1565
  %2219 = vmatpush.msra.mxu0 %v1550
  %2220 = vmatmul.f32.gmra.mxu0 %v1689
  %v2221 = vpop.f32.mrf.mxu0
  %v2222 = vadd.f32 0.0, %v2221
  %2223 = vmatmul.f32.gmra.mxu0 %v1692
  %v2224 = vpop.f32.mrf.mxu0
  %v2225 = vadd.f32 0.0, %v2224
  %2226 = vmatmul.f32.gmra.mxu0 %v1695
  %v2227 = vpop.f32.mrf.mxu0
  %v2228 = vadd.f32 0.0, %v2227
  %2229 = vmatmul.f32.gmra.mxu0 %v1698
  %v2230 = vpop.f32.mrf.mxu0
  %v2231 = vadd.f32 0.0, %v2230
  %2232 = vmatmul.f32.gmra.mxu0 %v1701
  %v2233 = vpop.f32.mrf.mxu0
  %v2234 = vadd.f32 0.0, %v2233
  %2235 = vmatmul.f32.gmra.mxu0 %v1704
  %v2236 = vpop.f32.mrf.mxu0
  %v2237 = vadd.f32 0.0, %v2236
  %2238 = vmatmul.f32.gmra.mxu0 %v1707
  %v2239 = vpop.f32.mrf.mxu0
  %v2240 = vadd.f32 0.0, %v2239
  %2241 = vmatmul.f32.gmra.mxu0 %v1710
  %v2242 = vpop.f32.mrf.mxu0
  %v2243 = vadd.f32 0.0, %v2242
  %2244 = vdwg.mxu0
  %2245 = vmatpush.msra.mxu0 0.0
  %2246 = vmatpush.msra.mxu0 0.0
  %2247 = vmatpush.msra.mxu0 0.0
  %2248 = vmatpush.msra.mxu0 0.0
  %2249 = vmatpush.msra.mxu0 0.0
  %2250 = vmatpush.msra.mxu0 0.0
  %2251 = vmatpush.msra.mxu0 0.0
  %2252 = vmatpush.msra.mxu0 0.0
  %2253 = vmatpush.msra.mxu0 0.0
  %2254 = vmatpush.msra.mxu0 0.0
  %2255 = vmatpush.msra.mxu0 0.0
  %2256 = vmatpush.msra.mxu0 0.0
  %2257 = vmatpush.msra.mxu0 %v1596
  %2258 = vmatpush.msra.mxu0 %v1581
  %2259 = vmatpush.msra.mxu0 %v1566
  %2260 = vmatpush.msra.mxu0 %v1551
  %2261 = vmatmul.f32.gmra.mxu0 %v1689
  %v2262 = vpop.f32.mrf.mxu0
  %v2263 = vadd.f32 0.0, %v2262
  %2264 = vmatmul.f32.gmra.mxu0 %v1692
  %v2265 = vpop.f32.mrf.mxu0
  %v2266 = vadd.f32 0.0, %v2265
  %2267 = vmatmul.f32.gmra.mxu0 %v1695
  %v2268 = vpop.f32.mrf.mxu0
  %v2269 = vadd.f32 0.0, %v2268
  %2270 = vmatmul.f32.gmra.mxu0 %v1698
  %v2271 = vpop.f32.mrf.mxu0
  %v2272 = vadd.f32 0.0, %v2271
  %2273 = vmatmul.f32.gmra.mxu0 %v1701
  %v2274 = vpop.f32.mrf.mxu0
  %v2275 = vadd.f32 0.0, %v2274
  %2276 = vmatmul.f32.gmra.mxu0 %v1704
  %v2277 = vpop.f32.mrf.mxu0
  %v2278 = vadd.f32 0.0, %v2277
  %2279 = vmatmul.f32.gmra.mxu0 %v1707
  %v2280 = vpop.f32.mrf.mxu0
  %v2281 = vadd.f32 0.0, %v2280
  %2282 = vmatmul.f32.gmra.mxu0 %v1710
  %v2283 = vpop.f32.mrf.mxu0
  %v2284 = vadd.f32 0.0, %v2283
  %2285 = vdwg.mxu0
  %2286 = vmatpush.msra.mxu0 0.0
  %2287 = vmatpush.msra.mxu0 0.0
  %2288 = vmatpush.msra.mxu0 0.0
  %2289 = vmatpush.msra.mxu0 0.0
  %2290 = vmatpush.msra.mxu0 0.0
  %2291 = vmatpush.msra.mxu0 0.0
  %2292 = vmatpush.msra.mxu0 0.0
  %2293 = vmatpush.msra.mxu0 0.0
  %2294 = vmatpush.msra.mxu0 0.0
  %2295 = vmatpush.msra.mxu0 0.0
  %2296 = vmatpush.msra.mxu0 0.0
  %2297 = vmatpush.msra.mxu0 0.0
  %2298 = vmatpush.msra.mxu0 %v1597
  %2299 = vmatpush.msra.mxu0 %v1582
  %2300 = vmatpush.msra.mxu0 %v1567
  %2301 = vmatpush.msra.mxu0 %v1552
  %2302 = vmatmul.f32.gmra.mxu0 %v1689
  %v2303 = vpop.f32.mrf.mxu0
  %v2304 = vadd.f32 0.0, %v2303
  %2305 = vmatmul.f32.gmra.mxu0 %v1692
  %v2306 = vpop.f32.mrf.mxu0
  %v2307 = vadd.f32 0.0, %v2306
  %2308 = vmatmul.f32.gmra.mxu0 %v1695
  %v2309 = vpop.f32.mrf.mxu0
  %v2310 = vadd.f32 0.0, %v2309
  %2311 = vmatmul.f32.gmra.mxu0 %v1698
  %v2312 = vpop.f32.mrf.mxu0
  %v2313 = vadd.f32 0.0, %v2312
  %2314 = vmatmul.f32.gmra.mxu0 %v1701
  %v2315 = vpop.f32.mrf.mxu0
  %v2316 = vadd.f32 0.0, %v2315
  %2317 = vmatmul.f32.gmra.mxu0 %v1704
  %v2318 = vpop.f32.mrf.mxu0
  %v2319 = vadd.f32 0.0, %v2318
  %2320 = vmatmul.f32.gmra.mxu0 %v1707
  %v2321 = vpop.f32.mrf.mxu0
  %v2322 = vadd.f32 0.0, %v2321
  %2323 = vmatmul.f32.gmra.mxu0 %v1710
  %v2324 = vpop.f32.mrf.mxu0
  %v2325 = vadd.f32 0.0, %v2324
  %2326 = vdwg.mxu0
  %2327 = vmatpush.msra.mxu0 0.0
  %2328 = vmatpush.msra.mxu0 0.0
  %2329 = vmatpush.msra.mxu0 0.0
  %2330 = vmatpush.msra.mxu0 0.0
  %2331 = vmatpush.msra.mxu0 0.0
  %2332 = vmatpush.msra.mxu0 0.0
  %2333 = vmatpush.msra.mxu0 0.0
  %2334 = vmatpush.msra.mxu0 0.0
  %2335 = vmatpush.msra.mxu0 0.0
  %2336 = vmatpush.msra.mxu0 0.0
  %2337 = vmatpush.msra.mxu0 0.0
  %2338 = vmatpush.msra.mxu0 0.0
  %2339 = vmatpush.msra.mxu0 %v1669
  %2340 = vmatpush.msra.mxu0 %v1668
  %2341 = vmatpush.msra.mxu0 %v1667
  %2342 = vmatpush.msra.mxu0 %v1666
  %2343 = vmatmul.f32.gmra.mxu0 %v1689
  %v2344 = vpop.f32.mrf.mxu0
  %v2345 = vadd.f32 0.0, %v2344
  %2346 = vmatmul.f32.gmra.mxu0 %v1692
  %v2347 = vpop.f32.mrf.mxu0
  %v2348 = vadd.f32 0.0, %v2347
  %2349 = vmatmul.f32.gmra.mxu0 %v1695
  %v2350 = vpop.f32.mrf.mxu0
  %v2351 = vadd.f32 0.0, %v2350
  %2352 = vmatmul.f32.gmra.mxu0 %v1698
  %v2353 = vpop.f32.mrf.mxu0
  %v2354 = vadd.f32 0.0, %v2353
  %2355 = vmatmul.f32.gmra.mxu0 %v1701
  %v2356 = vpop.f32.mrf.mxu0
  %v2357 = vadd.f32 0.0, %v2356
  %2358 = vmatmul.f32.gmra.mxu0 %v1704
  %v2359 = vpop.f32.mrf.mxu0
  %v2360 = vadd.f32 0.0, %v2359
  %2361 = vmatmul.f32.gmra.mxu0 %v1707
  %v2362 = vpop.f32.mrf.mxu0
  %v2363 = vadd.f32 0.0, %v2362
  %2364 = vmatmul.f32.gmra.mxu0 %v1710
  %v2365 = vpop.f32.mrf.mxu0
  %v2366 = vadd.f32 0.0, %v2365
  %2367 = vdwg.mxu0
  %v2369 = vsel %vm1687, %v1670, 0
  %v2372 = vsel %vm1687, %v1671, 0
  %v2375 = vsel %vm1687, %v1672, 0
  %v2378 = vsel %vm1687, %v1673, 0
  %v2381 = vsel %vm1687, %v1674, 0
  %v2384 = vsel %vm1687, %v1675, 0
  %v2387 = vsel %vm1687, %v1676, 0
  %v2390 = vsel %vm1687, %v1677, 0
  %2392 = vmatpush.msra.mxu0 0.0
  %2393 = vmatpush.msra.mxu0 0.0
  %2394 = vmatpush.msra.mxu0 0.0
  %2395 = vmatpush.msra.mxu0 0.0
  %2396 = vmatpush.msra.mxu0 0.0
  %2397 = vmatpush.msra.mxu0 0.0
  %2398 = vmatpush.msra.mxu0 0.0
  %2399 = vmatpush.msra.mxu0 0.0
  %2400 = vmatpush.msra.mxu0 0.0
  %2401 = vmatpush.msra.mxu0 0.0
  %2402 = vmatpush.msra.mxu0 0.0
  %2403 = vmatpush.msra.mxu0 0.0
  %2404 = vmatpush.msra.mxu0 %v1329
  %2405 = vmatpush.msra.mxu0 %v1313
  %2406 = vmatpush.msra.mxu0 %v1297
  %2407 = vmatpush.msra.mxu0 %v1281
  %2408 = vmatmul.f32.gmra.mxu0 %v2369
  %v2409 = vpop.f32.mrf.mxu0
  %v2410 = vadd.f32 %v1730, %v2409
  %2411 = vmatmul.f32.gmra.mxu0 %v2372
  %v2412 = vpop.f32.mrf.mxu0
  %v2413 = vadd.f32 %v1733, %v2412
  %2414 = vmatmul.f32.gmra.mxu0 %v2375
  %v2415 = vpop.f32.mrf.mxu0
  %v2416 = vadd.f32 %v1736, %v2415
  %2417 = vmatmul.f32.gmra.mxu0 %v2378
  %v2418 = vpop.f32.mrf.mxu0
  %v2419 = vadd.f32 %v1739, %v2418
  %2420 = vmatmul.f32.gmra.mxu0 %v2381
  %v2421 = vpop.f32.mrf.mxu0
  %v2422 = vadd.f32 %v1742, %v2421
  %2423 = vmatmul.f32.gmra.mxu0 %v2384
  %v2424 = vpop.f32.mrf.mxu0
  %v2425 = vadd.f32 %v1745, %v2424
  %2426 = vmatmul.f32.gmra.mxu0 %v2387
  %v2427 = vpop.f32.mrf.mxu0
  %v2428 = vadd.f32 %v1748, %v2427
  %2429 = vmatmul.f32.gmra.mxu0 %v2390
  %v2430 = vpop.f32.mrf.mxu0
  %v2431 = vadd.f32 %v1751, %v2430
  %2432 = vdwg.mxu0
  %2433 = vmatpush.msra.mxu0 0.0
  %2434 = vmatpush.msra.mxu0 0.0
  %2435 = vmatpush.msra.mxu0 0.0
  %2436 = vmatpush.msra.mxu0 0.0
  %2437 = vmatpush.msra.mxu0 0.0
  %2438 = vmatpush.msra.mxu0 0.0
  %2439 = vmatpush.msra.mxu0 0.0
  %2440 = vmatpush.msra.mxu0 0.0
  %2441 = vmatpush.msra.mxu0 0.0
  %2442 = vmatpush.msra.mxu0 0.0
  %2443 = vmatpush.msra.mxu0 0.0
  %2444 = vmatpush.msra.mxu0 0.0
  %2445 = vmatpush.msra.mxu0 %v1330
  %2446 = vmatpush.msra.mxu0 %v1314
  %2447 = vmatpush.msra.mxu0 %v1298
  %2448 = vmatpush.msra.mxu0 %v1282
  %2449 = vmatmul.f32.gmra.mxu0 %v2369
  %v2450 = vpop.f32.mrf.mxu0
  %v2451 = vadd.f32 %v1771, %v2450
  %2452 = vmatmul.f32.gmra.mxu0 %v2372
  %v2453 = vpop.f32.mrf.mxu0
  %v2454 = vadd.f32 %v1774, %v2453
  %2455 = vmatmul.f32.gmra.mxu0 %v2375
  %v2456 = vpop.f32.mrf.mxu0
  %v2457 = vadd.f32 %v1777, %v2456
  %2458 = vmatmul.f32.gmra.mxu0 %v2378
  %v2459 = vpop.f32.mrf.mxu0
  %v2460 = vadd.f32 %v1780, %v2459
  %2461 = vmatmul.f32.gmra.mxu0 %v2381
  %v2462 = vpop.f32.mrf.mxu0
  %v2463 = vadd.f32 %v1783, %v2462
  %2464 = vmatmul.f32.gmra.mxu0 %v2384
  %v2465 = vpop.f32.mrf.mxu0
  %v2466 = vadd.f32 %v1786, %v2465
  %2467 = vmatmul.f32.gmra.mxu0 %v2387
  %v2468 = vpop.f32.mrf.mxu0
  %v2469 = vadd.f32 %v1789, %v2468
  %2470 = vmatmul.f32.gmra.mxu0 %v2390
  %v2471 = vpop.f32.mrf.mxu0
  %v2472 = vadd.f32 %v1792, %v2471
  %2473 = vdwg.mxu0
  %2474 = vmatpush.msra.mxu0 0.0
  %2475 = vmatpush.msra.mxu0 0.0
  %2476 = vmatpush.msra.mxu0 0.0
  %2477 = vmatpush.msra.mxu0 0.0
  %2478 = vmatpush.msra.mxu0 0.0
  %2479 = vmatpush.msra.mxu0 0.0
  %2480 = vmatpush.msra.mxu0 0.0
  %2481 = vmatpush.msra.mxu0 0.0
  %2482 = vmatpush.msra.mxu0 0.0
  %2483 = vmatpush.msra.mxu0 0.0
  %2484 = vmatpush.msra.mxu0 0.0
  %2485 = vmatpush.msra.mxu0 0.0
  %2486 = vmatpush.msra.mxu0 %v1331
  %2487 = vmatpush.msra.mxu0 %v1315
  %2488 = vmatpush.msra.mxu0 %v1299
  %2489 = vmatpush.msra.mxu0 %v1283
  %2490 = vmatmul.f32.gmra.mxu0 %v2369
  %v2491 = vpop.f32.mrf.mxu0
  %v2492 = vadd.f32 %v1812, %v2491
  %2493 = vmatmul.f32.gmra.mxu0 %v2372
  %v2494 = vpop.f32.mrf.mxu0
  %v2495 = vadd.f32 %v1815, %v2494
  %2496 = vmatmul.f32.gmra.mxu0 %v2375
  %v2497 = vpop.f32.mrf.mxu0
  %v2498 = vadd.f32 %v1818, %v2497
  %2499 = vmatmul.f32.gmra.mxu0 %v2378
  %v2500 = vpop.f32.mrf.mxu0
  %v2501 = vadd.f32 %v1821, %v2500
  %2502 = vmatmul.f32.gmra.mxu0 %v2381
  %v2503 = vpop.f32.mrf.mxu0
  %v2504 = vadd.f32 %v1824, %v2503
  %2505 = vmatmul.f32.gmra.mxu0 %v2384
  %v2506 = vpop.f32.mrf.mxu0
  %v2507 = vadd.f32 %v1827, %v2506
  %2508 = vmatmul.f32.gmra.mxu0 %v2387
  %v2509 = vpop.f32.mrf.mxu0
  %v2510 = vadd.f32 %v1830, %v2509
  %2511 = vmatmul.f32.gmra.mxu0 %v2390
  %v2512 = vpop.f32.mrf.mxu0
  %v2513 = vadd.f32 %v1833, %v2512
  %2514 = vdwg.mxu0
  %2515 = vmatpush.msra.mxu0 0.0
  %2516 = vmatpush.msra.mxu0 0.0
  %2517 = vmatpush.msra.mxu0 0.0
  %2518 = vmatpush.msra.mxu0 0.0
  %2519 = vmatpush.msra.mxu0 0.0
  %2520 = vmatpush.msra.mxu0 0.0
  %2521 = vmatpush.msra.mxu0 0.0
  %2522 = vmatpush.msra.mxu0 0.0
  %2523 = vmatpush.msra.mxu0 0.0
  %2524 = vmatpush.msra.mxu0 0.0
  %2525 = vmatpush.msra.mxu0 0.0
  %2526 = vmatpush.msra.mxu0 0.0
  %2527 = vmatpush.msra.mxu0 %v1332
  %2528 = vmatpush.msra.mxu0 %v1316
  %2529 = vmatpush.msra.mxu0 %v1300
  %2530 = vmatpush.msra.mxu0 %v1284
  %2531 = vmatmul.f32.gmra.mxu0 %v2369
  %v2532 = vpop.f32.mrf.mxu0
  %v2533 = vadd.f32 %v1853, %v2532
  %2534 = vmatmul.f32.gmra.mxu0 %v2372
  %v2535 = vpop.f32.mrf.mxu0
  %v2536 = vadd.f32 %v1856, %v2535
  %2537 = vmatmul.f32.gmra.mxu0 %v2375
  %v2538 = vpop.f32.mrf.mxu0
  %v2539 = vadd.f32 %v1859, %v2538
  %2540 = vmatmul.f32.gmra.mxu0 %v2378
  %v2541 = vpop.f32.mrf.mxu0
  %v2542 = vadd.f32 %v1862, %v2541
  %2543 = vmatmul.f32.gmra.mxu0 %v2381
  %v2544 = vpop.f32.mrf.mxu0
  %v2545 = vadd.f32 %v1865, %v2544
  %2546 = vmatmul.f32.gmra.mxu0 %v2384
  %v2547 = vpop.f32.mrf.mxu0
  %v2548 = vadd.f32 %v1868, %v2547
  %2549 = vmatmul.f32.gmra.mxu0 %v2387
  %v2550 = vpop.f32.mrf.mxu0
  %v2551 = vadd.f32 %v1871, %v2550
  %2552 = vmatmul.f32.gmra.mxu0 %v2390
  %v2553 = vpop.f32.mrf.mxu0
  %v2554 = vadd.f32 %v1874, %v2553
  %2555 = vdwg.mxu0
  %2556 = vmatpush.msra.mxu0 0.0
  %2557 = vmatpush.msra.mxu0 0.0
  %2558 = vmatpush.msra.mxu0 0.0
  %2559 = vmatpush.msra.mxu0 0.0
  %2560 = vmatpush.msra.mxu0 0.0
  %2561 = vmatpush.msra.mxu0 0.0
  %2562 = vmatpush.msra.mxu0 0.0
  %2563 = vmatpush.msra.mxu0 0.0
  %2564 = vmatpush.msra.mxu0 0.0
  %2565 = vmatpush.msra.mxu0 0.0
  %2566 = vmatpush.msra.mxu0 0.0
  %2567 = vmatpush.msra.mxu0 0.0
  %2568 = vmatpush.msra.mxu0 %v1333
  %2569 = vmatpush.msra.mxu0 %v1317
  %2570 = vmatpush.msra.mxu0 %v1301
  %2571 = vmatpush.msra.mxu0 %v1285
  %2572 = vmatmul.f32.gmra.mxu0 %v2369
  %v2573 = vpop.f32.mrf.mxu0
  %v2574 = vadd.f32 %v1894, %v2573
  %2575 = vmatmul.f32.gmra.mxu0 %v2372
  %v2576 = vpop.f32.mrf.mxu0
  %v2577 = vadd.f32 %v1897, %v2576
  %2578 = vmatmul.f32.gmra.mxu0 %v2375
  %v2579 = vpop.f32.mrf.mxu0
  %v2580 = vadd.f32 %v1900, %v2579
  %2581 = vmatmul.f32.gmra.mxu0 %v2378
  %v2582 = vpop.f32.mrf.mxu0
  %v2583 = vadd.f32 %v1903, %v2582
  %2584 = vmatmul.f32.gmra.mxu0 %v2381
  %v2585 = vpop.f32.mrf.mxu0
  %v2586 = vadd.f32 %v1906, %v2585
  %2587 = vmatmul.f32.gmra.mxu0 %v2384
  %v2588 = vpop.f32.mrf.mxu0
  %v2589 = vadd.f32 %v1909, %v2588
  %2590 = vmatmul.f32.gmra.mxu0 %v2387
  %v2591 = vpop.f32.mrf.mxu0
  %v2592 = vadd.f32 %v1912, %v2591
  %2593 = vmatmul.f32.gmra.mxu0 %v2390
  %v2594 = vpop.f32.mrf.mxu0
  %v2595 = vadd.f32 %v1915, %v2594
  %2596 = vdwg.mxu0
  %2597 = vmatpush.msra.mxu0 0.0
  %2598 = vmatpush.msra.mxu0 0.0
  %2599 = vmatpush.msra.mxu0 0.0
  %2600 = vmatpush.msra.mxu0 0.0
  %2601 = vmatpush.msra.mxu0 0.0
  %2602 = vmatpush.msra.mxu0 0.0
  %2603 = vmatpush.msra.mxu0 0.0
  %2604 = vmatpush.msra.mxu0 0.0
  %2605 = vmatpush.msra.mxu0 0.0
  %2606 = vmatpush.msra.mxu0 0.0
  %2607 = vmatpush.msra.mxu0 0.0
  %2608 = vmatpush.msra.mxu0 0.0
  %2609 = vmatpush.msra.mxu0 %v1334
  %2610 = vmatpush.msra.mxu0 %v1318
  %2611 = vmatpush.msra.mxu0 %v1302
  %2612 = vmatpush.msra.mxu0 %v1286
  %2613 = vmatmul.f32.gmra.mxu0 %v2369
  %v2614 = vpop.f32.mrf.mxu0
  %v2615 = vadd.f32 %v1935, %v2614
  %2616 = vmatmul.f32.gmra.mxu0 %v2372
  %v2617 = vpop.f32.mrf.mxu0
  %v2618 = vadd.f32 %v1938, %v2617
  %2619 = vmatmul.f32.gmra.mxu0 %v2375
  %v2620 = vpop.f32.mrf.mxu0
  %v2621 = vadd.f32 %v1941, %v2620
  %2622 = vmatmul.f32.gmra.mxu0 %v2378
  %v2623 = vpop.f32.mrf.mxu0
  %v2624 = vadd.f32 %v1944, %v2623
  %2625 = vmatmul.f32.gmra.mxu0 %v2381
  %v2626 = vpop.f32.mrf.mxu0
  %v2627 = vadd.f32 %v1947, %v2626
  %2628 = vmatmul.f32.gmra.mxu0 %v2384
  %v2629 = vpop.f32.mrf.mxu0
  %v2630 = vadd.f32 %v1950, %v2629
  %2631 = vmatmul.f32.gmra.mxu0 %v2387
  %v2632 = vpop.f32.mrf.mxu0
  %v2633 = vadd.f32 %v1953, %v2632
  %2634 = vmatmul.f32.gmra.mxu0 %v2390
  %v2635 = vpop.f32.mrf.mxu0
  %v2636 = vadd.f32 %v1956, %v2635
  %2637 = vdwg.mxu0
  %2638 = vmatpush.msra.mxu0 0.0
  %2639 = vmatpush.msra.mxu0 0.0
  %2640 = vmatpush.msra.mxu0 0.0
  %2641 = vmatpush.msra.mxu0 0.0
  %2642 = vmatpush.msra.mxu0 0.0
  %2643 = vmatpush.msra.mxu0 0.0
  %2644 = vmatpush.msra.mxu0 0.0
  %2645 = vmatpush.msra.mxu0 0.0
  %2646 = vmatpush.msra.mxu0 0.0
  %2647 = vmatpush.msra.mxu0 0.0
  %2648 = vmatpush.msra.mxu0 0.0
  %2649 = vmatpush.msra.mxu0 0.0
  %2650 = vmatpush.msra.mxu0 %v1335
  %2651 = vmatpush.msra.mxu0 %v1319
  %2652 = vmatpush.msra.mxu0 %v1303
  %2653 = vmatpush.msra.mxu0 %v1287
  %2654 = vmatmul.f32.gmra.mxu0 %v2369
  %v2655 = vpop.f32.mrf.mxu0
  %v2656 = vadd.f32 %v1976, %v2655
  %2657 = vmatmul.f32.gmra.mxu0 %v2372
  %v2658 = vpop.f32.mrf.mxu0
  %v2659 = vadd.f32 %v1979, %v2658
  %2660 = vmatmul.f32.gmra.mxu0 %v2375
  %v2661 = vpop.f32.mrf.mxu0
  %v2662 = vadd.f32 %v1982, %v2661
  %2663 = vmatmul.f32.gmra.mxu0 %v2378
  %v2664 = vpop.f32.mrf.mxu0
  %v2665 = vadd.f32 %v1985, %v2664
  %2666 = vmatmul.f32.gmra.mxu0 %v2381
  %v2667 = vpop.f32.mrf.mxu0
  %v2668 = vadd.f32 %v1988, %v2667
  %2669 = vmatmul.f32.gmra.mxu0 %v2384
  %v2670 = vpop.f32.mrf.mxu0
  %v2671 = vadd.f32 %v1991, %v2670
  %2672 = vmatmul.f32.gmra.mxu0 %v2387
  %v2673 = vpop.f32.mrf.mxu0
  %v2674 = vadd.f32 %v1994, %v2673
  %2675 = vmatmul.f32.gmra.mxu0 %v2390
  %v2676 = vpop.f32.mrf.mxu0
  %v2677 = vadd.f32 %v1997, %v2676
  %2678 = vdwg.mxu0
  %2679 = vmatpush.msra.mxu0 0.0
  %2680 = vmatpush.msra.mxu0 0.0
  %2681 = vmatpush.msra.mxu0 0.0
  %2682 = vmatpush.msra.mxu0 0.0
  %2683 = vmatpush.msra.mxu0 0.0
  %2684 = vmatpush.msra.mxu0 0.0
  %2685 = vmatpush.msra.mxu0 0.0
  %2686 = vmatpush.msra.mxu0 0.0
  %2687 = vmatpush.msra.mxu0 0.0
  %2688 = vmatpush.msra.mxu0 0.0
  %2689 = vmatpush.msra.mxu0 0.0
  %2690 = vmatpush.msra.mxu0 0.0
  %2691 = vmatpush.msra.mxu0 %v1336
  %2692 = vmatpush.msra.mxu0 %v1320
  %2693 = vmatpush.msra.mxu0 %v1304
  %2694 = vmatpush.msra.mxu0 %v1288
  %2695 = vmatmul.f32.gmra.mxu0 %v2369
  %v2696 = vpop.f32.mrf.mxu0
  %v2697 = vadd.f32 %v2017, %v2696
  %2698 = vmatmul.f32.gmra.mxu0 %v2372
  %v2699 = vpop.f32.mrf.mxu0
  %v2700 = vadd.f32 %v2020, %v2699
  %2701 = vmatmul.f32.gmra.mxu0 %v2375
  %v2702 = vpop.f32.mrf.mxu0
  %v2703 = vadd.f32 %v2023, %v2702
  %2704 = vmatmul.f32.gmra.mxu0 %v2378
  %v2705 = vpop.f32.mrf.mxu0
  %v2706 = vadd.f32 %v2026, %v2705
  %2707 = vmatmul.f32.gmra.mxu0 %v2381
  %v2708 = vpop.f32.mrf.mxu0
  %v2709 = vadd.f32 %v2029, %v2708
  %2710 = vmatmul.f32.gmra.mxu0 %v2384
  %v2711 = vpop.f32.mrf.mxu0
  %v2712 = vadd.f32 %v2032, %v2711
  %2713 = vmatmul.f32.gmra.mxu0 %v2387
  %v2714 = vpop.f32.mrf.mxu0
  %v2715 = vadd.f32 %v2035, %v2714
  %2716 = vmatmul.f32.gmra.mxu0 %v2390
  %v2717 = vpop.f32.mrf.mxu0
  %v2718 = vadd.f32 %v2038, %v2717
  %2719 = vdwg.mxu0
  %2720 = vmatpush.msra.mxu0 0.0
  %2721 = vmatpush.msra.mxu0 0.0
  %2722 = vmatpush.msra.mxu0 0.0
  %2723 = vmatpush.msra.mxu0 0.0
  %2724 = vmatpush.msra.mxu0 0.0
  %2725 = vmatpush.msra.mxu0 0.0
  %2726 = vmatpush.msra.mxu0 0.0
  %2727 = vmatpush.msra.mxu0 0.0
  %2728 = vmatpush.msra.mxu0 0.0
  %2729 = vmatpush.msra.mxu0 0.0
  %2730 = vmatpush.msra.mxu0 0.0
  %2731 = vmatpush.msra.mxu0 0.0
  %2732 = vmatpush.msra.mxu0 %v1337
  %2733 = vmatpush.msra.mxu0 %v1321
  %2734 = vmatpush.msra.mxu0 %v1305
  %2735 = vmatpush.msra.mxu0 %v1289
  %2736 = vmatmul.f32.gmra.mxu0 %v2369
  %v2737 = vpop.f32.mrf.mxu0
  %v2738 = vadd.f32 %v2058, %v2737
  %2739 = vmatmul.f32.gmra.mxu0 %v2372
  %v2740 = vpop.f32.mrf.mxu0
  %v2741 = vadd.f32 %v2061, %v2740
  %2742 = vmatmul.f32.gmra.mxu0 %v2375
  %v2743 = vpop.f32.mrf.mxu0
  %v2744 = vadd.f32 %v2064, %v2743
  %2745 = vmatmul.f32.gmra.mxu0 %v2378
  %v2746 = vpop.f32.mrf.mxu0
  %v2747 = vadd.f32 %v2067, %v2746
  %2748 = vmatmul.f32.gmra.mxu0 %v2381
  %v2749 = vpop.f32.mrf.mxu0
  %v2750 = vadd.f32 %v2070, %v2749
  %2751 = vmatmul.f32.gmra.mxu0 %v2384
  %v2752 = vpop.f32.mrf.mxu0
  %v2753 = vadd.f32 %v2073, %v2752
  %2754 = vmatmul.f32.gmra.mxu0 %v2387
  %v2755 = vpop.f32.mrf.mxu0
  %v2756 = vadd.f32 %v2076, %v2755
  %2757 = vmatmul.f32.gmra.mxu0 %v2390
  %v2758 = vpop.f32.mrf.mxu0
  %v2759 = vadd.f32 %v2079, %v2758
  %2760 = vdwg.mxu0
  %2761 = vmatpush.msra.mxu0 0.0
  %2762 = vmatpush.msra.mxu0 0.0
  %2763 = vmatpush.msra.mxu0 0.0
  %2764 = vmatpush.msra.mxu0 0.0
  %2765 = vmatpush.msra.mxu0 0.0
  %2766 = vmatpush.msra.mxu0 0.0
  %2767 = vmatpush.msra.mxu0 0.0
  %2768 = vmatpush.msra.mxu0 0.0
  %2769 = vmatpush.msra.mxu0 0.0
  %2770 = vmatpush.msra.mxu0 0.0
  %2771 = vmatpush.msra.mxu0 0.0
  %2772 = vmatpush.msra.mxu0 0.0
  %2773 = vmatpush.msra.mxu0 %v1338
  %2774 = vmatpush.msra.mxu0 %v1322
  %2775 = vmatpush.msra.mxu0 %v1306
  %2776 = vmatpush.msra.mxu0 %v1290
  %2777 = vmatmul.f32.gmra.mxu0 %v2369
  %v2778 = vpop.f32.mrf.mxu0
  %v2779 = vadd.f32 %v2099, %v2778
  %2780 = vmatmul.f32.gmra.mxu0 %v2372
  %v2781 = vpop.f32.mrf.mxu0
  %v2782 = vadd.f32 %v2102, %v2781
  %2783 = vmatmul.f32.gmra.mxu0 %v2375
  %v2784 = vpop.f32.mrf.mxu0
  %v2785 = vadd.f32 %v2105, %v2784
  %2786 = vmatmul.f32.gmra.mxu0 %v2378
  %v2787 = vpop.f32.mrf.mxu0
  %v2788 = vadd.f32 %v2108, %v2787
  %2789 = vmatmul.f32.gmra.mxu0 %v2381
  %v2790 = vpop.f32.mrf.mxu0
  %v2791 = vadd.f32 %v2111, %v2790
  %2792 = vmatmul.f32.gmra.mxu0 %v2384
  %v2793 = vpop.f32.mrf.mxu0
  %v2794 = vadd.f32 %v2114, %v2793
  %2795 = vmatmul.f32.gmra.mxu0 %v2387
  %v2796 = vpop.f32.mrf.mxu0
  %v2797 = vadd.f32 %v2117, %v2796
  %2798 = vmatmul.f32.gmra.mxu0 %v2390
  %v2799 = vpop.f32.mrf.mxu0
  %v2800 = vadd.f32 %v2120, %v2799
  %2801 = vdwg.mxu0
  %2802 = vmatpush.msra.mxu0 0.0
  %2803 = vmatpush.msra.mxu0 0.0
  %2804 = vmatpush.msra.mxu0 0.0
  %2805 = vmatpush.msra.mxu0 0.0
  %2806 = vmatpush.msra.mxu0 0.0
  %2807 = vmatpush.msra.mxu0 0.0
  %2808 = vmatpush.msra.mxu0 0.0
  %2809 = vmatpush.msra.mxu0 0.0
  %2810 = vmatpush.msra.mxu0 0.0
  %2811 = vmatpush.msra.mxu0 0.0
  %2812 = vmatpush.msra.mxu0 0.0
  %2813 = vmatpush.msra.mxu0 0.0
  %2814 = vmatpush.msra.mxu0 %v1339
  %2815 = vmatpush.msra.mxu0 %v1323
  %2816 = vmatpush.msra.mxu0 %v1307
  %2817 = vmatpush.msra.mxu0 %v1291
  %2818 = vmatmul.f32.gmra.mxu0 %v2369
  %v2819 = vpop.f32.mrf.mxu0
  %v2820 = vadd.f32 %v2140, %v2819
  %2821 = vmatmul.f32.gmra.mxu0 %v2372
  %v2822 = vpop.f32.mrf.mxu0
  %v2823 = vadd.f32 %v2143, %v2822
  %2824 = vmatmul.f32.gmra.mxu0 %v2375
  %v2825 = vpop.f32.mrf.mxu0
  %v2826 = vadd.f32 %v2146, %v2825
  %2827 = vmatmul.f32.gmra.mxu0 %v2378
  %v2828 = vpop.f32.mrf.mxu0
  %v2829 = vadd.f32 %v2149, %v2828
  %2830 = vmatmul.f32.gmra.mxu0 %v2381
  %v2831 = vpop.f32.mrf.mxu0
  %v2832 = vadd.f32 %v2152, %v2831
  %2833 = vmatmul.f32.gmra.mxu0 %v2384
  %v2834 = vpop.f32.mrf.mxu0
  %v2835 = vadd.f32 %v2155, %v2834
  %2836 = vmatmul.f32.gmra.mxu0 %v2387
  %v2837 = vpop.f32.mrf.mxu0
  %v2838 = vadd.f32 %v2158, %v2837
  %2839 = vmatmul.f32.gmra.mxu0 %v2390
  %v2840 = vpop.f32.mrf.mxu0
  %v2841 = vadd.f32 %v2161, %v2840
  %2842 = vdwg.mxu0
  %2843 = vmatpush.msra.mxu0 0.0
  %2844 = vmatpush.msra.mxu0 0.0
  %2845 = vmatpush.msra.mxu0 0.0
  %2846 = vmatpush.msra.mxu0 0.0
  %2847 = vmatpush.msra.mxu0 0.0
  %2848 = vmatpush.msra.mxu0 0.0
  %2849 = vmatpush.msra.mxu0 0.0
  %2850 = vmatpush.msra.mxu0 0.0
  %2851 = vmatpush.msra.mxu0 0.0
  %2852 = vmatpush.msra.mxu0 0.0
  %2853 = vmatpush.msra.mxu0 0.0
  %2854 = vmatpush.msra.mxu0 0.0
  %2855 = vmatpush.msra.mxu0 %v1340
  %2856 = vmatpush.msra.mxu0 %v1324
  %2857 = vmatpush.msra.mxu0 %v1308
  %2858 = vmatpush.msra.mxu0 %v1292
  %2859 = vmatmul.f32.gmra.mxu0 %v2369
  %v2860 = vpop.f32.mrf.mxu0
  %v2861 = vadd.f32 %v2181, %v2860
  %2862 = vmatmul.f32.gmra.mxu0 %v2372
  %v2863 = vpop.f32.mrf.mxu0
  %v2864 = vadd.f32 %v2184, %v2863
  %2865 = vmatmul.f32.gmra.mxu0 %v2375
  %v2866 = vpop.f32.mrf.mxu0
  %v2867 = vadd.f32 %v2187, %v2866
  %2868 = vmatmul.f32.gmra.mxu0 %v2378
  %v2869 = vpop.f32.mrf.mxu0
  %v2870 = vadd.f32 %v2190, %v2869
  %2871 = vmatmul.f32.gmra.mxu0 %v2381
  %v2872 = vpop.f32.mrf.mxu0
  %v2873 = vadd.f32 %v2193, %v2872
  %2874 = vmatmul.f32.gmra.mxu0 %v2384
  %v2875 = vpop.f32.mrf.mxu0
  %v2876 = vadd.f32 %v2196, %v2875
  %2877 = vmatmul.f32.gmra.mxu0 %v2387
  %v2878 = vpop.f32.mrf.mxu0
  %v2879 = vadd.f32 %v2199, %v2878
  %2880 = vmatmul.f32.gmra.mxu0 %v2390
  %v2881 = vpop.f32.mrf.mxu0
  %v2882 = vadd.f32 %v2202, %v2881
  %2883 = vdwg.mxu0
  %2884 = vmatpush.msra.mxu0 0.0
  %2885 = vmatpush.msra.mxu0 0.0
  %2886 = vmatpush.msra.mxu0 0.0
  %2887 = vmatpush.msra.mxu0 0.0
  %2888 = vmatpush.msra.mxu0 0.0
  %2889 = vmatpush.msra.mxu0 0.0
  %2890 = vmatpush.msra.mxu0 0.0
  %2891 = vmatpush.msra.mxu0 0.0
  %2892 = vmatpush.msra.mxu0 0.0
  %2893 = vmatpush.msra.mxu0 0.0
  %2894 = vmatpush.msra.mxu0 0.0
  %2895 = vmatpush.msra.mxu0 0.0
  %2896 = vmatpush.msra.mxu0 %v1341
  %2897 = vmatpush.msra.mxu0 %v1325
  %2898 = vmatpush.msra.mxu0 %v1309
  %2899 = vmatpush.msra.mxu0 %v1293
  %2900 = vmatmul.f32.gmra.mxu0 %v2369
  %v2901 = vpop.f32.mrf.mxu0
  %v2902 = vadd.f32 %v2222, %v2901
  %2903 = vmatmul.f32.gmra.mxu0 %v2372
  %v2904 = vpop.f32.mrf.mxu0
  %v2905 = vadd.f32 %v2225, %v2904
  %2906 = vmatmul.f32.gmra.mxu0 %v2375
  %v2907 = vpop.f32.mrf.mxu0
  %v2908 = vadd.f32 %v2228, %v2907
  %2909 = vmatmul.f32.gmra.mxu0 %v2378
  %v2910 = vpop.f32.mrf.mxu0
  %v2911 = vadd.f32 %v2231, %v2910
  %2912 = vmatmul.f32.gmra.mxu0 %v2381
  %v2913 = vpop.f32.mrf.mxu0
  %v2914 = vadd.f32 %v2234, %v2913
  %2915 = vmatmul.f32.gmra.mxu0 %v2384
  %v2916 = vpop.f32.mrf.mxu0
  %v2917 = vadd.f32 %v2237, %v2916
  %2918 = vmatmul.f32.gmra.mxu0 %v2387
  %v2919 = vpop.f32.mrf.mxu0
  %v2920 = vadd.f32 %v2240, %v2919
  %2921 = vmatmul.f32.gmra.mxu0 %v2390
  %v2922 = vpop.f32.mrf.mxu0
  %v2923 = vadd.f32 %v2243, %v2922
  %2924 = vdwg.mxu0
  %2925 = vmatpush.msra.mxu0 0.0
  %2926 = vmatpush.msra.mxu0 0.0
  %2927 = vmatpush.msra.mxu0 0.0
  %2928 = vmatpush.msra.mxu0 0.0
  %2929 = vmatpush.msra.mxu0 0.0
  %2930 = vmatpush.msra.mxu0 0.0
  %2931 = vmatpush.msra.mxu0 0.0
  %2932 = vmatpush.msra.mxu0 0.0
  %2933 = vmatpush.msra.mxu0 0.0
  %2934 = vmatpush.msra.mxu0 0.0
  %2935 = vmatpush.msra.mxu0 0.0
  %2936 = vmatpush.msra.mxu0 0.0
  %2937 = vmatpush.msra.mxu0 %v1342
  %2938 = vmatpush.msra.mxu0 %v1326
  %2939 = vmatpush.msra.mxu0 %v1310
  %2940 = vmatpush.msra.mxu0 %v1294
  %2941 = vmatmul.f32.gmra.mxu0 %v2369
  %v2942 = vpop.f32.mrf.mxu0
  %v2943 = vadd.f32 %v2263, %v2942
  %2944 = vmatmul.f32.gmra.mxu0 %v2372
  %v2945 = vpop.f32.mrf.mxu0
  %v2946 = vadd.f32 %v2266, %v2945
  %2947 = vmatmul.f32.gmra.mxu0 %v2375
  %v2948 = vpop.f32.mrf.mxu0
  %v2949 = vadd.f32 %v2269, %v2948
  %2950 = vmatmul.f32.gmra.mxu0 %v2378
  %v2951 = vpop.f32.mrf.mxu0
  %v2952 = vadd.f32 %v2272, %v2951
  %2953 = vmatmul.f32.gmra.mxu0 %v2381
  %v2954 = vpop.f32.mrf.mxu0
  %v2955 = vadd.f32 %v2275, %v2954
  %2956 = vmatmul.f32.gmra.mxu0 %v2384
  %v2957 = vpop.f32.mrf.mxu0
  %v2958 = vadd.f32 %v2278, %v2957
  %2959 = vmatmul.f32.gmra.mxu0 %v2387
  %v2960 = vpop.f32.mrf.mxu0
  %v2961 = vadd.f32 %v2281, %v2960
  %2962 = vmatmul.f32.gmra.mxu0 %v2390
  %v2963 = vpop.f32.mrf.mxu0
  %v2964 = vadd.f32 %v2284, %v2963
  %2965 = vdwg.mxu0
  %2966 = vmatpush.msra.mxu0 0.0
  %2967 = vmatpush.msra.mxu0 0.0
  %2968 = vmatpush.msra.mxu0 0.0
  %2969 = vmatpush.msra.mxu0 0.0
  %2970 = vmatpush.msra.mxu0 0.0
  %2971 = vmatpush.msra.mxu0 0.0
  %2972 = vmatpush.msra.mxu0 0.0
  %2973 = vmatpush.msra.mxu0 0.0
  %2974 = vmatpush.msra.mxu0 0.0
  %2975 = vmatpush.msra.mxu0 0.0
  %2976 = vmatpush.msra.mxu0 0.0
  %2977 = vmatpush.msra.mxu0 0.0
  %2978 = vmatpush.msra.mxu0 %v1343
  %2979 = vmatpush.msra.mxu0 %v1327
  %2980 = vmatpush.msra.mxu0 %v1311
  %2981 = vmatpush.msra.mxu0 %v1295
  %2982 = vmatmul.f32.gmra.mxu0 %v2369
  %v2983 = vpop.f32.mrf.mxu0
  %v2984 = vadd.f32 %v2304, %v2983
  %2985 = vmatmul.f32.gmra.mxu0 %v2372
  %v2986 = vpop.f32.mrf.mxu0
  %v2987 = vadd.f32 %v2307, %v2986
  %2988 = vmatmul.f32.gmra.mxu0 %v2375
  %v2989 = vpop.f32.mrf.mxu0
  %v2990 = vadd.f32 %v2310, %v2989
  %2991 = vmatmul.f32.gmra.mxu0 %v2378
  %v2992 = vpop.f32.mrf.mxu0
  %v2993 = vadd.f32 %v2313, %v2992
  %2994 = vmatmul.f32.gmra.mxu0 %v2381
  %v2995 = vpop.f32.mrf.mxu0
  %v2996 = vadd.f32 %v2316, %v2995
  %2997 = vmatmul.f32.gmra.mxu0 %v2384
  %v2998 = vpop.f32.mrf.mxu0
  %v2999 = vadd.f32 %v2319, %v2998
  %3000 = vmatmul.f32.gmra.mxu0 %v2387
  %v3001 = vpop.f32.mrf.mxu0
  %v3002 = vadd.f32 %v2322, %v3001
  %3003 = vmatmul.f32.gmra.mxu0 %v2390
  %v3004 = vpop.f32.mrf.mxu0
  %v3005 = vadd.f32 %v2325, %v3004
  %3006 = vdwg.mxu0
  %3007 = vmatpush.msra.mxu0 0.0
  %3008 = vmatpush.msra.mxu0 0.0
  %3009 = vmatpush.msra.mxu0 0.0
  %3010 = vmatpush.msra.mxu0 0.0
  %3011 = vmatpush.msra.mxu0 0.0
  %3012 = vmatpush.msra.mxu0 0.0
  %3013 = vmatpush.msra.mxu0 0.0
  %3014 = vmatpush.msra.mxu0 0.0
  %3015 = vmatpush.msra.mxu0 0.0
  %3016 = vmatpush.msra.mxu0 0.0
  %3017 = vmatpush.msra.mxu0 0.0
  %3018 = vmatpush.msra.mxu0 0.0
  %3019 = vmatpush.msra.mxu0 %v1344
  %3020 = vmatpush.msra.mxu0 %v1328
  %3021 = vmatpush.msra.mxu0 %v1312
  %3022 = vmatpush.msra.mxu0 %v1296
  %3023 = vmatmul.f32.gmra.mxu0 %v2369
  %v3024 = vpop.f32.mrf.mxu0
  %v3025 = vadd.f32 %v2345, %v3024
  %3026 = vmatmul.f32.gmra.mxu0 %v2372
  %v3027 = vpop.f32.mrf.mxu0
  %v3028 = vadd.f32 %v2348, %v3027
  %3029 = vmatmul.f32.gmra.mxu0 %v2375
  %v3030 = vpop.f32.mrf.mxu0
  %v3031 = vadd.f32 %v2351, %v3030
  %3032 = vmatmul.f32.gmra.mxu0 %v2378
  %v3033 = vpop.f32.mrf.mxu0
  %v3034 = vadd.f32 %v2354, %v3033
  %3035 = vmatmul.f32.gmra.mxu0 %v2381
  %v3036 = vpop.f32.mrf.mxu0
  %v3037 = vadd.f32 %v2357, %v3036
  %3038 = vmatmul.f32.gmra.mxu0 %v2384
  %v3039 = vpop.f32.mrf.mxu0
  %v3040 = vadd.f32 %v2360, %v3039
  %3041 = vmatmul.f32.gmra.mxu0 %v2387
  %v3042 = vpop.f32.mrf.mxu0
  %v3043 = vadd.f32 %v2363, %v3042
  %3044 = vmatmul.f32.gmra.mxu0 %v2390
  %v3045 = vpop.f32.mrf.mxu0
  %v3046 = vadd.f32 %v2366, %v3045
  %3047 = vdwg.mxu0
  %v3048 = vld [vmem:[%s5] sm:$0xff]
  %v3049 = vld [vmem:[%s5 + $0x8] sm:$0xff]
  %v3050 = vld [vmem:[%s5 + $0x10] sm:$0xff]
  %v3051 = vld [vmem:[%s5 + $0x18] sm:$0xff]
  %v3052 = vld [vmem:[%s5 + $0x20] sm:$0xff]
  %v3053 = vld [vmem:[%s5 + $0x28] sm:$0xff]
  %v3054 = vld [vmem:[%s5 + $0x30] sm:$0xff]
  %v3055 = vld [vmem:[%s5 + $0x38] sm:$0xff]
  %3057 = vset.pattern.permute.xlu0 0
  %3058 = vperm.xlu0 %3057, %v3048
  %v3059 = vpop.permute.xlu0 %3058
  %3062 = vset.pattern.permute.xlu0 0
  %3063 = vperm.xlu0 %3062, %v3049
  %v3064 = vpop.permute.xlu0 %3063
  %3067 = vset.pattern.permute.xlu0 0
  %3068 = vperm.xlu0 %3067, %v3050
  %v3069 = vpop.permute.xlu0 %3068
  %3072 = vset.pattern.permute.xlu0 0
  %3073 = vperm.xlu0 %3072, %v3051
  %v3074 = vpop.permute.xlu0 %3073
  %3077 = vset.pattern.permute.xlu0 0
  %3078 = vperm.xlu0 %3077, %v3052
  %v3079 = vpop.permute.xlu0 %3078
  %3082 = vset.pattern.permute.xlu0 0
  %3083 = vperm.xlu0 %3082, %v3053
  %v3084 = vpop.permute.xlu0 %3083
  %3087 = vset.pattern.permute.xlu0 0
  %3088 = vperm.xlu0 %3087, %v3054
  %v3089 = vpop.permute.xlu0 %3088
  %3092 = vset.pattern.permute.xlu0 0
  %3093 = vperm.xlu0 %3092, %v3055
  %v3094 = vpop.permute.xlu0 %3093
  %v3096 = vadd.f32 %v2410, %v3059
  %v3097 = vadd.f32 %v2451, %v3059
  %v3098 = vadd.f32 %v2492, %v3059
  %v3099 = vadd.f32 %v2533, %v3059
  %v3100 = vadd.f32 %v2574, %v3059
  %v3101 = vadd.f32 %v2615, %v3059
  %v3102 = vadd.f32 %v2656, %v3059
  %v3103 = vadd.f32 %v2697, %v3059
  %v3104 = vadd.f32 %v2738, %v3059
  %v3105 = vadd.f32 %v2779, %v3059
  %v3106 = vadd.f32 %v2820, %v3059
  %v3107 = vadd.f32 %v2861, %v3059
  %v3108 = vadd.f32 %v2902, %v3059
  %v3109 = vadd.f32 %v2943, %v3059
  %v3110 = vadd.f32 %v2984, %v3059
  %v3111 = vadd.f32 %v3025, %v3059
  %v3112 = vadd.f32 %v2413, %v3064
  %v3113 = vadd.f32 %v2454, %v3064
  %v3114 = vadd.f32 %v2495, %v3064
  %v3115 = vadd.f32 %v2536, %v3064
  %v3116 = vadd.f32 %v2577, %v3064
  %v3117 = vadd.f32 %v2618, %v3064
  %v3118 = vadd.f32 %v2659, %v3064
  %v3119 = vadd.f32 %v2700, %v3064
  %v3120 = vadd.f32 %v2741, %v3064
  %v3121 = vadd.f32 %v2782, %v3064
  %v3122 = vadd.f32 %v2823, %v3064
  %v3123 = vadd.f32 %v2864, %v3064
  %v3124 = vadd.f32 %v2905, %v3064
  %v3125 = vadd.f32 %v2946, %v3064
  %v3126 = vadd.f32 %v2987, %v3064
  %v3127 = vadd.f32 %v3028, %v3064
  %v3128 = vadd.f32 %v2416, %v3069
  %v3129 = vadd.f32 %v2457, %v3069
  %v3130 = vadd.f32 %v2498, %v3069
  %v3131 = vadd.f32 %v2539, %v3069
  %v3132 = vadd.f32 %v2580, %v3069
  %v3133 = vadd.f32 %v2621, %v3069
  %v3134 = vadd.f32 %v2662, %v3069
  %v3135 = vadd.f32 %v2703, %v3069
  %v3136 = vadd.f32 %v2744, %v3069
  %v3137 = vadd.f32 %v2785, %v3069
  %v3138 = vadd.f32 %v2826, %v3069
  %v3139 = vadd.f32 %v2867, %v3069
  %v3140 = vadd.f32 %v2908, %v3069
  %v3141 = vadd.f32 %v2949, %v3069
  %v3142 = vadd.f32 %v2990, %v3069
  %v3143 = vadd.f32 %v3031, %v3069
  %v3144 = vadd.f32 %v2419, %v3074
  %v3145 = vadd.f32 %v2460, %v3074
  %v3146 = vadd.f32 %v2501, %v3074
  %v3147 = vadd.f32 %v2542, %v3074
  %v3148 = vadd.f32 %v2583, %v3074
  %v3149 = vadd.f32 %v2624, %v3074
  %v3150 = vadd.f32 %v2665, %v3074
  %v3151 = vadd.f32 %v2706, %v3074
  %v3152 = vadd.f32 %v2747, %v3074
  %v3153 = vadd.f32 %v2788, %v3074
  %v3154 = vadd.f32 %v2829, %v3074
  %v3155 = vadd.f32 %v2870, %v3074
  %v3156 = vadd.f32 %v2911, %v3074
  %v3157 = vadd.f32 %v2952, %v3074
  %v3158 = vadd.f32 %v2993, %v3074
  %v3159 = vadd.f32 %v3034, %v3074
  %v3160 = vadd.f32 %v2422, %v3079
  %v3161 = vadd.f32 %v2463, %v3079
  %v3162 = vadd.f32 %v2504, %v3079
  %v3163 = vadd.f32 %v2545, %v3079
  %v3164 = vadd.f32 %v2586, %v3079
  %v3165 = vadd.f32 %v2627, %v3079
  %v3166 = vadd.f32 %v2668, %v3079
  %v3167 = vadd.f32 %v2709, %v3079
  %v3168 = vadd.f32 %v2750, %v3079
  %v3169 = vadd.f32 %v2791, %v3079
  %v3170 = vadd.f32 %v2832, %v3079
  %v3171 = vadd.f32 %v2873, %v3079
  %v3172 = vadd.f32 %v2914, %v3079
  %v3173 = vadd.f32 %v2955, %v3079
  %v3174 = vadd.f32 %v2996, %v3079
  %v3175 = vadd.f32 %v3037, %v3079
  %v3176 = vadd.f32 %v2425, %v3084
  %v3177 = vadd.f32 %v2466, %v3084
  %v3178 = vadd.f32 %v2507, %v3084
  %v3179 = vadd.f32 %v2548, %v3084
  %v3180 = vadd.f32 %v2589, %v3084
  %v3181 = vadd.f32 %v2630, %v3084
  %v3182 = vadd.f32 %v2671, %v3084
  %v3183 = vadd.f32 %v2712, %v3084
  %v3184 = vadd.f32 %v2753, %v3084
  %v3185 = vadd.f32 %v2794, %v3084
  %v3186 = vadd.f32 %v2835, %v3084
  %v3187 = vadd.f32 %v2876, %v3084
  %v3188 = vadd.f32 %v2917, %v3084
  %v3189 = vadd.f32 %v2958, %v3084
  %v3190 = vadd.f32 %v2999, %v3084
  %v3191 = vadd.f32 %v3040, %v3084
  %v3192 = vadd.f32 %v2428, %v3089
  %v3193 = vadd.f32 %v2469, %v3089
  %v3194 = vadd.f32 %v2510, %v3089
  %v3195 = vadd.f32 %v2551, %v3089
  %v3196 = vadd.f32 %v2592, %v3089
  %v3197 = vadd.f32 %v2633, %v3089
  %v3198 = vadd.f32 %v2674, %v3089
  %v3199 = vadd.f32 %v2715, %v3089
  %v3200 = vadd.f32 %v2756, %v3089
  %v3201 = vadd.f32 %v2797, %v3089
  %v3202 = vadd.f32 %v2838, %v3089
  %v3203 = vadd.f32 %v2879, %v3089
  %v3204 = vadd.f32 %v2920, %v3089
  %v3205 = vadd.f32 %v2961, %v3089
  %v3206 = vadd.f32 %v3002, %v3089
  %v3207 = vadd.f32 %v3043, %v3089
  %v3208 = vadd.f32 %v2431, %v3094
  %v3209 = vadd.f32 %v2472, %v3094
  %v3210 = vadd.f32 %v2513, %v3094
  %v3211 = vadd.f32 %v2554, %v3094
  %v3212 = vadd.f32 %v2595, %v3094
  %v3213 = vadd.f32 %v2636, %v3094
  %v3214 = vadd.f32 %v2677, %v3094
  %v3215 = vadd.f32 %v2718, %v3094
  %v3216 = vadd.f32 %v2759, %v3094
  %v3217 = vadd.f32 %v2800, %v3094
  %v3218 = vadd.f32 %v2841, %v3094
  %v3219 = vadd.f32 %v2882, %v3094
  %v3220 = vadd.f32 %v2923, %v3094
  %v3221 = vadd.f32 %v2964, %v3094
  %v3222 = vadd.f32 %v3005, %v3094
  %v3223 = vadd.f32 %v3046, %v3094
  %v3224 = vmax.f32 %v3096, 0.0
  %v3225 = vmax.f32 %v3097, 0.0
  %v3226 = vmax.f32 %v3098, 0.0
  %v3227 = vmax.f32 %v3099, 0.0
  %v3228 = vmax.f32 %v3100, 0.0
  %v3229 = vmax.f32 %v3101, 0.0
  %v3230 = vmax.f32 %v3102, 0.0
  %v3231 = vmax.f32 %v3103, 0.0
  %v3232 = vmax.f32 %v3104, 0.0
  %v3233 = vmax.f32 %v3105, 0.0
  %v3234 = vmax.f32 %v3106, 0.0
  %v3235 = vmax.f32 %v3107, 0.0
  %v3236 = vmax.f32 %v3108, 0.0
  %v3237 = vmax.f32 %v3109, 0.0
  %v3238 = vmax.f32 %v3110, 0.0
  %v3239 = vmax.f32 %v3111, 0.0
  %v3240 = vmax.f32 %v3112, 0.0
  %v3241 = vmax.f32 %v3113, 0.0
  %v3242 = vmax.f32 %v3114, 0.0
  %v3243 = vmax.f32 %v3115, 0.0
  %v3244 = vmax.f32 %v3116, 0.0
  %v3245 = vmax.f32 %v3117, 0.0
  %v3246 = vmax.f32 %v3118, 0.0
  %v3247 = vmax.f32 %v3119, 0.0
  %v3248 = vmax.f32 %v3120, 0.0
  %v3249 = vmax.f32 %v3121, 0.0
  %v3250 = vmax.f32 %v3122, 0.0
  %v3251 = vmax.f32 %v3123, 0.0
  %v3252 = vmax.f32 %v3124, 0.0
  %v3253 = vmax.f32 %v3125, 0.0
  %v3254 = vmax.f32 %v3126, 0.0
  %v3255 = vmax.f32 %v3127, 0.0
  %v3256 = vmax.f32 %v3128, 0.0
  %v3257 = vmax.f32 %v3129, 0.0
  %v3258 = vmax.f32 %v3130, 0.0
  %v3259 = vmax.f32 %v3131, 0.0
  %v3260 = vmax.f32 %v3132, 0.0
  %v3261 = vmax.f32 %v3133, 0.0
  %v3262 = vmax.f32 %v3134, 0.0
  %v3263 = vmax.f32 %v3135, 0.0
  %v3264 = vmax.f32 %v3136, 0.0
  %v3265 = vmax.f32 %v3137, 0.0
  %v3266 = vmax.f32 %v3138, 0.0
  %v3267 = vmax.f32 %v3139, 0.0
  %v3268 = vmax.f32 %v3140, 0.0
  %v3269 = vmax.f32 %v3141, 0.0
  %v3270 = vmax.f32 %v3142, 0.0
  %v3271 = vmax.f32 %v3143, 0.0
  %v3272 = vmax.f32 %v3144, 0.0
  %v3273 = vmax.f32 %v3145, 0.0
  %v3274 = vmax.f32 %v3146, 0.0
  %v3275 = vmax.f32 %v3147, 0.0
  %v3276 = vmax.f32 %v3148, 0.0
  %v3277 = vmax.f32 %v3149, 0.0
  %v3278 = vmax.f32 %v3150, 0.0
  %v3279 = vmax.f32 %v3151, 0.0
  %v3280 = vmax.f32 %v3152, 0.0
  %v3281 = vmax.f32 %v3153, 0.0
  %v3282 = vmax.f32 %v3154, 0.0
  %v3283 = vmax.f32 %v3155, 0.0
  %v3284 = vmax.f32 %v3156, 0.0
  %v3285 = vmax.f32 %v3157, 0.0
  %v3286 = vmax.f32 %v3158, 0.0
  %v3287 = vmax.f32 %v3159, 0.0
  %v3288 = vmax.f32 %v3160, 0.0
  %v3289 = vmax.f32 %v3161, 0.0
  %v3290 = vmax.f32 %v3162, 0.0
  %v3291 = vmax.f32 %v3163, 0.0
  %v3292 = vmax.f32 %v3164, 0.0
  %v3293 = vmax.f32 %v3165, 0.0
  %v3294 = vmax.f32 %v3166, 0.0
  %v3295 = vmax.f32 %v3167, 0.0
  %v3296 = vmax.f32 %v3168, 0.0
  %v3297 = vmax.f32 %v3169, 0.0
  %v3298 = vmax.f32 %v3170, 0.0
  %v3299 = vmax.f32 %v3171, 0.0
  %v3300 = vmax.f32 %v3172, 0.0
  %v3301 = vmax.f32 %v3173, 0.0
  %v3302 = vmax.f32 %v3174, 0.0
  %v3303 = vmax.f32 %v3175, 0.0
  %v3304 = vmax.f32 %v3176, 0.0
  %v3305 = vmax.f32 %v3177, 0.0
  %v3306 = vmax.f32 %v3178, 0.0
  %v3307 = vmax.f32 %v3179, 0.0
  %v3308 = vmax.f32 %v3180, 0.0
  %v3309 = vmax.f32 %v3181, 0.0
  %v3310 = vmax.f32 %v3182, 0.0
  %v3311 = vmax.f32 %v3183, 0.0
  %v3312 = vmax.f32 %v3184, 0.0
  %v3313 = vmax.f32 %v3185, 0.0
  %v3314 = vmax.f32 %v3186, 0.0
  %v3315 = vmax.f32 %v3187, 0.0
  %v3316 = vmax.f32 %v3188, 0.0
  %v3317 = vmax.f32 %v3189, 0.0
  %v3318 = vmax.f32 %v3190, 0.0
  %v3319 = vmax.f32 %v3191, 0.0
  %v3320 = vmax.f32 %v3192, 0.0
  %v3321 = vmax.f32 %v3193, 0.0
  %v3322 = vmax.f32 %v3194, 0.0
  %v3323 = vmax.f32 %v3195, 0.0
  %v3324 = vmax.f32 %v3196, 0.0
  %v3325 = vmax.f32 %v3197, 0.0
  %v3326 = vmax.f32 %v3198, 0.0
  %v3327 = vmax.f32 %v3199, 0.0
  %v3328 = vmax.f32 %v3200, 0.0
  %v3329 = vmax.f32 %v3201, 0.0
  %v3330 = vmax.f32 %v3202, 0.0
  %v3331 = vmax.f32 %v3203, 0.0
  %v3332 = vmax.f32 %v3204, 0.0
  %v3333 = vmax.f32 %v3205, 0.0
  %v3334 = vmax.f32 %v3206, 0.0
  %v3335 = vmax.f32 %v3207, 0.0
  %v3336 = vmax.f32 %v3208, 0.0
  %v3337 = vmax.f32 %v3209, 0.0
  %v3338 = vmax.f32 %v3210, 0.0
  %v3339 = vmax.f32 %v3211, 0.0
  %v3340 = vmax.f32 %v3212, 0.0
  %v3341 = vmax.f32 %v3213, 0.0
  %v3342 = vmax.f32 %v3214, 0.0
  %v3343 = vmax.f32 %v3215, 0.0
  %v3344 = vmax.f32 %v3216, 0.0
  %v3345 = vmax.f32 %v3217, 0.0
  %v3346 = vmax.f32 %v3218, 0.0
  %v3347 = vmax.f32 %v3219, 0.0
  %v3348 = vmax.f32 %v3220, 0.0
  %v3349 = vmax.f32 %v3221, 0.0
  %v3350 = vmax.f32 %v3222, 0.0
  %v3351 = vmax.f32 %v3223, 0.0
  %v3352 = vpack.c.bf16 %v3225, %v3224
  %v3353 = vpack.c.bf16 %v3227, %v3226
  %v3354 = vpack.c.bf16 %v3229, %v3228
  %v3355 = vpack.c.bf16 %v3231, %v3230
  %v3356 = vpack.c.bf16 %v3233, %v3232
  %v3357 = vpack.c.bf16 %v3235, %v3234
  %v3358 = vpack.c.bf16 %v3237, %v3236
  %v3359 = vpack.c.bf16 %v3239, %v3238
  %v3360 = vpack.c.bf16 %v3241, %v3240
  %v3361 = vpack.c.bf16 %v3243, %v3242
  %v3362 = vpack.c.bf16 %v3245, %v3244
  %v3363 = vpack.c.bf16 %v3247, %v3246
  %v3364 = vpack.c.bf16 %v3249, %v3248
  %v3365 = vpack.c.bf16 %v3251, %v3250
  %v3366 = vpack.c.bf16 %v3253, %v3252
  %v3367 = vpack.c.bf16 %v3255, %v3254
  %v3368 = vpack.c.bf16 %v3257, %v3256
  %v3369 = vpack.c.bf16 %v3259, %v3258
  %v3370 = vpack.c.bf16 %v3261, %v3260
  %v3371 = vpack.c.bf16 %v3263, %v3262
  %v3372 = vpack.c.bf16 %v3265, %v3264
  %v3373 = vpack.c.bf16 %v3267, %v3266
  %v3374 = vpack.c.bf16 %v3269, %v3268
  %v3375 = vpack.c.bf16 %v3271, %v3270
  %v3376 = vpack.c.bf16 %v3273, %v3272
  %v3377 = vpack.c.bf16 %v3275, %v3274
  %v3378 = vpack.c.bf16 %v3277, %v3276
  %v3379 = vpack.c.bf16 %v3279, %v3278
  %v3380 = vpack.c.bf16 %v3281, %v3280
  %v3381 = vpack.c.bf16 %v3283, %v3282
  %v3382 = vpack.c.bf16 %v3285, %v3284
  %v3383 = vpack.c.bf16 %v3287, %v3286
  %v3384 = vpack.c.bf16 %v3289, %v3288
  %v3385 = vpack.c.bf16 %v3291, %v3290
  %v3386 = vpack.c.bf16 %v3293, %v3292
  %v3387 = vpack.c.bf16 %v3295, %v3294
  %v3388 = vpack.c.bf16 %v3297, %v3296
  %v3389 = vpack.c.bf16 %v3299, %v3298
  %v3390 = vpack.c.bf16 %v3301, %v3300
  %v3391 = vpack.c.bf16 %v3303, %v3302
  %v3392 = vpack.c.bf16 %v3305, %v3304
  %v3393 = vpack.c.bf16 %v3307, %v3306
  %v3394 = vpack.c.bf16 %v3309, %v3308
  %v3395 = vpack.c.bf16 %v3311, %v3310
  %v3396 = vpack.c.bf16 %v3313, %v3312
  %v3397 = vpack.c.bf16 %v3315, %v3314
  %v3398 = vpack.c.bf16 %v3317, %v3316
  %v3399 = vpack.c.bf16 %v3319, %v3318
  %v3400 = vpack.c.bf16 %v3321, %v3320
  %v3401 = vpack.c.bf16 %v3323, %v3322
  %v3402 = vpack.c.bf16 %v3325, %v3324
  %v3403 = vpack.c.bf16 %v3327, %v3326
  %v3404 = vpack.c.bf16 %v3329, %v3328
  %v3405 = vpack.c.bf16 %v3331, %v3330
  %v3406 = vpack.c.bf16 %v3333, %v3332
  %v3407 = vpack.c.bf16 %v3335, %v3334
  %v3408 = vpack.c.bf16 %v3337, %v3336
  %v3409 = vpack.c.bf16 %v3339, %v3338
  %v3410 = vpack.c.bf16 %v3341, %v3340
  %v3411 = vpack.c.bf16 %v3343, %v3342
  %v3412 = vpack.c.bf16 %v3345, %v3344
  %v3413 = vpack.c.bf16 %v3347, %v3346
  %v3414 = vpack.c.bf16 %v3349, %v3348
  %v3415 = vpack.c.bf16 %v3351, %v3350
  %3416 = vst [vmem:[%s6] sm:$0xff] %v3352
  %3417 = vst [vmem:[%s6 + $0x8] sm:$0xff] %v3353
  %3418 = vst [vmem:[%s6 + $0x10] sm:$0xff] %v3354
  %3419 = vst [vmem:[%s6 + $0x18] sm:$0xff] %v3355
  %3420 = vst [vmem:[%s6 + $0x20] sm:$0xff] %v3356
  %3421 = vst [vmem:[%s6 + $0x28] sm:$0xff] %v3357
  %3422 = vst [vmem:[%s6 + $0x30] sm:$0xff] %v3358
  %3423 = vst [vmem:[%s6 + $0x38] sm:$0xff] %v3359
  %3424 = vst [vmem:[%s6 + $0x40] sm:$0xff] %v3360
  %3425 = vst [vmem:[%s6 + $0x48] sm:$0xff] %v3361
  %3426 = vst [vmem:[%s6 + $0x50] sm:$0xff] %v3362
  %3427 = vst [vmem:[%s6 + $0x58] sm:$0xff] %v3363
  %3428 = vst [vmem:[%s6 + $0x60] sm:$0xff] %v3364
  %3429 = vst [vmem:[%s6 + $0x68] sm:$0xff] %v3365
  %3430 = vst [vmem:[%s6 + $0x70] sm:$0xff] %v3366
  %3431 = vst [vmem:[%s6 + $0x78] sm:$0xff] %v3367
  %3432 = vst [vmem:[%s6 + $0x80] sm:$0xff] %v3368
  %3433 = vst [vmem:[%s6 + $0x88] sm:$0xff] %v3369
  %3434 = vst [vmem:[%s6 + $0x90] sm:$0xff] %v3370
  %3435 = vst [vmem:[%s6 + $0x98] sm:$0xff] %v3371
  %3436 = vst [vmem:[%s6 + $0xa0] sm:$0xff] %v3372
  %3437 = vst [vmem:[%s6 + $0xa8] sm:$0xff] %v3373
  %3438 = vst [vmem:[%s6 + $0xb0] sm:$0xff] %v3374
  %3439 = vst [vmem:[%s6 + $0xb8] sm:$0xff] %v3375
  %3440 = vst [vmem:[%s6 + $0xc0] sm:$0xff] %v3376
  %3441 = vst [vmem:[%s6 + $0xc8] sm:$0xff] %v3377
  %3442 = vst [vmem:[%s6 + $0xd0] sm:$0xff] %v3378
  %3443 = vst [vmem:[%s6 + $0xd8] sm:$0xff] %v3379
  %3444 = vst [vmem:[%s6 + $0xe0] sm:$0xff] %v3380
  %3445 = vst [vmem:[%s6 + $0xe8] sm:$0xff] %v3381
  %3446 = vst [vmem:[%s6 + $0xf0] sm:$0xff] %v3382
  %3447 = vst [vmem:[%s6 + $0xf8] sm:$0xff] %v3383
  %3448 = vst [vmem:[%s6 + $0x100] sm:$0xff] %v3384
  %3449 = vst [vmem:[%s6 + $0x108] sm:$0xff] %v3385
  %3450 = vst [vmem:[%s6 + $0x110] sm:$0xff] %v3386
  %3451 = vst [vmem:[%s6 + $0x118] sm:$0xff] %v3387
  %3452 = vst [vmem:[%s6 + $0x120] sm:$0xff] %v3388
  %3453 = vst [vmem:[%s6 + $0x128] sm:$0xff] %v3389
  %3454 = vst [vmem:[%s6 + $0x130] sm:$0xff] %v3390
  %3455 = vst [vmem:[%s6 + $0x138] sm:$0xff] %v3391
  %3456 = vst [vmem:[%s6 + $0x140] sm:$0xff] %v3392
  %3457 = vst [vmem:[%s6 + $0x148] sm:$0xff] %v3393
  %3458 = vst [vmem:[%s6 + $0x150] sm:$0xff] %v3394
  %3459 = vst [vmem:[%s6 + $0x158] sm:$0xff] %v3395
  %3460 = vst [vmem:[%s6 + $0x160] sm:$0xff] %v3396
  %3461 = vst [vmem:[%s6 + $0x168] sm:$0xff] %v3397
  %3462 = vst [vmem:[%s6 + $0x170] sm:$0xff] %v3398
  %3463 = vst [vmem:[%s6 + $0x178] sm:$0xff] %v3399
  %3464 = vst [vmem:[%s6 + $0x180] sm:$0xff] %v3400
  %3465 = vst [vmem:[%s6 + $0x188] sm:$0xff] %v3401
  %3466 = vst [vmem:[%s6 + $0x190] sm:$0xff] %v3402
  %3467 = vst [vmem:[%s6 + $0x198] sm:$0xff] %v3403
  %3468 = vst [vmem:[%s6 + $0x1a0] sm:$0xff] %v3404
  %3469 = vst [vmem:[%s6 + $0x1a8] sm:$0xff] %v3405
  %3470 = vst [vmem:[%s6 + $0x1b0] sm:$0xff] %v3406
  %3471 = vst [vmem:[%s6 + $0x1b8] sm:$0xff] %v3407
  %3472 = vst [vmem:[%s6 + $0x1c0] sm:$0xff] %v3408
  %3473 = vst [vmem:[%s6 + $0x1c8] sm:$0xff] %v3409
  %3474 = vst [vmem:[%s6 + $0x1d0] sm:$0xff] %v3410
  %3475 = vst [vmem:[%s6 + $0x1d8] sm:$0xff] %v3411
  %3476 = vst [vmem:[%s6 + $0x1e0] sm:$0xff] %v3412
  %3477 = vst [vmem:[%s6 + $0x1e8] sm:$0xff] %v3413
  %3478 = vst [vmem:[%s6 + $0x1f0] sm:$0xff] %v3414
  %3479 = vst [vmem:[%s6 + $0x1f8] sm:$0xff] %v3415
  // Predicated region
  $region26: #{biege_forward.2} parent=0 // pred_check
    _
  $region27: #{biege_forward.2} parent=0 // pred_check_branch
    %3481 = sbr.rel (0) target = $region29
  $region28: #{biege_forward.2} parent=0 // pred_region
    _
  $region29: #{biege_forward.2} parent=0 // pred_fallthru
    _
  // Predicated region
  $region30: #{biege_forward.2} parent=0 // pred_check
    _
  $region31: #{biege_forward.2} parent=0 // pred_check_branch
    %3483 = sbr.rel (0) target = $region33
  $region32: #{biege_forward.2} parent=0 // pred_region
    _
  $region33: #{biege_forward.2} parent=0 // pred_fallthru
    _

</llo_original>
